<compile_context>
chip_gen: v7x
topology: tpu7x:2x2x1
jax: 0.10.0
libtpu: 0.0.40
codegen_flags: <defaults>
</compile_context>

<pallas_src>
import functools

import jax
import jax.numpy as jnp
import numpy as np
from jax.experimental import pallas as pl
from jax.experimental.pallas import tpu as pltpu

# ---------------------------------------------------------------------------
# Model hyper-parameters (synthetic MobileSAM-lite + probabilistic seg model)
# ---------------------------------------------------------------------------
C_IN = 3      # RGB channels
C_FEAT = 8    # encoder feature channels
N_MASKS = 4   # SAM mask proposals per prompt
N_MLP = 4     # predicted per-pixel MLP parameters: [w_r, w_g, w_b, bias]

# Packed weight table (SMEM):
#   rows 0:C_FEAT      -> [w_enc (3 cols), b_enc (col 3), pad]
#   rows C_FEAT:12     -> [w_mask (8 cols), b_mask (col 8)]
W1_ROWS = C_FEAT + N_MASKS        # 12
W1_COLS = C_FEAT + 1              # 9

# Per-batch "selected" parameter row (SMEM) for the apply kernel:
#   [0:8] selected w_mask row, [8] selected b_mask,
#   [9:12] per-pixel rgb weights, [12] per-pixel bias, [13:16] pad.
SEL_W = 16

LANES = 128
SUB_U8 = 32            # uint8 / int8 sublane tile
INV255 = 1.0 / 255.0


# ---------------------------------------------------------------------------
# Shared per-pixel encoder: relu(W_enc @ rgb + b_enc), one (S,128) tensor per
# feature channel.  Weights are SMEM scalars -> pure scalar x vector VPU FMAs.
# ---------------------------------------------------------------------------
def _feat_channels(w1_ref, r, g, b):
    feats = []
    for cf in range(C_FEAT):
        f = (w1_ref[cf, 0] * r + w1_ref[cf, 1] * g
             + w1_ref[cf, 2] * b + w1_ref[cf, C_IN])
        feats.append(jnp.maximum(f, 0.0))
    return feats


# ---------------------------------------------------------------------------
# Pass 1: per-batch / per-mask statistics, accumulated over pixel tiles.
# ---------------------------------------------------------------------------
def _stats_kernel(rgb_ref, w1_ref,
                  feat_sum_ref, rgb_sum_ref, fg_cnt_ref, fg_sum_ref,
                  *, tile_rows, tiles_per_split, n_valid, has_pad):
    si = pl.program_id(1)
    ni = pl.program_id(2)

    @pl.when(ni == 0)
    def _init():
        feat_sum_ref[...] = jnp.zeros_like(feat_sum_ref)
        rgb_sum_ref[...] = jnp.zeros_like(rgb_sum_ref)
        fg_cnt_ref[...] = jnp.zeros_like(fg_cnt_ref)
        fg_sum_ref[...] = jnp.zeros_like(fg_sum_ref)

    # uint8 crosses HBM (3 B/pixel); cast to f32 in dense (S,128) vregs.
    r = rgb_ref[0, 0].astype(jnp.float32) * INV255          # (S, 128)
    g = rgb_ref[0, 1].astype(jnp.float32) * INV255
    b = rgb_ref[0, 2].astype(jnp.float32) * INV255

    feats = _feat_channels(w1_ref, r, g, b)                  # C_FEAT x (S,128)

    # All-proposal binary masks for this tile (never a full (N_MASKS, N)).
    binaries = []
    for m in range(N_MASKS):
        acc = w1_ref[C_FEAT + m, 0] * feats[0]
        for cf in range(1, C_FEAT):
            acc = acc + w1_ref[C_FEAT + m, cf] * feats[cf]
        acc = acc + w1_ref[C_FEAT + m, C_FEAT]
        binaries.append((acc > 0.0).astype(jnp.float32))     # (S, 128)

    if has_pad:
        # Mask out the zero-padded pixel tail.  rgb/fg_sum need no masking
        # because the padded rgb values are exactly zero.
        base_row = (si * tiles_per_split + ni) * tile_rows
        row = base_row + jax.lax.broadcasted_iota(jnp.int32, (tile_rows, LANES), 0)
        lane = jax.lax.broadcasted_iota(jnp.int32, (tile_rows, LANES), 1)
        valid = (row * LANES + lane < n_valid).astype(jnp.float32)
        feats_v = [f * valid for f in feats]
        cnts_v = [bm * valid for bm in binaries]
    else:
        feats_v = feats
        cnts_v = binaries

    # Sublane-partial reductions only; the 128-lane reduce is deferred to the
    # JAX head so the steady-state loop keeps XLU traffic minimal.
    def _rows(ts):
        return jnp.concatenate(
            [jnp.sum(t, axis=0, keepdims=True) for t in ts], axis=0)

    feat_sum_ref[0, 0] = feat_sum_ref[0, 0] + _rows(feats_v)        # (8,128)
    rgb_sum_ref[0, 0] = rgb_sum_ref[0, 0] + _rows([r, g, b])        # (3,128)
    fg_cnt_ref[0, 0] = fg_cnt_ref[0, 0] + _rows(cnts_v)             # (4,128)
    fg_rows = []
    for m in range(N_MASKS):
        bm = binaries[m]
        fg_rows += [bm * r, bm * g, bm * b]
    fg_sum_ref[0, 0] = fg_sum_ref[0, 0] + _rows(fg_rows)            # (12,128)


# ---------------------------------------------------------------------------
# Pass 2: per-pixel apply (selected binary mask + probabilistic segmentation)
# ---------------------------------------------------------------------------
def _apply_kernel(rgb_ref, w1_ref, sel_ref, prob_ref, bin_ref):
    bi = pl.program_id(0)

    r = rgb_ref[0, 0].astype(jnp.float32) * INV255           # (S, 128)
    g = rgb_ref[0, 1].astype(jnp.float32) * INV255
    b = rgb_ref[0, 2].astype(jnp.float32) * INV255

    feats = _feat_channels(w1_ref, r, g, b)

    # Only the argmax-selected proposal row is evaluated (onehot folded away).
    acc = sel_ref[bi, 0] * feats[0]
    for cf in range(1, C_FEAT):
        acc = acc + sel_ref[bi, cf] * feats[cf]
    acc = acc + sel_ref[bi, C_FEAT]
    binary = acc > 0.0

    # Per-pixel linear classifier with the predicted MLP parameters.
    logits = (sel_ref[bi, 9] * r + sel_ref[bi, 10] * g
              + sel_ref[bi, 11] * b + sel_ref[bi, 12])
    # TODO(synk): emit bf16 prob on v5e if downstream tolerates it (halves
    # pass-2 write traffic on the lowest-HBM-BW generation).
    prob_ref[0] = jax.nn.sigmoid(logits)
    bin_ref[0] = binary.astype(jnp.int8)


# ---------------------------------------------------------------------------
# Wrapper
# ---------------------------------------------------------------------------
def _pick_tile_rows(nr_pad, cap_rows=512):
    """Largest multiple of 32 (uint8/int8 sublane tile) dividing nr_pad, capped
    so the per-tile f32 intermediates stay well under the scoped VMEM limit."""
    best = SUB_U8
    s = SUB_U8
    while s <= min(nr_pad, cap_rows):
        if nr_pad % s == 0:
            best = s
        s += SUB_U8
    return best


def _pack_w1(w_enc, b_enc, w_mask, b_mask):
    w1 = jnp.zeros((W1_ROWS, W1_COLS), jnp.float32)
    w1 = w1.at[0:C_FEAT, 0:C_IN].set(w_enc)
    w1 = w1.at[0:C_FEAT, C_IN].set(b_enc[:, 0])
    w1 = w1.at[C_FEAT:, 0:C_FEAT].set(w_mask)
    w1 = w1.at[C_FEAT:, C_FEAT].set(b_mask[:, 0])
    return w1


@functools.partial(jax.jit, static_argnames=("tile_rows",))
def object_segmentation_prediction(rgbs_nchw_u8, contour_points, params,
                                   tile_rows=None):
    """Forward pass (default flags: pixel_segmentation_only=False,
    mlp_parameters_prediction_only=False).

    Args:
      rgbs_nchw_u8:    (B, 3, H, W) uint8 RGB images (NCHW like PyTorch).
      contour_points:  (B, P, 2) float32 contour-point prompts (pixel coords).
      params:          tuple of synthetic weights.
      tile_rows:       static pixel-tile row count (multiple of 32; each row is
                       128 pixels).  Defaults to the largest divisor <= 512.

    Returns:
      prob_masks:   (B, H, W) float32 probabilistic segmentation masks.
      binary_masks: (B, 1, H, W) bool MobileSAM binary masks (best iou).
    """
    (w_enc, b_enc, w_mask, b_mask, w_iou, b_iou, w_pt, w_fg, w_bg,
     b_param) = params
    B, C, H, W = rgbs_nchw_u8.shape
    N = H * W
    nr = pl.cdiv(N, LANES)
    nr_pad = ((nr + SUB_U8 - 1) // SUB_U8) * SUB_U8
    n_pad = nr_pad * LANES
    if tile_rows is None:
        tile_rows = _pick_tile_rows(nr_pad)
    assert nr_pad % tile_rows == 0 and tile_rows % SUB_U8 == 0
    nt_total = nr_pad // tile_rows
    # Pixel-axis megacore split (helps v7x when B is 1 or odd; no-op elsewhere).
    nsplit = 2 if nt_total % 2 == 0 else 1
    nt = nt_total // nsplit
    has_pad = n_pad != N

    rgb_flat = rgbs_nchw_u8.reshape(B, C, N)
    if has_pad:
        rgb_flat = jnp.pad(rgb_flat, ((0, 0), (0, 0), (0, n_pad - N)))
    rgb = rgb_flat.reshape(B, C, nr_pad, LANES)   # dense (sublane, lane) pixels

    w1 = _pack_w1(w_enc, b_enc, w_mask, b_mask)
    pts = jnp.mean(contour_points.astype(jnp.float32), axis=1) / jnp.array(
        [W, H], dtype=jnp.float32)                                  # (B, 2)

    smem_spec = pl.BlockSpec(memory_space=pltpu.MemorySpace.SMEM)
    vmem_limit = 32 * 1024 * 1024

    # ---- pass 1: per-batch / per-mask statistics ----------------------------
    stats_kernel = functools.partial(
        _stats_kernel, tile_rows=tile_rows, tiles_per_split=nt,
        n_valid=N, has_pad=has_pad)

    feat_sum, rgb_sum, fg_cnt, fg_sum = pl.pallas_call(
        stats_kernel,
        out_shape=(
            jax.ShapeDtypeStruct((B, nsplit, C_FEAT, LANES), jnp.float32),
            jax.ShapeDtypeStruct((B, nsplit, C_IN, LANES), jnp.float32),
            jax.ShapeDtypeStruct((B, nsplit, N_MASKS, LANES), jnp.float32),
            jax.ShapeDtypeStruct((B, nsplit, N_MASKS * C_IN, LANES),
                                 jnp.float32)),
        grid_spec=pltpu.PrefetchScalarGridSpec(
            num_scalar_prefetch=0,
            grid=(B, nsplit, nt),
            in_specs=[
                pl.BlockSpec((1, C_IN, tile_rows, LANES),
                             lambda bi, si, ni: (bi, 0, si * nt + ni, 0)),
                smem_spec,
            ],
            out_specs=(
                pl.BlockSpec((1, 1, C_FEAT, LANES),
                             lambda bi, si, ni: (bi, si, 0, 0)),
                pl.BlockSpec((1, 1, C_IN, LANES),
                             lambda bi, si, ni: (bi, si, 0, 0)),
                pl.BlockSpec((1, 1, N_MASKS, LANES),
                             lambda bi, si, ni: (bi, si, 0, 0)),
                pl.BlockSpec((1, 1, N_MASKS * C_IN, LANES),
                             lambda bi, si, ni: (bi, si, 0, 0)),
            )),
        compiler_params=pltpu.CompilerParams(
            dimension_semantics=("parallel", "parallel", "arbitrary"),
            vmem_limit_bytes=vmem_limit),
        cost_estimate=pl.CostEstimate(
            flops=170 * B * n_pad, transcendentals=0,
            bytes_accessed=3 * B * n_pad + 4 * B * nsplit * 27 * LANES
            + 4 * W1_ROWS * W1_COLS),
    )(rgb, w1)

    # ---- tiny per-batch head (plain JAX): iou + argmax + fg/bg means --------
    # TODO(synk): accumulate counts in int32 for images >16M pixels (f32 exact
    # only up to 2^24).
    feat_tot = jnp.sum(feat_sum, axis=(1, 3))                        # (B, 8)
    rgb_tot = jnp.sum(rgb_sum, axis=(1, 3))                          # (B, 3)
    cnt_tot = jnp.sum(fg_cnt, axis=(1, 3))                           # (B, 4)
    fgsum_tot = jnp.sum(fg_sum, axis=(1, 3)).reshape(B, N_MASKS, C_IN)

    pooled = feat_tot / float(N)                                     # (B, 8)
    iou = pooled @ w_iou.T + b_iou[None, :, 0] + pts @ w_pt.T        # (B, 4)
    best = jnp.argmax(iou, axis=1)                                   # (B,)

    w_sel = w_mask[best]                                             # (B, 8)
    b_sel = b_mask[best]                                             # (B, 1)
    cnt = jnp.take_along_axis(cnt_tot, best[:, None], axis=1)        # (B, 1)
    fsum = jnp.take_along_axis(fgsum_tot, best[:, None, None],
                               axis=1)[:, 0]                         # (B, 3)
    bcnt = float(N) - cnt
    bsum = rgb_tot - fsum
    fg_mean = fsum / jnp.maximum(cnt, 1.0)
    bg_mean = bsum / jnp.maximum(bcnt, 1.0)
    p = fg_mean @ w_fg.T + bg_mean @ w_bg.T + b_param[None, :, 0]    # (B, 4)

    pad = SEL_W - (C_FEAT + 1 + N_MLP)
    sel = jnp.concatenate(
        [w_sel, b_sel, p, jnp.zeros((B, pad), jnp.float32)], axis=1)  # (B, 16)

    # ---- pass 2: per-pixel apply --------------------------------------------
    prob, binm = pl.pallas_call(
        _apply_kernel,
        out_shape=(jax.ShapeDtypeStruct((B, nr_pad, LANES), jnp.float32),
                   jax.ShapeDtypeStruct((B, nr_pad, LANES), jnp.int8)),
        grid_spec=pltpu.PrefetchScalarGridSpec(
            num_scalar_prefetch=0,
            grid=(B, nt_total),
            in_specs=[
                pl.BlockSpec((1, C_IN, tile_rows, LANES),
                             lambda bi, ni: (bi, 0, ni, 0)),
                smem_spec,
                smem_spec,
            ],
            out_specs=(
                pl.BlockSpec((1, tile_rows, LANES), lambda bi, ni: (bi, ni, 0)),
                pl.BlockSpec((1, tile_rows, LANES), lambda bi, ni: (bi, ni, 0)),
            )),
        compiler_params=pltpu.CompilerParams(
            dimension_semantics=("parallel", "parallel"),
            vmem_limit_bytes=vmem_limit),
        cost_estimate=pl.CostEstimate(
            flops=100 * B * n_pad, transcendentals=B * n_pad,
            bytes_accessed=8 * B * n_pad),
    )(rgb, w1, sel)

    prob_masks = prob.reshape(B, n_pad)[:, :N].reshape(B, H, W)
    binary_masks = (binm.reshape(B, n_pad)[:, :N] > 0).reshape(B, 1, H, W)
    return prob_masks, binary_masks


# ---------------------------------------------------------------------------
# Pure-JAX reference (same math & op order, no Pallas) for correctness
# ---------------------------------------------------------------------------
def reference_forward(rgbs_nchw_u8, contour_points, params):
    (w_enc, b_enc, w_mask, b_mask, w_iou, b_iou, w_pt, w_fg, w_bg,
     b_param) = params
    B, C, H, W = rgbs_nchw_u8.shape
    N = H * W
    rgbf = rgbs_nchw_u8.reshape(B, C, N).astype(jnp.float32) * INV255
    r = rgbf[:, 0:1, :]
    g = rgbf[:, 1:2, :]
    b = rgbf[:, 2:3, :]
    pts = jnp.mean(contour_points.astype(jnp.float32), axis=1) / jnp.array(
        [W, H], dtype=jnp.float32)

    feat = w_enc[None, :, 0:1] * r + w_enc[None, :, 1:2] * g \
        + w_enc[None, :, 2:3] * b + b_enc[None, :, :]
    feat = jnp.maximum(feat, 0.0)                                  # (B, 8, N)

    acc = w_mask[None, :, 0:1] * feat[:, 0:1, :]
    for c in range(1, C_FEAT):
        acc = acc + w_mask[None, :, c:c + 1] * feat[:, c:c + 1, :]
    mask_logits = acc + b_mask[None, :, :]                         # (B, 4, N)

    pooled = jnp.mean(feat, axis=-1)                               # (B, 8)
    iou = pooled @ w_iou.T + b_iou[None, :, 0] + pts @ w_pt.T      # (B, 4)
    best = jnp.argmax(iou, axis=1)

    sel_logits = jnp.take_along_axis(
        mask_logits, best[:, None, None], axis=1)[:, 0]            # (B, N)
    binary = sel_logits > 0.0
    binf = binary.astype(jnp.float32)

    fg_cnt = binf.sum(-1, keepdims=True)                           # (B, 1)
    bg_cnt = float(N) - fg_cnt
    fg_sum = (rgbf * binf[:, None, :]).sum(-1)                     # (B, 3)
    bg_sum = rgbf.sum(-1) - fg_sum
    fg_mean = fg_sum / jnp.maximum(fg_cnt, 1.0)
    bg_mean = bg_sum / jnp.maximum(bg_cnt, 1.0)
    p = fg_mean @ w_fg.T + bg_mean @ w_bg.T + b_param[None, :, 0]  # (B, 4)

    logits = (p[:, 0:1] * r[:, 0, :] + p[:, 1:2] * g[:, 0, :]
              + p[:, 2:3] * b[:, 0, :] + p[:, 3:4])
    prob = jax.nn.sigmoid(logits)
    return prob.reshape(B, H, W), binary.reshape(B, 1, H, W)


def init_params(key):
    ks = jax.random.split(key, 10)
    sc = 0.5
    w_enc = sc * jax.random.normal(ks[0], (C_FEAT, C_IN), jnp.float32)
    b_enc = sc * jax.random.normal(ks[1], (C_FEAT, 1), jnp.float32)
    w_mask = sc * jax.random.normal(ks[2], (N_MASKS, C_FEAT), jnp.float32)
    b_mask = sc * jax.random.normal(ks[3], (N_MASKS, 1), jnp.float32)
    w_iou = sc * jax.random.normal(ks[4], (N_MASKS, C_FEAT), jnp.float32)
    b_iou = sc * jax.random.normal(ks[5], (N_MASKS, 1), jnp.float32)
    w_pt = sc * jax.random.normal(ks[6], (N_MASKS, 2), jnp.float32)
    w_fg = sc * jax.random.normal(ks[7], (N_MLP, C_IN), jnp.float32)
    w_bg = sc * jax.random.normal(ks[8], (N_MLP, C_IN), jnp.float32)
    b_param = sc * jax.random.normal(ks[9], (N_MLP, 1), jnp.float32)
    return (w_enc, b_enc, w_mask, b_mask, w_iou, b_iou, w_pt, w_fg, w_bg,
            b_param)


if __name__ == "__main__":
    key = jax.random.PRNGKey(0)
    k_img, k_pts, k_par = jax.random.split(key, 3)

    # BatchInferenceData.rgbs (NCHW).  H*W = 15360 pixels -> 120 lane-rows,
    # padded to 128 rows: exercises the tiled accumulation (4 tiles/image),
    # the megacore pixel split (2 x 2) and the ragged-tail mask.
    B, C, H, W = 2, 3, 120, 128
    P = 8                            # contour points per image

    rgbs = jax.random.randint(
        k_img, (B, C, H, W), 0, 256, dtype=jnp.int32).astype(jnp.uint8)
    contour_points = jax.random.uniform(
        k_pts, (B, P, 2), jnp.float32, minval=0.0, maxval=float(min(H, W)))
    params = init_params(k_par)

    prob_masks, binary_masks = object_segmentation_prediction(
        rgbs, contour_points, params, tile_rows=32)
    prob_masks = jax.block_until_ready(prob_masks)
    binary_masks = jax.block_until_ready(binary_masks)

    ref_prob, ref_bin = reference_forward(rgbs, contour_points, params)
    np.testing.assert_array_equal(np.asarray(binary_masks), np.asarray(ref_bin))
    np.testing.assert_allclose(np.asarray(prob_masks), np.asarray(ref_prob),
                               rtol=1e-3, atol=1e-3)

    print("KERNEL_OK")
</pallas_src>

<mosaic_0001>
module attributes {stable_mosaic.version = 11 : i64} {
  func.func @_stats_kernel(%arg0: i32, %arg1: i32, %arg2: i32, %arg3: memref<1x3x32x128xi8, #tpu.memory_space<vmem>>, %arg4: memref<12x9xf32, #tpu.memory_space<smem>>, %arg5: memref<1x1x8x128xf32, #tpu.memory_space<vmem>>, %arg6: memref<1x1x3x128xf32, #tpu.memory_space<vmem>>, %arg7: memref<1x1x4x128xf32, #tpu.memory_space<vmem>>, %arg8: memref<1x1x12x128xf32, #tpu.memory_space<vmem>>) attributes {dimension_semantics = [#tpu.dimension_semantics<parallel>, #tpu.dimension_semantics<parallel>, #tpu.dimension_semantics<arbitrary>], iteration_bounds = array<i64: 2, 2, 2>, scalar_prefetch = 0 : i64, scratch_operands = 0 : i64, tpu.core_type = #tpu.core_type<tc>, window_params = [{transform_indices = @transform_0, window_bounds = array<i64: 1, 3, 32, 128>}, {transform_indices = @transform_1, window_bounds = array<i64: 12, 9>}, {transform_indices = @transform_2, window_bounds = array<i64: 1, 1, 8, 128>}, {transform_indices = @transform_3, window_bounds = array<i64: 1, 1, 3, 128>}, {transform_indices = @transform_4, window_bounds = array<i64: 1, 1, 4, 128>}, {transform_indices = @transform_5, window_bounds = array<i64: 1, 1, 12, 128>}]} {
    %c0_i32 = arith.constant 0 : i32
    %0 = arith.cmpi eq, %arg2, %c0_i32 : i32
    %1 = arith.extui %0 : i1 to i32
    %c0_i32_0 = arith.constant 0 : i32
    %2 = arith.cmpi ne, %1, %c0_i32_0 : i32
    scf.if %2 {
      %cst_210 = arith.constant 0.000000e+00 : f32
      %418 = vector.broadcast %cst_210 : f32 to vector<1x1x8x128xf32>
      %c0_211 = arith.constant 0 : index
      %c0_212 = arith.constant 0 : index
      %c0_213 = arith.constant 0 : index
      %c0_214 = arith.constant 0 : index
      %419 = vector.load %arg5[%c0_211, %c0_212, %c0_213, %c0_214] : memref<1x1x8x128xf32, #tpu.memory_space<vmem>>, vector<1x1x8x128xf32>
      tpu.vector_store %arg5[%c0_211, %c0_212, %c0_213, %c0_214], %418 {strides = array<i32>} : memref<1x1x8x128xf32, #tpu.memory_space<vmem>>, vector<1x1x8x128xf32>,
      %cst_215 = arith.constant 0.000000e+00 : f32
      %420 = vector.broadcast %cst_215 : f32 to vector<1x1x3x128xf32>
      %c0_216 = arith.constant 0 : index
      %c0_217 = arith.constant 0 : index
      %c0_218 = arith.constant 0 : index
      %c0_219 = arith.constant 0 : index
      %421 = vector.load %arg6[%c0_216, %c0_217, %c0_218, %c0_219] : memref<1x1x3x128xf32, #tpu.memory_space<vmem>>, vector<1x1x3x128xf32>
      tpu.vector_store %arg6[%c0_216, %c0_217, %c0_218, %c0_219], %420 {strides = array<i32>} : memref<1x1x3x128xf32, #tpu.memory_space<vmem>>, vector<1x1x3x128xf32>,
      %cst_220 = arith.constant 0.000000e+00 : f32
      %422 = vector.broadcast %cst_220 : f32 to vector<1x1x4x128xf32>
      %c0_221 = arith.constant 0 : index
      %c0_222 = arith.constant 0 : index
      %c0_223 = arith.constant 0 : index
      %c0_224 = arith.constant 0 : index
      %423 = vector.load %arg7[%c0_221, %c0_222, %c0_223, %c0_224] : memref<1x1x4x128xf32, #tpu.memory_space<vmem>>, vector<1x1x4x128xf32>
      tpu.vector_store %arg7[%c0_221, %c0_222, %c0_223, %c0_224], %422 {strides = array<i32>} : memref<1x1x4x128xf32, #tpu.memory_space<vmem>>, vector<1x1x4x128xf32>,
      %cst_225 = arith.constant 0.000000e+00 : f32
      %424 = vector.broadcast %cst_225 : f32 to vector<1x1x12x128xf32>
      %c0_226 = arith.constant 0 : index
      %c0_227 = arith.constant 0 : index
      %c0_228 = arith.constant 0 : index
      %c0_229 = arith.constant 0 : index
      %425 = vector.load %arg8[%c0_226, %c0_227, %c0_228, %c0_229] : memref<1x1x12x128xf32, #tpu.memory_space<vmem>>, vector<1x1x12x128xf32>
      tpu.vector_store %arg8[%c0_226, %c0_227, %c0_228, %c0_229], %424 {strides = array<i32>} : memref<1x1x12x128xf32, #tpu.memory_space<vmem>>, vector<1x1x12x128xf32>,
    } else {
    }
    %c0 = arith.constant 0 : index
    %c0_1 = arith.constant 0 : index
    %c0_2 = arith.constant 0 : index
    %c0_3 = arith.constant 0 : index
    %3 = vector.load %arg3[%c0, %c0_1, %c0_2, %c0_3] : memref<1x3x32x128xi8, #tpu.memory_space<vmem>>, vector<1x1x32x128xi8>
    %4 = vector.shape_cast %3 : vector<1x1x32x128xi8> to vector<32x128xi8>
    %5 = arith.uitofp %4 : vector<32x128xi8> to vector<32x128xf32>
    %cst = arith.constant 0.00392156886 : f32
    %6 = vector.broadcast %cst : f32 to vector<32x128xf32>
    %7 = arith.mulf %5, %6 : vector<32x128xf32>
    %c0_4 = arith.constant 0 : index
    %c1 = arith.constant 1 : index
    %c0_5 = arith.constant 0 : index
    %c0_6 = arith.constant 0 : index
    %8 = vector.load %arg3[%c0_4, %c1, %c0_5, %c0_6] : memref<1x3x32x128xi8, #tpu.memory_space<vmem>>, vector<1x1x32x128xi8>
    %9 = vector.shape_cast %8 : vector<1x1x32x128xi8> to vector<32x128xi8>
    %10 = arith.uitofp %9 : vector<32x128xi8> to vector<32x128xf32>
    %cst_7 = arith.constant 0.00392156886 : f32
    %11 = vector.broadcast %cst_7 : f32 to vector<32x128xf32>
    %12 = arith.mulf %10, %11 : vector<32x128xf32>
    %c0_8 = arith.constant 0 : index
    %c2 = arith.constant 2 : index
    %c0_9 = arith.constant 0 : index
    %c0_10 = arith.constant 0 : index
    %13 = vector.load %arg3[%c0_8, %c2, %c0_9, %c0_10] : memref<1x3x32x128xi8, #tpu.memory_space<vmem>>, vector<1x1x32x128xi8>
    %14 = vector.shape_cast %13 : vector<1x1x32x128xi8> to vector<32x128xi8>
    %15 = arith.uitofp %14 : vector<32x128xi8> to vector<32x128xf32>
    %cst_11 = arith.constant 0.00392156886 : f32
    %16 = vector.broadcast %cst_11 : f32 to vector<32x128xf32>
    %17 = arith.mulf %15, %16 : vector<32x128xf32>
    %c0_12 = arith.constant 0 : index
    %c0_13 = arith.constant 0 : index
    %18 = memref.load %arg4[%c0_12, %c0_13] : memref<12x9xf32, #tpu.memory_space<smem>>
    %19 = vector.broadcast %18 : f32 to vector<32x128xf32>
    %20 = arith.mulf %19, %7 : vector<32x128xf32>
    %c0_14 = arith.constant 0 : index
    %c1_15 = arith.constant 1 : index
    %21 = memref.load %arg4[%c0_14, %c1_15] : memref<12x9xf32, #tpu.memory_space<smem>>
    %22 = vector.broadcast %21 : f32 to vector<32x128xf32>
    %23 = arith.mulf %22, %12 : vector<32x128xf32>
    %24 = arith.addf %20, %23 : vector<32x128xf32>
    %c0_16 = arith.constant 0 : index
    %c2_17 = arith.constant 2 : index
    %25 = memref.load %arg4[%c0_16, %c2_17] : memref<12x9xf32, #tpu.memory_space<smem>>
    %26 = vector.broadcast %25 : f32 to vector<32x128xf32>
    %27 = arith.mulf %26, %17 : vector<32x128xf32>
    %28 = arith.addf %24, %27 : vector<32x128xf32>
    %c0_18 = arith.constant 0 : index
    %c3 = arith.constant 3 : index
    %29 = memref.load %arg4[%c0_18, %c3] : memref<12x9xf32, #tpu.memory_space<smem>>
    %30 = vector.broadcast %29 : f32 to vector<32x128xf32>
    %31 = arith.addf %28, %30 : vector<32x128xf32>
    %cst_19 = arith.constant 0.000000e+00 : f32
    %32 = vector.broadcast %cst_19 : f32 to vector<32x128xf32>
    %33 = arith.maximumf %31, %32 : vector<32x128xf32>
    %c1_20 = arith.constant 1 : index
    %c0_21 = arith.constant 0 : index
    %34 = memref.load %arg4[%c1_20, %c0_21] : memref<12x9xf32, #tpu.memory_space<smem>>
    %35 = vector.broadcast %34 : f32 to vector<32x128xf32>
    %36 = arith.mulf %35, %7 : vector<32x128xf32>
    %c1_22 = arith.constant 1 : index
    %c1_23 = arith.constant 1 : index
    %37 = memref.load %arg4[%c1_22, %c1_23] : memref<12x9xf32, #tpu.memory_space<smem>>
    %38 = vector.broadcast %37 : f32 to vector<32x128xf32>
    %39 = arith.mulf %38, %12 : vector<32x128xf32>
    %40 = arith.addf %36, %39 : vector<32x128xf32>
    %c1_24 = arith.constant 1 : index
    %c2_25 = arith.constant 2 : index
    %41 = memref.load %arg4[%c1_24, %c2_25] : memref<12x9xf32, #tpu.memory_space<smem>>
    %42 = vector.broadcast %41 : f32 to vector<32x128xf32>
    %43 = arith.mulf %42, %17 : vector<32x128xf32>
    %44 = arith.addf %40, %43 : vector<32x128xf32>
    %c1_26 = arith.constant 1 : index
    %c3_27 = arith.constant 3 : index
    %45 = memref.load %arg4[%c1_26, %c3_27] : memref<12x9xf32, #tpu.memory_space<smem>>
    %46 = vector.broadcast %45 : f32 to vector<32x128xf32>
    %47 = arith.addf %44, %46 : vector<32x128xf32>
    %cst_28 = arith.constant 0.000000e+00 : f32
    %48 = vector.broadcast %cst_28 : f32 to vector<32x128xf32>
    %49 = arith.maximumf %47, %48 : vector<32x128xf32>
    %c2_29 = arith.constant 2 : index
    %c0_30 = arith.constant 0 : index
    %50 = memref.load %arg4[%c2_29, %c0_30] : memref<12x9xf32, #tpu.memory_space<smem>>
    %51 = vector.broadcast %50 : f32 to vector<32x128xf32>
    %52 = arith.mulf %51, %7 : vector<32x128xf32>
    %c2_31 = arith.constant 2 : index
    %c1_32 = arith.constant 1 : index
    %53 = memref.load %arg4[%c2_31, %c1_32] : memref<12x9xf32, #tpu.memory_space<smem>>
    %54 = vector.broadcast %53 : f32 to vector<32x128xf32>
    %55 = arith.mulf %54, %12 : vector<32x128xf32>
    %56 = arith.addf %52, %55 : vector<32x128xf32>
    %c2_33 = arith.constant 2 : index
    %c2_34 = arith.constant 2 : index
    %57 = memref.load %arg4[%c2_33, %c2_34] : memref<12x9xf32, #tpu.memory_space<smem>>
    %58 = vector.broadcast %57 : f32 to vector<32x128xf32>
    %59 = arith.mulf %58, %17 : vector<32x128xf32>
    %60 = arith.addf %56, %59 : vector<32x128xf32>
    %c2_35 = arith.constant 2 : index
    %c3_36 = arith.constant 3 : index
    %61 = memref.load %arg4[%c2_35, %c3_36] : memref<12x9xf32, #tpu.memory_space<smem>>
    %62 = vector.broadcast %61 : f32 to vector<32x128xf32>
    %63 = arith.addf %60, %62 : vector<32x128xf32>
    %cst_37 = arith.constant 0.000000e+00 : f32
    %64 = vector.broadcast %cst_37 : f32 to vector<32x128xf32>
    %65 = arith.maximumf %63, %64 : vector<32x128xf32>
    %c3_38 = arith.constant 3 : index
    %c0_39 = arith.constant 0 : index
    %66 = memref.load %arg4[%c3_38, %c0_39] : memref<12x9xf32, #tpu.memory_space<smem>>
    %67 = vector.broadcast %66 : f32 to vector<32x128xf32>
    %68 = arith.mulf %67, %7 : vector<32x128xf32>
    %c3_40 = arith.constant 3 : index
    %c1_41 = arith.constant 1 : index
    %69 = memref.load %arg4[%c3_40, %c1_41] : memref<12x9xf32, #tpu.memory_space<smem>>
    %70 = vector.broadcast %69 : f32 to vector<32x128xf32>
    %71 = arith.mulf %70, %12 : vector<32x128xf32>
    %72 = arith.addf %68, %71 : vector<32x128xf32>
    %c3_42 = arith.constant 3 : index
    %c2_43 = arith.constant 2 : index
    %73 = memref.load %arg4[%c3_42, %c2_43] : memref<12x9xf32, #tpu.memory_space<smem>>
    %74 = vector.broadcast %73 : f32 to vector<32x128xf32>
    %75 = arith.mulf %74, %17 : vector<32x128xf32>
    %76 = arith.addf %72, %75 : vector<32x128xf32>
    %c3_44 = arith.constant 3 : index
    %c3_45 = arith.constant 3 : index
    %77 = memref.load %arg4[%c3_44, %c3_45] : memref<12x9xf32, #tpu.memory_space<smem>>
    %78 = vector.broadcast %77 : f32 to vector<32x128xf32>
    %79 = arith.addf %76, %78 : vector<32x128xf32>
    %cst_46 = arith.constant 0.000000e+00 : f32
    %80 = vector.broadcast %cst_46 : f32 to vector<32x128xf32>
    %81 = arith.maximumf %79, %80 : vector<32x128xf32>
    %c4 = arith.constant 4 : index
    %c0_47 = arith.constant 0 : index
    %82 = memref.load %arg4[%c4, %c0_47] : memref<12x9xf32, #tpu.memory_space<smem>>
    %83 = vector.broadcast %82 : f32 to vector<32x128xf32>
    %84 = arith.mulf %83, %7 : vector<32x128xf32>
    %c4_48 = arith.constant 4 : index
    %c1_49 = arith.constant 1 : index
    %85 = memref.load %arg4[%c4_48, %c1_49] : memref<12x9xf32, #tpu.memory_space<smem>>
    %86 = vector.broadcast %85 : f32 to vector<32x128xf32>
    %87 = arith.mulf %86, %12 : vector<32x128xf32>
    %88 = arith.addf %84, %87 : vector<32x128xf32>
    %c4_50 = arith.constant 4 : index
    %c2_51 = arith.constant 2 : index
    %89 = memref.load %arg4[%c4_50, %c2_51] : memref<12x9xf32, #tpu.memory_space<smem>>
    %90 = vector.broadcast %89 : f32 to vector<32x128xf32>
    %91 = arith.mulf %90, %17 : vector<32x128xf32>
    %92 = arith.addf %88, %91 : vector<32x128xf32>
    %c4_52 = arith.constant 4 : index
    %c3_53 = arith.constant 3 : index
    %93 = memref.load %arg4[%c4_52, %c3_53] : memref<12x9xf32, #tpu.memory_space<smem>>
    %94 = vector.broadcast %93 : f32 to vector<32x128xf32>
    %95 = arith.addf %92, %94 : vector<32x128xf32>
    %cst_54 = arith.constant 0.000000e+00 : f32
    %96 = vector.broadcast %cst_54 : f32 to vector<32x128xf32>
    %97 = arith.maximumf %95, %96 : vector<32x128xf32>
    %c5 = arith.constant 5 : index
    %c0_55 = arith.constant 0 : index
    %98 = memref.load %arg4[%c5, %c0_55] : memref<12x9xf32, #tpu.memory_space<smem>>
    %99 = vector.broadcast %98 : f32 to vector<32x128xf32>
    %100 = arith.mulf %99, %7 : vector<32x128xf32>
    %c5_56 = arith.constant 5 : index
    %c1_57 = arith.constant 1 : index
    %101 = memref.load %arg4[%c5_56, %c1_57] : memref<12x9xf32, #tpu.memory_space<smem>>
    %102 = vector.broadcast %101 : f32 to vector<32x128xf32>
    %103 = arith.mulf %102, %12 : vector<32x128xf32>
    %104 = arith.addf %100, %103 : vector<32x128xf32>
    %c5_58 = arith.constant 5 : index
    %c2_59 = arith.constant 2 : index
    %105 = memref.load %arg4[%c5_58, %c2_59] : memref<12x9xf32, #tpu.memory_space<smem>>
    %106 = vector.broadcast %105 : f32 to vector<32x128xf32>
    %107 = arith.mulf %106, %17 : vector<32x128xf32>
    %108 = arith.addf %104, %107 : vector<32x128xf32>
    %c5_60 = arith.constant 5 : index
    %c3_61 = arith.constant 3 : index
    %109 = memref.load %arg4[%c5_60, %c3_61] : memref<12x9xf32, #tpu.memory_space<smem>>
    %110 = vector.broadcast %109 : f32 to vector<32x128xf32>
    %111 = arith.addf %108, %110 : vector<32x128xf32>
    %cst_62 = arith.constant 0.000000e+00 : f32
    %112 = vector.broadcast %cst_62 : f32 to vector<32x128xf32>
    %113 = arith.maximumf %111, %112 : vector<32x128xf32>
    %c6 = arith.constant 6 : index
    %c0_63 = arith.constant 0 : index
    %114 = memref.load %arg4[%c6, %c0_63] : memref<12x9xf32, #tpu.memory_space<smem>>
    %115 = vector.broadcast %114 : f32 to vector<32x128xf32>
    %116 = arith.mulf %115, %7 : vector<32x128xf32>
    %c6_64 = arith.constant 6 : index
    %c1_65 = arith.constant 1 : index
    %117 = memref.load %arg4[%c6_64, %c1_65] : memref<12x9xf32, #tpu.memory_space<smem>>
    %118 = vector.broadcast %117 : f32 to vector<32x128xf32>
    %119 = arith.mulf %118, %12 : vector<32x128xf32>
    %120 = arith.addf %116, %119 : vector<32x128xf32>
    %c6_66 = arith.constant 6 : index
    %c2_67 = arith.constant 2 : index
    %121 = memref.load %arg4[%c6_66, %c2_67] : memref<12x9xf32, #tpu.memory_space<smem>>
    %122 = vector.broadcast %121 : f32 to vector<32x128xf32>
    %123 = arith.mulf %122, %17 : vector<32x128xf32>
    %124 = arith.addf %120, %123 : vector<32x128xf32>
    %c6_68 = arith.constant 6 : index
    %c3_69 = arith.constant 3 : index
    %125 = memref.load %arg4[%c6_68, %c3_69] : memref<12x9xf32, #tpu.memory_space<smem>>
    %126 = vector.broadcast %125 : f32 to vector<32x128xf32>
    %127 = arith.addf %124, %126 : vector<32x128xf32>
    %cst_70 = arith.constant 0.000000e+00 : f32
    %128 = vector.broadcast %cst_70 : f32 to vector<32x128xf32>
    %129 = arith.maximumf %127, %128 : vector<32x128xf32>
    %c7 = arith.constant 7 : index
    %c0_71 = arith.constant 0 : index
    %130 = memref.load %arg4[%c7, %c0_71] : memref<12x9xf32, #tpu.memory_space<smem>>
    %131 = vector.broadcast %130 : f32 to vector<32x128xf32>
    %132 = arith.mulf %131, %7 : vector<32x128xf32>
    %c7_72 = arith.constant 7 : index
    %c1_73 = arith.constant 1 : index
    %133 = memref.load %arg4[%c7_72, %c1_73] : memref<12x9xf32, #tpu.memory_space<smem>>
    %134 = vector.broadcast %133 : f32 to vector<32x128xf32>
    %135 = arith.mulf %134, %12 : vector<32x128xf32>
    %136 = arith.addf %132, %135 : vector<32x128xf32>
    %c7_74 = arith.constant 7 : index
    %c2_75 = arith.constant 2 : index
    %137 = memref.load %arg4[%c7_74, %c2_75] : memref<12x9xf32, #tpu.memory_space<smem>>
    %138 = vector.broadcast %137 : f32 to vector<32x128xf32>
    %139 = arith.mulf %138, %17 : vector<32x128xf32>
    %140 = arith.addf %136, %139 : vector<32x128xf32>
    %c7_76 = arith.constant 7 : index
    %c3_77 = arith.constant 3 : index
    %141 = memref.load %arg4[%c7_76, %c3_77] : memref<12x9xf32, #tpu.memory_space<smem>>
    %142 = vector.broadcast %141 : f32 to vector<32x128xf32>
    %143 = arith.addf %140, %142 : vector<32x128xf32>
    %cst_78 = arith.constant 0.000000e+00 : f32
    %144 = vector.broadcast %cst_78 : f32 to vector<32x128xf32>
    %145 = arith.maximumf %143, %144 : vector<32x128xf32>
    %c8 = arith.constant 8 : index
    %c0_79 = arith.constant 0 : index
    %146 = memref.load %arg4[%c8, %c0_79] : memref<12x9xf32, #tpu.memory_space<smem>>
    %147 = vector.broadcast %146 : f32 to vector<32x128xf32>
    %148 = arith.mulf %147, %33 : vector<32x128xf32>
    %c8_80 = arith.constant 8 : index
    %c1_81 = arith.constant 1 : index
    %149 = memref.load %arg4[%c8_80, %c1_81] : memref<12x9xf32, #tpu.memory_space<smem>>
    %150 = vector.broadcast %149 : f32 to vector<32x128xf32>
    %151 = arith.mulf %150, %49 : vector<32x128xf32>
    %152 = arith.addf %148, %151 : vector<32x128xf32>
    %c8_82 = arith.constant 8 : index
    %c2_83 = arith.constant 2 : index
    %153 = memref.load %arg4[%c8_82, %c2_83] : memref<12x9xf32, #tpu.memory_space<smem>>
    %154 = vector.broadcast %153 : f32 to vector<32x128xf32>
    %155 = arith.mulf %154, %65 : vector<32x128xf32>
    %156 = arith.addf %152, %155 : vector<32x128xf32>
    %c8_84 = arith.constant 8 : index
    %c3_85 = arith.constant 3 : index
    %157 = memref.load %arg4[%c8_84, %c3_85] : memref<12x9xf32, #tpu.memory_space<smem>>
    %158 = vector.broadcast %157 : f32 to vector<32x128xf32>
    %159 = arith.mulf %158, %81 : vector<32x128xf32>
    %160 = arith.addf %156, %159 : vector<32x128xf32>
    %c8_86 = arith.constant 8 : index
    %c4_87 = arith.constant 4 : index
    %161 = memref.load %arg4[%c8_86, %c4_87] : memref<12x9xf32, #tpu.memory_space<smem>>
    %162 = vector.broadcast %161 : f32 to vector<32x128xf32>
    %163 = arith.mulf %162, %97 : vector<32x128xf32>
    %164 = arith.addf %160, %163 : vector<32x128xf32>
    %c8_88 = arith.constant 8 : index
    %c5_89 = arith.constant 5 : index
    %165 = memref.load %arg4[%c8_88, %c5_89] : memref<12x9xf32, #tpu.memory_space<smem>>
    %166 = vector.broadcast %165 : f32 to vector<32x128xf32>
    %167 = arith.mulf %166, %113 : vector<32x128xf32>
    %168 = arith.addf %164, %167 : vector<32x128xf32>
    %c8_90 = arith.constant 8 : index
    %c6_91 = arith.constant 6 : index
    %169 = memref.load %arg4[%c8_90, %c6_91] : memref<12x9xf32, #tpu.memory_space<smem>>
    %170 = vector.broadcast %169 : f32 to vector<32x128xf32>
    %171 = arith.mulf %170, %129 : vector<32x128xf32>
    %172 = arith.addf %168, %171 : vector<32x128xf32>
    %c8_92 = arith.constant 8 : index
    %c7_93 = arith.constant 7 : index
    %173 = memref.load %arg4[%c8_92, %c7_93] : memref<12x9xf32, #tpu.memory_space<smem>>
    %174 = vector.broadcast %173 : f32 to vector<32x128xf32>
    %175 = arith.mulf %174, %145 : vector<32x128xf32>
    %176 = arith.addf %172, %175 : vector<32x128xf32>
    %c8_94 = arith.constant 8 : index
    %c8_95 = arith.constant 8 : index
    %177 = memref.load %arg4[%c8_94, %c8_95] : memref<12x9xf32, #tpu.memory_space<smem>>
    %178 = vector.broadcast %177 : f32 to vector<32x128xf32>
    %179 = arith.addf %176, %178 : vector<32x128xf32>
    %cst_96 = arith.constant 0.000000e+00 : f32
    %180 = vector.broadcast %cst_96 : f32 to vector<32x128xf32>
    %181 = arith.cmpf ogt, %179, %180 : vector<32x128xf32>
    %182 = arith.extui %181 : vector<32x128xi1> to vector<32x128xi32>
    %183 = arith.sitofp %182 : vector<32x128xi32> to vector<32x128xf32>
    %c9 = arith.constant 9 : index
    %c0_97 = arith.constant 0 : index
    %184 = memref.load %arg4[%c9, %c0_97] : memref<12x9xf32, #tpu.memory_space<smem>>
    %185 = vector.broadcast %184 : f32 to vector<32x128xf32>
    %186 = arith.mulf %185, %33 : vector<32x128xf32>
    %c9_98 = arith.constant 9 : index
    %c1_99 = arith.constant 1 : index
    %187 = memref.load %arg4[%c9_98, %c1_99] : memref<12x9xf32, #tpu.memory_space<smem>>
    %188 = vector.broadcast %187 : f32 to vector<32x128xf32>
    %189 = arith.mulf %188, %49 : vector<32x128xf32>
    %190 = arith.addf %186, %189 : vector<32x128xf32>
    %c9_100 = arith.constant 9 : index
    %c2_101 = arith.constant 2 : index
    %191 = memref.load %arg4[%c9_100, %c2_101] : memref<12x9xf32, #tpu.memory_space<smem>>
    %192 = vector.broadcast %191 : f32 to vector<32x128xf32>
    %193 = arith.mulf %192, %65 : vector<32x128xf32>
    %194 = arith.addf %190, %193 : vector<32x128xf32>
    %c9_102 = arith.constant 9 : index
    %c3_103 = arith.constant 3 : index
    %195 = memref.load %arg4[%c9_102, %c3_103] : memref<12x9xf32, #tpu.memory_space<smem>>
    %196 = vector.broadcast %195 : f32 to vector<32x128xf32>
    %197 = arith.mulf %196, %81 : vector<32x128xf32>
    %198 = arith.addf %194, %197 : vector<32x128xf32>
    %c9_104 = arith.constant 9 : index
    %c4_105 = arith.constant 4 : index
    %199 = memref.load %arg4[%c9_104, %c4_105] : memref<12x9xf32, #tpu.memory_space<smem>>
    %200 = vector.broadcast %199 : f32 to vector<32x128xf32>
    %201 = arith.mulf %200, %97 : vector<32x128xf32>
    %202 = arith.addf %198, %201 : vector<32x128xf32>
    %c9_106 = arith.constant 9 : index
    %c5_107 = arith.constant 5 : index
    %203 = memref.load %arg4[%c9_106, %c5_107] : memref<12x9xf32, #tpu.memory_space<smem>>
    %204 = vector.broadcast %203 : f32 to vector<32x128xf32>
    %205 = arith.mulf %204, %113 : vector<32x128xf32>
    %206 = arith.addf %202, %205 : vector<32x128xf32>
    %c9_108 = arith.constant 9 : index
    %c6_109 = arith.constant 6 : index
    %207 = memref.load %arg4[%c9_108, %c6_109] : memref<12x9xf32, #tpu.memory_space<smem>>
    %208 = vector.broadcast %207 : f32 to vector<32x128xf32>
    %209 = arith.mulf %208, %129 : vector<32x128xf32>
    %210 = arith.addf %206, %209 : vector<32x128xf32>
    %c9_110 = arith.constant 9 : index
    %c7_111 = arith.constant 7 : index
    %211 = memref.load %arg4[%c9_110, %c7_111] : memref<12x9xf32, #tpu.memory_space<smem>>
    %212 = vector.broadcast %211 : f32 to vector<32x128xf32>
    %213 = arith.mulf %212, %145 : vector<32x128xf32>
    %214 = arith.addf %210, %213 : vector<32x128xf32>
    %c9_112 = arith.constant 9 : index
    %c8_113 = arith.constant 8 : index
    %215 = memref.load %arg4[%c9_112, %c8_113] : memref<12x9xf32, #tpu.memory_space<smem>>
    %216 = vector.broadcast %215 : f32 to vector<32x128xf32>
    %217 = arith.addf %214, %216 : vector<32x128xf32>
    %cst_114 = arith.constant 0.000000e+00 : f32
    %218 = vector.broadcast %cst_114 : f32 to vector<32x128xf32>
    %219 = arith.cmpf ogt, %217, %218 : vector<32x128xf32>
    %220 = arith.extui %219 : vector<32x128xi1> to vector<32x128xi32>
    %221 = arith.sitofp %220 : vector<32x128xi32> to vector<32x128xf32>
    %c10 = arith.constant 10 : index
    %c0_115 = arith.constant 0 : index
    %222 = memref.load %arg4[%c10, %c0_115] : memref<12x9xf32, #tpu.memory_space<smem>>
    %223 = vector.broadcast %222 : f32 to vector<32x128xf32>
    %224 = arith.mulf %223, %33 : vector<32x128xf32>
    %c10_116 = arith.constant 10 : index
    %c1_117 = arith.constant 1 : index
    %225 = memref.load %arg4[%c10_116, %c1_117] : memref<12x9xf32, #tpu.memory_space<smem>>
    %226 = vector.broadcast %225 : f32 to vector<32x128xf32>
    %227 = arith.mulf %226, %49 : vector<32x128xf32>
    %228 = arith.addf %224, %227 : vector<32x128xf32>
    %c10_118 = arith.constant 10 : index
    %c2_119 = arith.constant 2 : index
    %229 = memref.load %arg4[%c10_118, %c2_119] : memref<12x9xf32, #tpu.memory_space<smem>>
    %230 = vector.broadcast %229 : f32 to vector<32x128xf32>
    %231 = arith.mulf %230, %65 : vector<32x128xf32>
    %232 = arith.addf %228, %231 : vector<32x128xf32>
    %c10_120 = arith.constant 10 : index
    %c3_121 = arith.constant 3 : index
    %233 = memref.load %arg4[%c10_120, %c3_121] : memref<12x9xf32, #tpu.memory_space<smem>>
    %234 = vector.broadcast %233 : f32 to vector<32x128xf32>
    %235 = arith.mulf %234, %81 : vector<32x128xf32>
    %236 = arith.addf %232, %235 : vector<32x128xf32>
    %c10_122 = arith.constant 10 : index
    %c4_123 = arith.constant 4 : index
    %237 = memref.load %arg4[%c10_122, %c4_123] : memref<12x9xf32, #tpu.memory_space<smem>>
    %238 = vector.broadcast %237 : f32 to vector<32x128xf32>
    %239 = arith.mulf %238, %97 : vector<32x128xf32>
    %240 = arith.addf %236, %239 : vector<32x128xf32>
    %c10_124 = arith.constant 10 : index
    %c5_125 = arith.constant 5 : index
    %241 = memref.load %arg4[%c10_124, %c5_125] : memref<12x9xf32, #tpu.memory_space<smem>>
    %242 = vector.broadcast %241 : f32 to vector<32x128xf32>
    %243 = arith.mulf %242, %113 : vector<32x128xf32>
    %244 = arith.addf %240, %243 : vector<32x128xf32>
    %c10_126 = arith.constant 10 : index
    %c6_127 = arith.constant 6 : index
    %245 = memref.load %arg4[%c10_126, %c6_127] : memref<12x9xf32, #tpu.memory_space<smem>>
    %246 = vector.broadcast %245 : f32 to vector<32x128xf32>
    %247 = arith.mulf %246, %129 : vector<32x128xf32>
    %248 = arith.addf %244, %247 : vector<32x128xf32>
    %c10_128 = arith.constant 10 : index
    %c7_129 = arith.constant 7 : index
    %249 = memref.load %arg4[%c10_128, %c7_129] : memref<12x9xf32, #tpu.memory_space<smem>>
    %250 = vector.broadcast %249 : f32 to vector<32x128xf32>
    %251 = arith.mulf %250, %145 : vector<32x128xf32>
    %252 = arith.addf %248, %251 : vector<32x128xf32>
    %c10_130 = arith.constant 10 : index
    %c8_131 = arith.constant 8 : index
    %253 = memref.load %arg4[%c10_130, %c8_131] : memref<12x9xf32, #tpu.memory_space<smem>>
    %254 = vector.broadcast %253 : f32 to vector<32x128xf32>
    %255 = arith.addf %252, %254 : vector<32x128xf32>
    %cst_132 = arith.constant 0.000000e+00 : f32
    %256 = vector.broadcast %cst_132 : f32 to vector<32x128xf32>
    %257 = arith.cmpf ogt, %255, %256 : vector<32x128xf32>
    %258 = arith.extui %257 : vector<32x128xi1> to vector<32x128xi32>
    %259 = arith.sitofp %258 : vector<32x128xi32> to vector<32x128xf32>
    %c11 = arith.constant 11 : index
    %c0_133 = arith.constant 0 : index
    %260 = memref.load %arg4[%c11, %c0_133] : memref<12x9xf32, #tpu.memory_space<smem>>
    %261 = vector.broadcast %260 : f32 to vector<32x128xf32>
    %262 = arith.mulf %261, %33 : vector<32x128xf32>
    %c11_134 = arith.constant 11 : index
    %c1_135 = arith.constant 1 : index
    %263 = memref.load %arg4[%c11_134, %c1_135] : memref<12x9xf32, #tpu.memory_space<smem>>
    %264 = vector.broadcast %263 : f32 to vector<32x128xf32>
    %265 = arith.mulf %264, %49 : vector<32x128xf32>
    %266 = arith.addf %262, %265 : vector<32x128xf32>
    %c11_136 = arith.constant 11 : index
    %c2_137 = arith.constant 2 : index
    %267 = memref.load %arg4[%c11_136, %c2_137] : memref<12x9xf32, #tpu.memory_space<smem>>
    %268 = vector.broadcast %267 : f32 to vector<32x128xf32>
    %269 = arith.mulf %268, %65 : vector<32x128xf32>
    %270 = arith.addf %266, %269 : vector<32x128xf32>
    %c11_138 = arith.constant 11 : index
    %c3_139 = arith.constant 3 : index
    %271 = memref.load %arg4[%c11_138, %c3_139] : memref<12x9xf32, #tpu.memory_space<smem>>
    %272 = vector.broadcast %271 : f32 to vector<32x128xf32>
    %273 = arith.mulf %272, %81 : vector<32x128xf32>
    %274 = arith.addf %270, %273 : vector<32x128xf32>
    %c11_140 = arith.constant 11 : index
    %c4_141 = arith.constant 4 : index
    %275 = memref.load %arg4[%c11_140, %c4_141] : memref<12x9xf32, #tpu.memory_space<smem>>
    %276 = vector.broadcast %275 : f32 to vector<32x128xf32>
    %277 = arith.mulf %276, %97 : vector<32x128xf32>
    %278 = arith.addf %274, %277 : vector<32x128xf32>
    %c11_142 = arith.constant 11 : index
    %c5_143 = arith.constant 5 : index
    %279 = memref.load %arg4[%c11_142, %c5_143] : memref<12x9xf32, #tpu.memory_space<smem>>
    %280 = vector.broadcast %279 : f32 to vector<32x128xf32>
    %281 = arith.mulf %280, %113 : vector<32x128xf32>
    %282 = arith.addf %278, %281 : vector<32x128xf32>
    %c11_144 = arith.constant 11 : index
    %c6_145 = arith.constant 6 : index
    %283 = memref.load %arg4[%c11_144, %c6_145] : memref<12x9xf32, #tpu.memory_space<smem>>
    %284 = vector.broadcast %283 : f32 to vector<32x128xf32>
    %285 = arith.mulf %284, %129 : vector<32x128xf32>
    %286 = arith.addf %282, %285 : vector<32x128xf32>
    %c11_146 = arith.constant 11 : index
    %c7_147 = arith.constant 7 : index
    %287 = memref.load %arg4[%c11_146, %c7_147] : memref<12x9xf32, #tpu.memory_space<smem>>
    %288 = vector.broadcast %287 : f32 to vector<32x128xf32>
    %289 = arith.mulf %288, %145 : vector<32x128xf32>
    %290 = arith.addf %286, %289 : vector<32x128xf32>
    %c11_148 = arith.constant 11 : index
    %c8_149 = arith.constant 8 : index
    %291 = memref.load %arg4[%c11_148, %c8_149] : memref<12x9xf32, #tpu.memory_space<smem>>
    %292 = vector.broadcast %291 : f32 to vector<32x128xf32>
    %293 = arith.addf %290, %292 : vector<32x128xf32>
    %cst_150 = arith.constant 0.000000e+00 : f32
    %294 = vector.broadcast %cst_150 : f32 to vector<32x128xf32>
    %295 = arith.cmpf ogt, %293, %294 : vector<32x128xf32>
    %296 = arith.extui %295 : vector<32x128xi1> to vector<32x128xi32>
    %297 = arith.sitofp %296 : vector<32x128xi32> to vector<32x128xf32>
    %c2_i32 = arith.constant 2 : i32
    %298 = arith.muli %arg1, %c2_i32 : i32
    %299 = arith.addi %298, %arg2 : i32
    %c32_i32 = arith.constant 32 : i32
    %300 = arith.muli %299, %c32_i32 : i32
    %301 = tpu.iota {dimensions = array<i32: 0>} : vector<32x128xi32>
    %302 = vector.broadcast %300 : i32 to vector<32x128xi32>
    %303 = arith.addi %302, %301 : vector<32x128xi32>
    %304 = tpu.iota {dimensions = array<i32: 1>} : vector<32x128xi32>
    %c128_i32 = arith.constant 128 : i32
    %305 = vector.broadcast %c128_i32 : i32 to vector<32x128xi32>
    %306 = arith.muli %303, %305 : vector<32x128xi32>
    %307 = arith.addi %306, %304 : vector<32x128xi32>
    %c15360_i32 = arith.constant 15360 : i32
    %308 = vector.broadcast %c15360_i32 : i32 to vector<32x128xi32>
    %309 = arith.cmpi slt, %307, %308 : vector<32x128xi32>
    %310 = arith.extui %309 : vector<32x128xi1> to vector<32x128xi32>
    %311 = arith.sitofp %310 : vector<32x128xi32> to vector<32x128xf32>
    %312 = arith.mulf %33, %311 : vector<32x128xf32>
    %313 = arith.mulf %49, %311 : vector<32x128xf32>
    %314 = arith.mulf %65, %311 : vector<32x128xf32>
    %315 = arith.mulf %81, %311 : vector<32x128xf32>
    %316 = arith.mulf %97, %311 : vector<32x128xf32>
    %317 = arith.mulf %113, %311 : vector<32x128xf32>
    %318 = arith.mulf %129, %311 : vector<32x128xf32>
    %319 = arith.mulf %145, %311 : vector<32x128xf32>
    %320 = arith.mulf %183, %311 : vector<32x128xf32>
    %321 = arith.mulf %221, %311 : vector<32x128xf32>
    %322 = arith.mulf %259, %311 : vector<32x128xf32>
    %323 = arith.mulf %297, %311 : vector<32x128xf32>
    %c0_151 = arith.constant 0 : index
    %c0_152 = arith.constant 0 : index
    %c0_153 = arith.constant 0 : index
    %c0_154 = arith.constant 0 : index
    %324 = vector.load %arg5[%c0_151, %c0_152, %c0_153, %c0_154] : memref<1x1x8x128xf32, #tpu.memory_space<vmem>>, vector<1x1x8x128xf32>
    %325 = vector.shape_cast %324 : vector<1x1x8x128xf32> to vector<8x128xf32>
    %cst_155 = arith.constant dense<0.000000e+00> : vector<128xf32>
    %326 = vector.multi_reduction <add>, %312, %cst_155 [0] : vector<32x128xf32> to vector<128xf32>
    %327 = vector.shape_cast %326 : vector<128xf32> to vector<1x128xf32>
    %cst_156 = arith.constant dense<0.000000e+00> : vector<128xf32>
    %328 = vector.multi_reduction <add>, %313, %cst_156 [0] : vector<32x128xf32> to vector<128xf32>
    %329 = vector.shape_cast %328 : vector<128xf32> to vector<1x128xf32>
    %cst_157 = arith.constant dense<0.000000e+00> : vector<128xf32>
    %330 = vector.multi_reduction <add>, %314, %cst_157 [0] : vector<32x128xf32> to vector<128xf32>
    %331 = vector.shape_cast %330 : vector<128xf32> to vector<1x128xf32>
    %cst_158 = arith.constant dense<0.000000e+00> : vector<128xf32>
    %332 = vector.multi_reduction <add>, %315, %cst_158 [0] : vector<32x128xf32> to vector<128xf32>
    %333 = vector.shape_cast %332 : vector<128xf32> to vector<1x128xf32>
    %cst_159 = arith.constant dense<0.000000e+00> : vector<128xf32>
    %334 = vector.multi_reduction <add>, %316, %cst_159 [0] : vector<32x128xf32> to vector<128xf32>
    %335 = vector.shape_cast %334 : vector<128xf32> to vector<1x128xf32>
    %cst_160 = arith.constant dense<0.000000e+00> : vector<128xf32>
    %336 = vector.multi_reduction <add>, %317, %cst_160 [0] : vector<32x128xf32> to vector<128xf32>
    %337 = vector.shape_cast %336 : vector<128xf32> to vector<1x128xf32>
    %cst_161 = arith.constant dense<0.000000e+00> : vector<128xf32>
    %338 = vector.multi_reduction <add>, %318, %cst_161 [0] : vector<32x128xf32> to vector<128xf32>
    %339 = vector.shape_cast %338 : vector<128xf32> to vector<1x128xf32>
    %cst_162 = arith.constant dense<0.000000e+00> : vector<128xf32>
    %340 = vector.multi_reduction <add>, %319, %cst_162 [0] : vector<32x128xf32> to vector<128xf32>
    %341 = vector.shape_cast %340 : vector<128xf32> to vector<1x128xf32>
    %342 = tpu.concatenate %327, %329, %331, %333, %335, %337, %339, %341 in 0 : vector<1x128xf32>, vector<1x128xf32>, vector<1x128xf32>, vector<1x128xf32>, vector<1x128xf32>, vector<1x128xf32>, vector<1x128xf32>, vector<1x128xf32> -> vector<8x128xf32>
    %343 = arith.addf %325, %342 : vector<8x128xf32>
    %c0_163 = arith.constant 0 : index
    %c0_164 = arith.constant 0 : index
    %c0_165 = arith.constant 0 : index
    %c0_166 = arith.constant 0 : index
    %344 = vector.load %arg5[%c0_163, %c0_164, %c0_165, %c0_166] : memref<1x1x8x128xf32, #tpu.memory_space<vmem>>, vector<1x1x8x128xf32>
    %345 = vector.shape_cast %344 : vector<1x1x8x128xf32> to vector<8x128xf32>
    %346 = vector.shape_cast %343 : vector<8x128xf32> to vector<1x1x8x128xf32>
    tpu.vector_store %arg5[%c0_163, %c0_164, %c0_165, %c0_166], %346 {strides = array<i32>} : memref<1x1x8x128xf32, #tpu.memory_space<vmem>>, vector<1x1x8x128xf32>,
    %c0_167 = arith.constant 0 : index
    %c0_168 = arith.constant 0 : index
    %c0_169 = arith.constant 0 : index
    %c0_170 = arith.constant 0 : index
    %347 = vector.load %arg6[%c0_167, %c0_168, %c0_169, %c0_170] : memref<1x1x3x128xf32, #tpu.memory_space<vmem>>, vector<1x1x3x128xf32>
    %348 = vector.shape_cast %347 : vector<1x1x3x128xf32> to vector<3x128xf32>
    %cst_171 = arith.constant dense<0.000000e+00> : vector<128xf32>
    %349 = vector.multi_reduction <add>, %7, %cst_171 [0] : vector<32x128xf32> to vector<128xf32>
    %350 = vector.shape_cast %349 : vector<128xf32> to vector<1x128xf32>
    %cst_172 = arith.constant dense<0.000000e+00> : vector<128xf32>
    %351 = vector.multi_reduction <add>, %12, %cst_172 [0] : vector<32x128xf32> to vector<128xf32>
    %352 = vector.shape_cast %351 : vector<128xf32> to vector<1x128xf32>
    %cst_173 = arith.constant dense<0.000000e+00> : vector<128xf32>
    %353 = vector.multi_reduction <add>, %17, %cst_173 [0] : vector<32x128xf32> to vector<128xf32>
    %354 = vector.shape_cast %353 : vector<128xf32> to vector<1x128xf32>
    %355 = tpu.concatenate %350, %352, %354 in 0 : vector<1x128xf32>, vector<1x128xf32>, vector<1x128xf32> -> vector<3x128xf32>
    %356 = arith.addf %348, %355 : vector<3x128xf32>
    %c0_174 = arith.constant 0 : index
    %c0_175 = arith.constant 0 : index
    %c0_176 = arith.constant 0 : index
    %c0_177 = arith.constant 0 : index
    %357 = vector.load %arg6[%c0_174, %c0_175, %c0_176, %c0_177] : memref<1x1x3x128xf32, #tpu.memory_space<vmem>>, vector<1x1x3x128xf32>
    %358 = vector.shape_cast %357 : vector<1x1x3x128xf32> to vector<3x128xf32>
    %359 = vector.shape_cast %356 : vector<3x128xf32> to vector<1x1x3x128xf32>
    tpu.vector_store %arg6[%c0_174, %c0_175, %c0_176, %c0_177], %359 {strides = array<i32>} : memref<1x1x3x128xf32, #tpu.memory_space<vmem>>, vector<1x1x3x128xf32>,
    %c0_178 = arith.constant 0 : index
    %c0_179 = arith.constant 0 : index
    %c0_180 = arith.constant 0 : index
    %c0_181 = arith.constant 0 : index
    %360 = vector.load %arg7[%c0_178, %c0_179, %c0_180, %c0_181] : memref<1x1x4x128xf32, #tpu.memory_space<vmem>>, vector<1x1x4x128xf32>
    %361 = vector.shape_cast %360 : vector<1x1x4x128xf32> to vector<4x128xf32>
    %cst_182 = arith.constant dense<0.000000e+00> : vector<128xf32>
    %362 = vector.multi_reduction <add>, %320, %cst_182 [0] : vector<32x128xf32> to vector<128xf32>
    %363 = vector.shape_cast %362 : vector<128xf32> to vector<1x128xf32>
    %cst_183 = arith.constant dense<0.000000e+00> : vector<128xf32>
    %364 = vector.multi_reduction <add>, %321, %cst_183 [0] : vector<32x128xf32> to vector<128xf32>
    %365 = vector.shape_cast %364 : vector<128xf32> to vector<1x128xf32>
    %cst_184 = arith.constant dense<0.000000e+00> : vector<128xf32>
    %366 = vector.multi_reduction <add>, %322, %cst_184 [0] : vector<32x128xf32> to vector<128xf32>
    %367 = vector.shape_cast %366 : vector<128xf32> to vector<1x128xf32>
    %cst_185 = arith.constant dense<0.000000e+00> : vector<128xf32>
    %368 = vector.multi_reduction <add>, %323, %cst_185 [0] : vector<32x128xf32> to vector<128xf32>
    %369 = vector.shape_cast %368 : vector<128xf32> to vector<1x128xf32>
    %370 = tpu.concatenate %363, %365, %367, %369 in 0 : vector<1x128xf32>, vector<1x128xf32>, vector<1x128xf32>, vector<1x128xf32> -> vector<4x128xf32>
    %371 = arith.addf %361, %370 : vector<4x128xf32>
    %c0_186 = arith.constant 0 : index
    %c0_187 = arith.constant 0 : index
    %c0_188 = arith.constant 0 : index
    %c0_189 = arith.constant 0 : index
    %372 = vector.load %arg7[%c0_186, %c0_187, %c0_188, %c0_189] : memref<1x1x4x128xf32, #tpu.memory_space<vmem>>, vector<1x1x4x128xf32>
    %373 = vector.shape_cast %372 : vector<1x1x4x128xf32> to vector<4x128xf32>
    %374 = vector.shape_cast %371 : vector<4x128xf32> to vector<1x1x4x128xf32>
    tpu.vector_store %arg7[%c0_186, %c0_187, %c0_188, %c0_189], %374 {strides = array<i32>} : memref<1x1x4x128xf32, #tpu.memory_space<vmem>>, vector<1x1x4x128xf32>,
    %375 = arith.mulf %183, %7 : vector<32x128xf32>
    %376 = arith.mulf %183, %12 : vector<32x128xf32>
    %377 = arith.mulf %183, %17 : vector<32x128xf32>
    %378 = arith.mulf %221, %7 : vector<32x128xf32>
    %379 = arith.mulf %221, %12 : vector<32x128xf32>
    %380 = arith.mulf %221, %17 : vector<32x128xf32>
    %381 = arith.mulf %259, %7 : vector<32x128xf32>
    %382 = arith.mulf %259, %12 : vector<32x128xf32>
    %383 = arith.mulf %259, %17 : vector<32x128xf32>
    %384 = arith.mulf %297, %7 : vector<32x128xf32>
    %385 = arith.mulf %297, %12 : vector<32x128xf32>
    %386 = arith.mulf %297, %17 : vector<32x128xf32>
    %c0_190 = arith.constant 0 : index
    %c0_191 = arith.constant 0 : index
    %c0_192 = arith.constant 0 : index
    %c0_193 = arith.constant 0 : index
    %387 = vector.load %arg8[%c0_190, %c0_191, %c0_192, %c0_193] : memref<1x1x12x128xf32, #tpu.memory_space<vmem>>, vector<1x1x12x128xf32>
    %388 = vector.shape_cast %387 : vector<1x1x12x128xf32> to vector<12x128xf32>
    %cst_194 = arith.constant dense<0.000000e+00> : vector<128xf32>
    %389 = vector.multi_reduction <add>, %375, %cst_194 [0] : vector<32x128xf32> to vector<128xf32>
    %390 = vector.shape_cast %389 : vector<128xf32> to vector<1x128xf32>
    %cst_195 = arith.constant dense<0.000000e+00> : vector<128xf32>
    %391 = vector.multi_reduction <add>, %376, %cst_195 [0] : vector<32x128xf32> to vector<128xf32>
    %392 = vector.shape_cast %391 : vector<128xf32> to vector<1x128xf32>
    %cst_196 = arith.constant dense<0.000000e+00> : vector<128xf32>
    %393 = vector.multi_reduction <add>, %377, %cst_196 [0] : vector<32x128xf32> to vector<128xf32>
    %394 = vector.shape_cast %393 : vector<128xf32> to vector<1x128xf32>
    %cst_197 = arith.constant dense<0.000000e+00> : vector<128xf32>
    %395 = vector.multi_reduction <add>, %378, %cst_197 [0] : vector<32x128xf32> to vector<128xf32>
    %396 = vector.shape_cast %395 : vector<128xf32> to vector<1x128xf32>
    %cst_198 = arith.constant dense<0.000000e+00> : vector<128xf32>
    %397 = vector.multi_reduction <add>, %379, %cst_198 [0] : vector<32x128xf32> to vector<128xf32>
    %398 = vector.shape_cast %397 : vector<128xf32> to vector<1x128xf32>
    %cst_199 = arith.constant dense<0.000000e+00> : vector<128xf32>
    %399 = vector.multi_reduction <add>, %380, %cst_199 [0] : vector<32x128xf32> to vector<128xf32>
    %400 = vector.shape_cast %399 : vector<128xf32> to vector<1x128xf32>
    %cst_200 = arith.constant dense<0.000000e+00> : vector<128xf32>
    %401 = vector.multi_reduction <add>, %381, %cst_200 [0] : vector<32x128xf32> to vector<128xf32>
    %402 = vector.shape_cast %401 : vector<128xf32> to vector<1x128xf32>
    %cst_201 = arith.constant dense<0.000000e+00> : vector<128xf32>
    %403 = vector.multi_reduction <add>, %382, %cst_201 [0] : vector<32x128xf32> to vector<128xf32>
    %404 = vector.shape_cast %403 : vector<128xf32> to vector<1x128xf32>
    %cst_202 = arith.constant dense<0.000000e+00> : vector<128xf32>
    %405 = vector.multi_reduction <add>, %383, %cst_202 [0] : vector<32x128xf32> to vector<128xf32>
    %406 = vector.shape_cast %405 : vector<128xf32> to vector<1x128xf32>
    %cst_203 = arith.constant dense<0.000000e+00> : vector<128xf32>
    %407 = vector.multi_reduction <add>, %384, %cst_203 [0] : vector<32x128xf32> to vector<128xf32>
    %408 = vector.shape_cast %407 : vector<128xf32> to vector<1x128xf32>
    %cst_204 = arith.constant dense<0.000000e+00> : vector<128xf32>
    %409 = vector.multi_reduction <add>, %385, %cst_204 [0] : vector<32x128xf32> to vector<128xf32>
    %410 = vector.shape_cast %409 : vector<128xf32> to vector<1x128xf32>
    %cst_205 = arith.constant dense<0.000000e+00> : vector<128xf32>
    %411 = vector.multi_reduction <add>, %386, %cst_205 [0] : vector<32x128xf32> to vector<128xf32>
    %412 = vector.shape_cast %411 : vector<128xf32> to vector<1x128xf32>
    %413 = tpu.concatenate %390, %392, %394, %396, %398, %400, %402, %404, %406, %408, %410, %412 in 0 : vector<1x128xf32>, vector<1x128xf32>, vector<1x128xf32>, vector<1x128xf32>, vector<1x128xf32>, vector<1x128xf32>, vector<1x128xf32>, vector<1x128xf32>, vector<1x128xf32>, vector<1x128xf32>, vector<1x128xf32>, vector<1x128xf32> -> vector<12x128xf32>
    %414 = arith.addf %388, %413 : vector<12x128xf32>
    %c0_206 = arith.constant 0 : index
    %c0_207 = arith.constant 0 : index
    %c0_208 = arith.constant 0 : index
    %c0_209 = arith.constant 0 : index
    %415 = vector.load %arg8[%c0_206, %c0_207, %c0_208, %c0_209] : memref<1x1x12x128xf32, #tpu.memory_space<vmem>>, vector<1x1x12x128xf32>
    %416 = vector.shape_cast %415 : vector<1x1x12x128xf32> to vector<12x128xf32>
    %417 = vector.shape_cast %414 : vector<12x128xf32> to vector<1x1x12x128xf32>
    tpu.vector_store %arg8[%c0_206, %c0_207, %c0_208, %c0_209], %417 {strides = array<i32>} : memref<1x1x12x128xf32, #tpu.memory_space<vmem>>, vector<1x1x12x128xf32>,
    return
  }
  func.func @transform_0(%arg0: i32, %arg1: i32, %arg2: i32) -> (i32, i32, i32, i32) {
    %c2_i32 = arith.constant 2 : i32
    %0 = arith.muli %arg1, %c2_i32 : i32
    %1 = arith.addi %0, %arg2 : i32
    %c0_i32 = arith.constant 0 : i32
    %c0_i32_0 = arith.constant 0 : i32
    %c0_i32_1 = arith.constant 0 : i32
    return %arg0, %c0_i32, %1, %c0_i32_0 : i32, i32, i32, i32
  }
  func.func @transform_1(%arg0: i32, %arg1: i32, %arg2: i32) -> (i32, i32) {
    %c0_i32 = arith.constant 0 : i32
    %c0_i32_0 = arith.constant 0 : i32
    %c0_i32_1 = arith.constant 0 : i32
    return %c0_i32, %c0_i32_0 : i32, i32
  }
  func.func @transform_2(%arg0: i32, %arg1: i32, %arg2: i32) -> (i32, i32, i32, i32) {
    %c0_i32 = arith.constant 0 : i32
    %c0_i32_0 = arith.constant 0 : i32
    %c0_i32_1 = arith.constant 0 : i32
    return %arg0, %arg1, %c0_i32, %c0_i32_0 : i32, i32, i32, i32
  }
  func.func @transform_3(%arg0: i32, %arg1: i32, %arg2: i32) -> (i32, i32, i32, i32) {
    %c0_i32 = arith.constant 0 : i32
    %c0_i32_0 = arith.constant 0 : i32
    %c0_i32_1 = arith.constant 0 : i32
    return %arg0, %arg1, %c0_i32, %c0_i32_0 : i32, i32, i32, i32
  }
  func.func @transform_4(%arg0: i32, %arg1: i32, %arg2: i32) -> (i32, i32, i32, i32) {
    %c0_i32 = arith.constant 0 : i32
    %c0_i32_0 = arith.constant 0 : i32
    %c0_i32_1 = arith.constant 0 : i32
    return %arg0, %arg1, %c0_i32, %c0_i32_0 : i32, i32, i32, i32
  }
  func.func @transform_5(%arg0: i32, %arg1: i32, %arg2: i32) -> (i32, i32, i32, i32) {
    %c0_i32 = arith.constant 0 : i32
    %c0_i32_0 = arith.constant 0 : i32
    %c0_i32_1 = arith.constant 0 : i32
    return %arg0, %arg1, %c0_i32, %c0_i32_0 : i32, i32, i32, i32
  }
}

module attributes {stable_mosaic.version = 11 : i64} {
  func.func @_apply_kernel(%arg0: i32, %arg1: i32, %arg2: memref<1x3x32x128xi8, #tpu.memory_space<vmem>>, %arg3: memref<12x9xf32, #tpu.memory_space<smem>>, %arg4: memref<2x16xf32, #tpu.memory_space<smem>>, %arg5: memref<1x32x128xf32, #tpu.memory_space<vmem>>, %arg6: memref<1x32x128xi8, #tpu.memory_space<vmem>>) attributes {dimension_semantics = [#tpu.dimension_semantics<parallel>, #tpu.dimension_semantics<parallel>], iteration_bounds = array<i64: 2, 4>, scalar_prefetch = 0 : i64, scratch_operands = 0 : i64, tpu.core_type = #tpu.core_type<tc>, window_params = [{transform_indices = @transform_0, window_bounds = array<i64: 1, 3, 32, 128>}, {transform_indices = @transform_1, window_bounds = array<i64: 12, 9>}, {transform_indices = @transform_2, window_bounds = array<i64: 2, 16>}, {transform_indices = @transform_3, window_bounds = array<i64: 1, 32, 128>}, {transform_indices = @transform_4, window_bounds = array<i64: 1, 32, 128>}]} {
    %c0 = arith.constant 0 : index
    %c0_0 = arith.constant 0 : index
    %c0_1 = arith.constant 0 : index
    %c0_2 = arith.constant 0 : index
    %0 = vector.load %arg2[%c0, %c0_0, %c0_1, %c0_2] : memref<1x3x32x128xi8, #tpu.memory_space<vmem>>, vector<1x1x32x128xi8>
    %1 = vector.shape_cast %0 : vector<1x1x32x128xi8> to vector<32x128xi8>
    %2 = arith.uitofp %1 : vector<32x128xi8> to vector<32x128xf32>
    %cst = arith.constant 0.00392156886 : f32
    %3 = vector.broadcast %cst : f32 to vector<32x128xf32>
    %4 = arith.mulf %2, %3 : vector<32x128xf32>
    %c0_3 = arith.constant 0 : index
    %c1 = arith.constant 1 : index
    %c0_4 = arith.constant 0 : index
    %c0_5 = arith.constant 0 : index
    %5 = vector.load %arg2[%c0_3, %c1, %c0_4, %c0_5] : memref<1x3x32x128xi8, #tpu.memory_space<vmem>>, vector<1x1x32x128xi8>
    %6 = vector.shape_cast %5 : vector<1x1x32x128xi8> to vector<32x128xi8>
    %7 = arith.uitofp %6 : vector<32x128xi8> to vector<32x128xf32>
    %cst_6 = arith.constant 0.00392156886 : f32
    %8 = vector.broadcast %cst_6 : f32 to vector<32x128xf32>
    %9 = arith.mulf %7, %8 : vector<32x128xf32>
    %c0_7 = arith.constant 0 : index
    %c2 = arith.constant 2 : index
    %c0_8 = arith.constant 0 : index
    %c0_9 = arith.constant 0 : index
    %10 = vector.load %arg2[%c0_7, %c2, %c0_8, %c0_9] : memref<1x3x32x128xi8, #tpu.memory_space<vmem>>, vector<1x1x32x128xi8>
    %11 = vector.shape_cast %10 : vector<1x1x32x128xi8> to vector<32x128xi8>
    %12 = arith.uitofp %11 : vector<32x128xi8> to vector<32x128xf32>
    %cst_10 = arith.constant 0.00392156886 : f32
    %13 = vector.broadcast %cst_10 : f32 to vector<32x128xf32>
    %14 = arith.mulf %12, %13 : vector<32x128xf32>
    %c0_11 = arith.constant 0 : index
    %c0_12 = arith.constant 0 : index
    %15 = memref.load %arg3[%c0_11, %c0_12] : memref<12x9xf32, #tpu.memory_space<smem>>
    %16 = vector.broadcast %15 : f32 to vector<32x128xf32>
    %17 = arith.mulf %16, %4 : vector<32x128xf32>
    %c0_13 = arith.constant 0 : index
    %c1_14 = arith.constant 1 : index
    %18 = memref.load %arg3[%c0_13, %c1_14] : memref<12x9xf32, #tpu.memory_space<smem>>
    %19 = vector.broadcast %18 : f32 to vector<32x128xf32>
    %20 = arith.mulf %19, %9 : vector<32x128xf32>
    %21 = arith.addf %17, %20 : vector<32x128xf32>
    %c0_15 = arith.constant 0 : index
    %c2_16 = arith.constant 2 : index
    %22 = memref.load %arg3[%c0_15, %c2_16] : memref<12x9xf32, #tpu.memory_space<smem>>
    %23 = vector.broadcast %22 : f32 to vector<32x128xf32>
    %24 = arith.mulf %23, %14 : vector<32x128xf32>
    %25 = arith.addf %21, %24 : vector<32x128xf32>
    %c0_17 = arith.constant 0 : index
    %c3 = arith.constant 3 : index
    %26 = memref.load %arg3[%c0_17, %c3] : memref<12x9xf32, #tpu.memory_space<smem>>
    %27 = vector.broadcast %26 : f32 to vector<32x128xf32>
    %28 = arith.addf %25, %27 : vector<32x128xf32>
    %cst_18 = arith.constant 0.000000e+00 : f32
    %29 = vector.broadcast %cst_18 : f32 to vector<32x128xf32>
    %30 = arith.maximumf %28, %29 : vector<32x128xf32>
    %c1_19 = arith.constant 1 : index
    %c0_20 = arith.constant 0 : index
    %31 = memref.load %arg3[%c1_19, %c0_20] : memref<12x9xf32, #tpu.memory_space<smem>>
    %32 = vector.broadcast %31 : f32 to vector<32x128xf32>
    %33 = arith.mulf %32, %4 : vector<32x128xf32>
    %c1_21 = arith.constant 1 : index
    %c1_22 = arith.constant 1 : index
    %34 = memref.load %arg3[%c1_21, %c1_22] : memref<12x9xf32, #tpu.memory_space<smem>>
    %35 = vector.broadcast %34 : f32 to vector<32x128xf32>
    %36 = arith.mulf %35, %9 : vector<32x128xf32>
    %37 = arith.addf %33, %36 : vector<32x128xf32>
    %c1_23 = arith.constant 1 : index
    %c2_24 = arith.constant 2 : index
    %38 = memref.load %arg3[%c1_23, %c2_24] : memref<12x9xf32, #tpu.memory_space<smem>>
    %39 = vector.broadcast %38 : f32 to vector<32x128xf32>
    %40 = arith.mulf %39, %14 : vector<32x128xf32>
    %41 = arith.addf %37, %40 : vector<32x128xf32>
    %c1_25 = arith.constant 1 : index
    %c3_26 = arith.constant 3 : index
    %42 = memref.load %arg3[%c1_25, %c3_26] : memref<12x9xf32, #tpu.memory_space<smem>>
    %43 = vector.broadcast %42 : f32 to vector<32x128xf32>
    %44 = arith.addf %41, %43 : vector<32x128xf32>
    %cst_27 = arith.constant 0.000000e+00 : f32
    %45 = vector.broadcast %cst_27 : f32 to vector<32x128xf32>
    %46 = arith.maximumf %44, %45 : vector<32x128xf32>
    %c2_28 = arith.constant 2 : index
    %c0_29 = arith.constant 0 : index
    %47 = memref.load %arg3[%c2_28, %c0_29] : memref<12x9xf32, #tpu.memory_space<smem>>
    %48 = vector.broadcast %47 : f32 to vector<32x128xf32>
    %49 = arith.mulf %48, %4 : vector<32x128xf32>
    %c2_30 = arith.constant 2 : index
    %c1_31 = arith.constant 1 : index
    %50 = memref.load %arg3[%c2_30, %c1_31] : memref<12x9xf32, #tpu.memory_space<smem>>
    %51 = vector.broadcast %50 : f32 to vector<32x128xf32>
    %52 = arith.mulf %51, %9 : vector<32x128xf32>
    %53 = arith.addf %49, %52 : vector<32x128xf32>
    %c2_32 = arith.constant 2 : index
    %c2_33 = arith.constant 2 : index
    %54 = memref.load %arg3[%c2_32, %c2_33] : memref<12x9xf32, #tpu.memory_space<smem>>
    %55 = vector.broadcast %54 : f32 to vector<32x128xf32>
    %56 = arith.mulf %55, %14 : vector<32x128xf32>
    %57 = arith.addf %53, %56 : vector<32x128xf32>
    %c2_34 = arith.constant 2 : index
    %c3_35 = arith.constant 3 : index
    %58 = memref.load %arg3[%c2_34, %c3_35] : memref<12x9xf32, #tpu.memory_space<smem>>
    %59 = vector.broadcast %58 : f32 to vector<32x128xf32>
    %60 = arith.addf %57, %59 : vector<32x128xf32>
    %cst_36 = arith.constant 0.000000e+00 : f32
    %61 = vector.broadcast %cst_36 : f32 to vector<32x128xf32>
    %62 = arith.maximumf %60, %61 : vector<32x128xf32>
    %c3_37 = arith.constant 3 : index
    %c0_38 = arith.constant 0 : index
    %63 = memref.load %arg3[%c3_37, %c0_38] : memref<12x9xf32, #tpu.memory_space<smem>>
    %64 = vector.broadcast %63 : f32 to vector<32x128xf32>
    %65 = arith.mulf %64, %4 : vector<32x128xf32>
    %c3_39 = arith.constant 3 : index
    %c1_40 = arith.constant 1 : index
    %66 = memref.load %arg3[%c3_39, %c1_40] : memref<12x9xf32, #tpu.memory_space<smem>>
    %67 = vector.broadcast %66 : f32 to vector<32x128xf32>
    %68 = arith.mulf %67, %9 : vector<32x128xf32>
    %69 = arith.addf %65, %68 : vector<32x128xf32>
    %c3_41 = arith.constant 3 : index
    %c2_42 = arith.constant 2 : index
    %70 = memref.load %arg3[%c3_41, %c2_42] : memref<12x9xf32, #tpu.memory_space<smem>>
    %71 = vector.broadcast %70 : f32 to vector<32x128xf32>
    %72 = arith.mulf %71, %14 : vector<32x128xf32>
    %73 = arith.addf %69, %72 : vector<32x128xf32>
    %c3_43 = arith.constant 3 : index
    %c3_44 = arith.constant 3 : index
    %74 = memref.load %arg3[%c3_43, %c3_44] : memref<12x9xf32, #tpu.memory_space<smem>>
    %75 = vector.broadcast %74 : f32 to vector<32x128xf32>
    %76 = arith.addf %73, %75 : vector<32x128xf32>
    %cst_45 = arith.constant 0.000000e+00 : f32
    %77 = vector.broadcast %cst_45 : f32 to vector<32x128xf32>
    %78 = arith.maximumf %76, %77 : vector<32x128xf32>
    %c4 = arith.constant 4 : index
    %c0_46 = arith.constant 0 : index
    %79 = memref.load %arg3[%c4, %c0_46] : memref<12x9xf32, #tpu.memory_space<smem>>
    %80 = vector.broadcast %79 : f32 to vector<32x128xf32>
    %81 = arith.mulf %80, %4 : vector<32x128xf32>
    %c4_47 = arith.constant 4 : index
    %c1_48 = arith.constant 1 : index
    %82 = memref.load %arg3[%c4_47, %c1_48] : memref<12x9xf32, #tpu.memory_space<smem>>
    %83 = vector.broadcast %82 : f32 to vector<32x128xf32>
    %84 = arith.mulf %83, %9 : vector<32x128xf32>
    %85 = arith.addf %81, %84 : vector<32x128xf32>
    %c4_49 = arith.constant 4 : index
    %c2_50 = arith.constant 2 : index
    %86 = memref.load %arg3[%c4_49, %c2_50] : memref<12x9xf32, #tpu.memory_space<smem>>
    %87 = vector.broadcast %86 : f32 to vector<32x128xf32>
    %88 = arith.mulf %87, %14 : vector<32x128xf32>
    %89 = arith.addf %85, %88 : vector<32x128xf32>
    %c4_51 = arith.constant 4 : index
    %c3_52 = arith.constant 3 : index
    %90 = memref.load %arg3[%c4_51, %c3_52] : memref<12x9xf32, #tpu.memory_space<smem>>
    %91 = vector.broadcast %90 : f32 to vector<32x128xf32>
    %92 = arith.addf %89, %91 : vector<32x128xf32>
    %cst_53 = arith.constant 0.000000e+00 : f32
    %93 = vector.broadcast %cst_53 : f32 to vector<32x128xf32>
    %94 = arith.maximumf %92, %93 : vector<32x128xf32>
    %c5 = arith.constant 5 : index
    %c0_54 = arith.constant 0 : index
    %95 = memref.load %arg3[%c5, %c0_54] : memref<12x9xf32, #tpu.memory_space<smem>>
    %96 = vector.broadcast %95 : f32 to vector<32x128xf32>
    %97 = arith.mulf %96, %4 : vector<32x128xf32>
    %c5_55 = arith.constant 5 : index
    %c1_56 = arith.constant 1 : index
    %98 = memref.load %arg3[%c5_55, %c1_56] : memref<12x9xf32, #tpu.memory_space<smem>>
    %99 = vector.broadcast %98 : f32 to vector<32x128xf32>
    %100 = arith.mulf %99, %9 : vector<32x128xf32>
    %101 = arith.addf %97, %100 : vector<32x128xf32>
    %c5_57 = arith.constant 5 : index
    %c2_58 = arith.constant 2 : index
    %102 = memref.load %arg3[%c5_57, %c2_58] : memref<12x9xf32, #tpu.memory_space<smem>>
    %103 = vector.broadcast %102 : f32 to vector<32x128xf32>
    %104 = arith.mulf %103, %14 : vector<32x128xf32>
    %105 = arith.addf %101, %104 : vector<32x128xf32>
    %c5_59 = arith.constant 5 : index
    %c3_60 = arith.constant 3 : index
    %106 = memref.load %arg3[%c5_59, %c3_60] : memref<12x9xf32, #tpu.memory_space<smem>>
    %107 = vector.broadcast %106 : f32 to vector<32x128xf32>
    %108 = arith.addf %105, %107 : vector<32x128xf32>
    %cst_61 = arith.constant 0.000000e+00 : f32
    %109 = vector.broadcast %cst_61 : f32 to vector<32x128xf32>
    %110 = arith.maximumf %108, %109 : vector<32x128xf32>
    %c6 = arith.constant 6 : index
    %c0_62 = arith.constant 0 : index
    %111 = memref.load %arg3[%c6, %c0_62] : memref<12x9xf32, #tpu.memory_space<smem>>
    %112 = vector.broadcast %111 : f32 to vector<32x128xf32>
    %113 = arith.mulf %112, %4 : vector<32x128xf32>
    %c6_63 = arith.constant 6 : index
    %c1_64 = arith.constant 1 : index
    %114 = memref.load %arg3[%c6_63, %c1_64] : memref<12x9xf32, #tpu.memory_space<smem>>
    %115 = vector.broadcast %114 : f32 to vector<32x128xf32>
    %116 = arith.mulf %115, %9 : vector<32x128xf32>
    %117 = arith.addf %113, %116 : vector<32x128xf32>
    %c6_65 = arith.constant 6 : index
    %c2_66 = arith.constant 2 : index
    %118 = memref.load %arg3[%c6_65, %c2_66] : memref<12x9xf32, #tpu.memory_space<smem>>
    %119 = vector.broadcast %118 : f32 to vector<32x128xf32>
    %120 = arith.mulf %119, %14 : vector<32x128xf32>
    %121 = arith.addf %117, %120 : vector<32x128xf32>
    %c6_67 = arith.constant 6 : index
    %c3_68 = arith.constant 3 : index
    %122 = memref.load %arg3[%c6_67, %c3_68] : memref<12x9xf32, #tpu.memory_space<smem>>
    %123 = vector.broadcast %122 : f32 to vector<32x128xf32>
    %124 = arith.addf %121, %123 : vector<32x128xf32>
    %cst_69 = arith.constant 0.000000e+00 : f32
    %125 = vector.broadcast %cst_69 : f32 to vector<32x128xf32>
    %126 = arith.maximumf %124, %125 : vector<32x128xf32>
    %c7 = arith.constant 7 : index
    %c0_70 = arith.constant 0 : index
    %127 = memref.load %arg3[%c7, %c0_70] : memref<12x9xf32, #tpu.memory_space<smem>>
    %128 = vector.broadcast %127 : f32 to vector<32x128xf32>
    %129 = arith.mulf %128, %4 : vector<32x128xf32>
    %c7_71 = arith.constant 7 : index
    %c1_72 = arith.constant 1 : index
    %130 = memref.load %arg3[%c7_71, %c1_72] : memref<12x9xf32, #tpu.memory_space<smem>>
    %131 = vector.broadcast %130 : f32 to vector<32x128xf32>
    %132 = arith.mulf %131, %9 : vector<32x128xf32>
    %133 = arith.addf %129, %132 : vector<32x128xf32>
    %c7_73 = arith.constant 7 : index
    %c2_74 = arith.constant 2 : index
    %134 = memref.load %arg3[%c7_73, %c2_74] : memref<12x9xf32, #tpu.memory_space<smem>>
    %135 = vector.broadcast %134 : f32 to vector<32x128xf32>
    %136 = arith.mulf %135, %14 : vector<32x128xf32>
    %137 = arith.addf %133, %136 : vector<32x128xf32>
    %c7_75 = arith.constant 7 : index
    %c3_76 = arith.constant 3 : index
    %138 = memref.load %arg3[%c7_75, %c3_76] : memref<12x9xf32, #tpu.memory_space<smem>>
    %139 = vector.broadcast %138 : f32 to vector<32x128xf32>
    %140 = arith.addf %137, %139 : vector<32x128xf32>
    %cst_77 = arith.constant 0.000000e+00 : f32
    %141 = vector.broadcast %cst_77 : f32 to vector<32x128xf32>
    %142 = arith.maximumf %140, %141 : vector<32x128xf32>
    %143 = arith.index_cast %arg0 : i32 to index
    %c0_78 = arith.constant 0 : index
    %144 = memref.load %arg4[%143, %c0_78] : memref<2x16xf32, #tpu.memory_space<smem>>
    %145 = vector.broadcast %144 : f32 to vector<32x128xf32>
    %146 = arith.mulf %145, %30 : vector<32x128xf32>
    %147 = arith.index_cast %arg0 : i32 to index
    %c1_79 = arith.constant 1 : index
    %148 = memref.load %arg4[%147, %c1_79] : memref<2x16xf32, #tpu.memory_space<smem>>
    %149 = vector.broadcast %148 : f32 to vector<32x128xf32>
    %150 = arith.mulf %149, %46 : vector<32x128xf32>
    %151 = arith.addf %146, %150 : vector<32x128xf32>
    %152 = arith.index_cast %arg0 : i32 to index
    %c2_80 = arith.constant 2 : index
    %153 = memref.load %arg4[%152, %c2_80] : memref<2x16xf32, #tpu.memory_space<smem>>
    %154 = vector.broadcast %153 : f32 to vector<32x128xf32>
    %155 = arith.mulf %154, %62 : vector<32x128xf32>
    %156 = arith.addf %151, %155 : vector<32x128xf32>
    %157 = arith.index_cast %arg0 : i32 to index
    %c3_81 = arith.constant 3 : index
    %158 = memref.load %arg4[%157, %c3_81] : memref<2x16xf32, #tpu.memory_space<smem>>
    %159 = vector.broadcast %158 : f32 to vector<32x128xf32>
    %160 = arith.mulf %159, %78 : vector<32x128xf32>
    %161 = arith.addf %156, %160 : vector<32x128xf32>
    %162 = arith.index_cast %arg0 : i32 to index
    %c4_82 = arith.constant 4 : index
    %163 = memref.load %arg4[%162, %c4_82] : memref<2x16xf32, #tpu.memory_space<smem>>
    %164 = vector.broadcast %163 : f32 to vector<32x128xf32>
    %165 = arith.mulf %164, %94 : vector<32x128xf32>
    %166 = arith.addf %161, %165 : vector<32x128xf32>
    %167 = arith.index_cast %arg0 : i32 to index
    %c5_83 = arith.constant 5 : index
    %168 = memref.load %arg4[%167, %c5_83] : memref<2x16xf32, #tpu.memory_space<smem>>
    %169 = vector.broadcast %168 : f32 to vector<32x128xf32>
    %170 = arith.mulf %169, %110 : vector<32x128xf32>
    %171 = arith.addf %166, %170 : vector<32x128xf32>
    %172 = arith.index_cast %arg0 : i32 to index
    %c6_84 = arith.constant 6 : index
    %173 = memref.load %arg4[%172, %c6_84] : memref<2x16xf32, #tpu.memory_space<smem>>
    %174 = vector.broadcast %173 : f32 to vector<32x128xf32>
    %175 = arith.mulf %174, %126 : vector<32x128xf32>
    %176 = arith.addf %171, %175 : vector<32x128xf32>
    %177 = arith.index_cast %arg0 : i32 to index
    %c7_85 = arith.constant 7 : index
    %178 = memref.load %arg4[%177, %c7_85] : memref<2x16xf32, #tpu.memory_space<smem>>
    %179 = vector.broadcast %178 : f32 to vector<32x128xf32>
    %180 = arith.mulf %179, %142 : vector<32x128xf32>
    %181 = arith.addf %176, %180 : vector<32x128xf32>
    %182 = arith.index_cast %arg0 : i32 to index
    %c8 = arith.constant 8 : index
    %183 = memref.load %arg4[%182, %c8] : memref<2x16xf32, #tpu.memory_space<smem>>
    %184 = vector.broadcast %183 : f32 to vector<32x128xf32>
    %185 = arith.addf %181, %184 : vector<32x128xf32>
    %cst_86 = arith.constant 0.000000e+00 : f32
    %186 = vector.broadcast %cst_86 : f32 to vector<32x128xf32>
    %187 = arith.cmpf ogt, %185, %186 : vector<32x128xf32>
    %188 = arith.index_cast %arg0 : i32 to index
    %c9 = arith.constant 9 : index
    %189 = memref.load %arg4[%188, %c9] : memref<2x16xf32, #tpu.memory_space<smem>>
    %190 = vector.broadcast %189 : f32 to vector<32x128xf32>
    %191 = arith.mulf %190, %4 : vector<32x128xf32>
    %192 = arith.index_cast %arg0 : i32 to index
    %c10 = arith.constant 10 : index
    %193 = memref.load %arg4[%192, %c10] : memref<2x16xf32, #tpu.memory_space<smem>>
    %194 = vector.broadcast %193 : f32 to vector<32x128xf32>
    %195 = arith.mulf %194, %9 : vector<32x128xf32>
    %196 = arith.addf %191, %195 : vector<32x128xf32>
    %197 = arith.index_cast %arg0 : i32 to index
    %c11 = arith.constant 11 : index
    %198 = memref.load %arg4[%197, %c11] : memref<2x16xf32, #tpu.memory_space<smem>>
    %199 = vector.broadcast %198 : f32 to vector<32x128xf32>
    %200 = arith.mulf %199, %14 : vector<32x128xf32>
    %201 = arith.addf %196, %200 : vector<32x128xf32>
    %202 = arith.index_cast %arg0 : i32 to index
    %c12 = arith.constant 12 : index
    %203 = memref.load %arg4[%202, %c12] : memref<2x16xf32, #tpu.memory_space<smem>>
    %204 = vector.broadcast %203 : f32 to vector<32x128xf32>
    %205 = arith.addf %201, %204 : vector<32x128xf32>
    %206 = arith.negf %205 : vector<32x128xf32>
    %207 = math.exp %206 : vector<32x128xf32>
    %cst_87 = arith.constant 1.000000e+00 : f32
    %208 = vector.broadcast %cst_87 : f32 to vector<32x128xf32>
    %209 = arith.addf %208, %207 : vector<32x128xf32>
    %210 = arith.divf %208, %209 : vector<32x128xf32>
    %c0_88 = arith.constant 0 : index
    %c0_89 = arith.constant 0 : index
    %c0_90 = arith.constant 0 : index
    %211 = vector.load %arg5[%c0_88, %c0_89, %c0_90] : memref<1x32x128xf32, #tpu.memory_space<vmem>>, vector<1x32x128xf32>
    %212 = vector.shape_cast %211 : vector<1x32x128xf32> to vector<32x128xf32>
    %213 = vector.shape_cast %210 : vector<32x128xf32> to vector<1x32x128xf32>
    tpu.vector_store %arg5[%c0_88, %c0_89, %c0_90], %213 {strides = array<i32>} : memref<1x32x128xf32, #tpu.memory_space<vmem>>, vector<1x32x128xf32>,
    %214 = arith.extui %187 : vector<32x128xi1> to vector<32x128xi8>
    %c0_91 = arith.constant 0 : index
    %c0_92 = arith.constant 0 : index
    %c0_93 = arith.constant 0 : index
    %215 = vector.load %arg6[%c0_91, %c0_92, %c0_93] : memref<1x32x128xi8, #tpu.memory_space<vmem>>, vector<1x32x128xi8>
    %216 = vector.shape_cast %215 : vector<1x32x128xi8> to vector<32x128xi8>
    %217 = vector.shape_cast %214 : vector<32x128xi8> to vector<1x32x128xi8>
    tpu.vector_store %arg6[%c0_91, %c0_92, %c0_93], %217 {strides = array<i32>} : memref<1x32x128xi8, #tpu.memory_space<vmem>>, vector<1x32x128xi8>,
    return
  }
  func.func @transform_0(%arg0: i32, %arg1: i32) -> (i32, i32, i32, i32) {
    %c0_i32 = arith.constant 0 : i32
    %c0_i32_0 = arith.constant 0 : i32
    %c0_i32_1 = arith.constant 0 : i32
    return %arg0, %c0_i32, %arg1, %c0_i32_0 : i32, i32, i32, i32
  }
  func.func @transform_1(%arg0: i32, %arg1: i32) -> (i32, i32) {
    %c0_i32 = arith.constant 0 : i32
    %c0_i32_0 = arith.constant 0 : i32
    %c0_i32_1 = arith.constant 0 : i32
    return %c0_i32, %c0_i32_0 : i32, i32
  }
  func.func @transform_2(%arg0: i32, %arg1: i32) -> (i32, i32) {
    %c0_i32 = arith.constant 0 : i32
    %c0_i32_0 = arith.constant 0 : i32
    %c0_i32_1 = arith.constant 0 : i32
    return %c0_i32, %c0_i32_0 : i32, i32
  }
  func.func @transform_3(%arg0: i32, %arg1: i32) -> (i32, i32, i32) {
    %c0_i32 = arith.constant 0 : i32
    %c0_i32_0 = arith.constant 0 : i32
    return %arg0, %arg1, %c0_i32 : i32, i32, i32
  }
  func.func @transform_4(%arg0: i32, %arg1: i32) -> (i32, i32, i32) {
    %c0_i32 = arith.constant 0 : i32
    %c0_i32_0 = arith.constant 0 : i32
    return %arg0, %arg1, %c0_i32 : i32, i32, i32
  }
}

</mosaic_0001>

<llo_original>
// kernel: object_segmentation_prediction.2
$region0: #{object_segmentation_prediction.2}
  #allocation0 [shape = 'u32[]', space=smem, size = 0x4, offset = 0x4, fixed_abs, tag = 'smem constant byte address 0x4 - core index']
  #allocation1 [shape = 'u32[144,128]{1,0:T(1,128)}', space=vmem, size = 0x12000, scoped, tag = 'internal scratch']
  %s0 = inlined_call_operand.vmem [shape: u8[2,3,128,128], index: 0, kind: input, shape index: {}]
  %s1 = inlined_call_operand.vmem [shape: f32[12,9], index: 1, kind: input, shape index: {}]
  %s2 = inlined_call_operand.vmem [shape: f32[2,2,8,128], index: 2, kind: output, shape index: {0}]
  %s3 = inlined_call_operand.vmem [shape: f32[2,2,3,128], index: 3, kind: output, shape index: {1}]
  %s4 = inlined_call_operand.vmem [shape: f32[2,2,4,128], index: 4, kind: output, shape index: {2}]
  %s5 = inlined_call_operand.vmem [shape: f32[2,2,12,128], index: 5, kind: output, shape index: {3}]
  %6 = xla_tuple %s2, %s3, %s4, %s5
  %s7 = sld [smem:[#allocation0]]
  $region111: #{object_segmentation_prediction.2} parent=0
    _
  %s9 = ssub.s32 1, %s7
  %s10 = scalar_select 0, %s9, %s7
  $region1: #{object_segmentation_prediction.2} parent=0
    #allocation2 [shape = 'u8[24576]{0}', space=vmem, size = 0x6000, scoped, tag = 'input window, operand 0']
    #allocation3 [shape = 'u8[8192]{0}', space=smem, size = 0x2000, scoped, tag = 'input window, operand 1, single buffered']
    #allocation4 [shape = 's32[2]{0}', space=sflag, size = 0x8, scoped, tag = 'scoped memory for object_segmentation_prediction.2']
    %11 = vsyncpa [#allocation4], 0
    loop: start=0, step=1, limit=10
    $region2: #{object_segmentation_prediction.2} parent=1 // loop_pre_header
      _
    $region3: #{object_segmentation_prediction.2} parent=1 // loop_header
      %s13 = sphi 0, %s17
      %p14 = scmp.ge.s32.totalorder %s13, 10
      %s20 = sphi 0, %s39
      %s21 = sphi 0, %s35
      %s22 = sphi 0, %s31
      %s23 = sphi 0, %s20
      %s24 = sphi 0, %s21
      %s25 = sphi 0, %s22
      %s26 = sphi 0, %s23
      %s27 = sphi 0, %s24
      %s28 = sphi 0, %s25
      %s48 = sphi 0, %s50
      %s51 = sphi 0, %s48
      %s52 = sphi 0, %s51
      %s68 = sphi 0, %s52
      %s72 = sphi 0, %s72
      %s74 = sphi 0, %s72
      %s75 = sphi 0, %s74
      %s89 = sphi 0, %s75
      %s97 = sphi 0, %s99
      %s100 = sphi 0, %s97
      %s101 = sphi 0, %s100
      %s117 = sphi 0, %s101
      %s125 = sphi 0, %s127
      %s128 = sphi 0, %s125
      %s129 = sphi 0, %s128
      %s145 = sphi 0, %s129
      %s153 = sphi 0, %s155
      %s156 = sphi 0, %s153
      %s157 = sphi 0, %s156
      %s173 = sphi 0, %s157
      %s181 = sphi 0, %s183
      %s184 = sphi 0, %s181
      %s185 = sphi 0, %s184
      %s201 = sphi 0, %s185
    $region4: #{object_segmentation_prediction.2} parent=1 // loop_header_branch
      %16 = sbr.rel (%p14) target = $region8
    $region5: #{object_segmentation_prediction.2} parent=1 // loop_body
      %s18 = ssub.s32 %s13, 1
      %s19 = ssub.s32 %s13, 2
      %s29 = sadd.s32 1, %s22
      %p30 = scmp.ge.s32.totalorder %s29, 2
      %s31 = scalar_select %p30, 0, %s29
      %s32 = sadd.s32 1, %s21
      %s33 = scalar_select %p30, %s32, %s21
      %p34 = scmp.ge.s32.totalorder %s33, 2
      %s35 = scalar_select %p34, 0, %s33
      %s36 = sadd.s32 1, %s20
      %s37 = scalar_select %p34, %s36, %s20
      %p38 = scmp.ge.s32.totalorder %s37, 2
      %s39 = scalar_select %p38, 0, %s37
      %s40 = smul.u32 %s21, 2
      %s41 = sadd.s32 %s40, %s22
      %s42 = smul.u32 %s35, 2
      %s43 = sadd.s32 %s42, %s31
      %s44 = ssub.s32 %s20, %s39
      %s45 = ssub.s32 %s41, %s43
      %s46 = sor.u32 %s44, %s45
      %p47 = scmp.eq.s32.totalorder %s46, 0
      %s49 = sadd.s32 %s48, 1
      %s50 = scalar_select %p47, %s48, %s49
      %p53 = pneg %p47
      %p54 = scmp.eq.s32.totalorder %s13, 7
      %p55 = por %p53, %p54
      %p56 = scmp.ne.s32.totalorder %s48, %s51
      %p57 = scmp.eq.s32.totalorder %s13, 0
      %p58 = por %p56, %p57
      %p59 = scmp.ne.s32.totalorder %s48, %s51
      %p60 = scmp.eq.s32.totalorder %s18, 7
      %p61 = por %p59, %p60
      %p62 = scmp.ne.s32.totalorder %s51, %s52
      %p63 = scmp.eq.s32.totalorder %s18, 0
      %p64 = por %p62, %p63
      %p65 = scmp.ne.s32.totalorder %s51, %s52
      %p66 = scmp.eq.s32.totalorder %s19, 7
      %p67 = por %p65, %p66
      %p69 = scmp.ne.s32.totalorder %s52, %s68
      %p70 = scmp.eq.s32.totalorder %s19, 0
      %p71 = por %p69, %p70
      %s73 = sadd.s32 %s72, 1
      %p76 = scmp.eq.s32.totalorder %s13, 7
      %p77 = scmp.ne.s32.totalorder %s72, %s74
      %p78 = scmp.eq.s32.totalorder %s13, 0
      %p79 = por %p77, %p78
      %p80 = scmp.ne.s32.totalorder %s72, %s74
      %p81 = scmp.eq.s32.totalorder %s18, 7
      %p82 = por %p80, %p81
      %p83 = scmp.ne.s32.totalorder %s74, %s75
      %p84 = scmp.eq.s32.totalorder %s18, 0
      %p85 = por %p83, %p84
      %p86 = scmp.ne.s32.totalorder %s74, %s75
      %p87 = scmp.eq.s32.totalorder %s19, 7
      %p88 = por %p86, %p87
      %p90 = scmp.ne.s32.totalorder %s75, %s89
      %p91 = scmp.eq.s32.totalorder %s19, 0
      %p92 = por %p90, %p91
      %s93 = ssub.s32 %s20, %s39
      %s94 = ssub.s32 %s21, %s35
      %s95 = sor.u32 %s93, %s94
      %p96 = scmp.eq.s32.totalorder %s95, 0
      %s98 = sadd.s32 %s97, 1
      %s99 = scalar_select %p96, %s97, %s98
      %p102 = pneg %p96
      %p103 = scmp.eq.s32.totalorder %s13, 7
      %p104 = por %p102, %p103
      %p105 = scmp.ne.s32.totalorder %s97, %s100
      %p106 = scmp.eq.s32.totalorder %s13, 0
      %p107 = por %p105, %p106
      %p108 = scmp.ne.s32.totalorder %s97, %s100
      %p109 = scmp.eq.s32.totalorder %s18, 7
      %p110 = por %p108, %p109
      %p111 = scmp.ne.s32.totalorder %s100, %s101
      %p112 = scmp.eq.s32.totalorder %s18, 0
      %p113 = por %p111, %p112
      %p114 = scmp.ne.s32.totalorder %s100, %s101
      %p115 = scmp.eq.s32.totalorder %s19, 7
      %p116 = por %p114, %p115
      %p118 = scmp.ne.s32.totalorder %s101, %s117
      %p119 = scmp.eq.s32.totalorder %s19, 0
      %p120 = por %p118, %p119
      %s121 = ssub.s32 %s20, %s39
      %s122 = ssub.s32 %s21, %s35
      %s123 = sor.u32 %s121, %s122
      %p124 = scmp.eq.s32.totalorder %s123, 0
      %s126 = sadd.s32 %s125, 1
      %s127 = scalar_select %p124, %s125, %s126
      %p130 = pneg %p124
      %p131 = scmp.eq.s32.totalorder %s13, 7
      %p132 = por %p130, %p131
      %p133 = scmp.ne.s32.totalorder %s125, %s128
      %p134 = scmp.eq.s32.totalorder %s13, 0
      %p135 = por %p133, %p134
      %p136 = scmp.ne.s32.totalorder %s125, %s128
      %p137 = scmp.eq.s32.totalorder %s18, 7
      %p138 = por %p136, %p137
      %p139 = scmp.ne.s32.totalorder %s128, %s129
      %p140 = scmp.eq.s32.totalorder %s18, 0
      %p141 = por %p139, %p140
      %p142 = scmp.ne.s32.totalorder %s128, %s129
      %p143 = scmp.eq.s32.totalorder %s19, 7
      %p144 = por %p142, %p143
      %p146 = scmp.ne.s32.totalorder %s129, %s145
      %p147 = scmp.eq.s32.totalorder %s19, 0
      %p148 = por %p146, %p147
      %s149 = ssub.s32 %s20, %s39
      %s150 = ssub.s32 %s21, %s35
      %s151 = sor.u32 %s149, %s150
      %p152 = scmp.eq.s32.totalorder %s151, 0
      %s154 = sadd.s32 %s153, 1
      %s155 = scalar_select %p152, %s153, %s154
      %p158 = pneg %p152
      %p159 = scmp.eq.s32.totalorder %s13, 7
      %p160 = por %p158, %p159
      %p161 = scmp.ne.s32.totalorder %s153, %s156
      %p162 = scmp.eq.s32.totalorder %s13, 0
      %p163 = por %p161, %p162
      %p164 = scmp.ne.s32.totalorder %s153, %s156
      %p165 = scmp.eq.s32.totalorder %s18, 7
      %p166 = por %p164, %p165
      %p167 = scmp.ne.s32.totalorder %s156, %s157
      %p168 = scmp.eq.s32.totalorder %s18, 0
      %p169 = por %p167, %p168
      %p170 = scmp.ne.s32.totalorder %s156, %s157
      %p171 = scmp.eq.s32.totalorder %s19, 7
      %p172 = por %p170, %p171
      %p174 = scmp.ne.s32.totalorder %s157, %s173
      %p175 = scmp.eq.s32.totalorder %s19, 0
      %p176 = por %p174, %p175
      %s177 = ssub.s32 %s20, %s39
      %s178 = ssub.s32 %s21, %s35
      %s179 = sor.u32 %s177, %s178
      %p180 = scmp.eq.s32.totalorder %s179, 0
      %s182 = sadd.s32 %s181, 1
      %s183 = scalar_select %p180, %s181, %s182
      %p186 = pneg %p180
      %p187 = scmp.eq.s32.totalorder %s13, 7
      %p188 = por %p186, %p187
      %p189 = scmp.ne.s32.totalorder %s181, %s184
      %p190 = scmp.eq.s32.totalorder %s13, 0
      %p191 = por %p189, %p190
      %p192 = scmp.ne.s32.totalorder %s181, %s184
      %p193 = scmp.eq.s32.totalorder %s18, 7
      %p194 = por %p192, %p193
      %p195 = scmp.ne.s32.totalorder %s184, %s185
      %p196 = scmp.eq.s32.totalorder %s18, 0
      %p197 = por %p195, %p196
      %p198 = scmp.ne.s32.totalorder %s184, %s185
      %p199 = scmp.eq.s32.totalorder %s19, 7
      %p200 = por %p198, %p199
      %p202 = scmp.ne.s32.totalorder %s185, %s201
      %p203 = scmp.eq.s32.totalorder %s19, 0
      %p204 = por %p202, %p203
      %p205 = scmp.le.s32.totalorder 1, %s13
      %p206 = scmp.lt.s32.totalorder %s13, 9
      %p207 = pnand %p205, %p206
      %p208 = pneg %p207
      // Predicated region
      $region9: #{object_segmentation_prediction.2} parent=5 // pred_check
        _
      $region10: #{object_segmentation_prediction.2} parent=5 // pred_check_branch
        %210 = sbr.rel (%p207) target = $region12
      $region11: #{object_segmentation_prediction.2} parent=5 // pred_region
        %s211 = ssub.s32 %s13, 1
        // Predicated region
        $region13: #{object_segmentation_prediction.2} parent=11 // pred_check
          %p212 = pneg %p85
        $region14: #{object_segmentation_prediction.2} parent=11 // pred_check_branch
          %214 = sbr.rel (%p212) target = $region16
        $region15: #{object_segmentation_prediction.2} parent=11 // pred_region
          %s216 = ssub.s32 256, 256
          %217 = vsyncadd [#allocation4], %s216
          %s218 = sshll.u32 %s1, 4
          %s219 = int_to_ptr.vmem [resolvable:$true] %s218
          %224 = dma.vmem_to_smem %s219, 256, [#allocation3], [#allocation4], 128, 128, 8
        $region16: #{object_segmentation_prediction.2} parent=11 // pred_fallthru
          _
      $region12: #{object_segmentation_prediction.2} parent=5 // pred_fallthru
        _
      %p225 = scmp.lt.s32.totalorder %s13, 8
      // Predicated region
      $region17: #{object_segmentation_prediction.2} parent=5 // pred_check
        %p226 = pneg %p225
      $region18: #{object_segmentation_prediction.2} parent=5 // pred_check_branch
        %228 = sbr.rel (%p226) target = $region20
      $region19: #{object_segmentation_prediction.2} parent=5 // pred_region
        // Predicated region
        $region21: #{object_segmentation_prediction.2} parent=19 // pred_check
          %p229 = pneg %p58
        $region22: #{object_segmentation_prediction.2} parent=19 // pred_check_branch
          %231 = sbr.rel (%p229) target = $region24
        $region23: #{object_segmentation_prediction.2} parent=19 // pred_region
          %s232 = sand.u32 %s48, 1
          %s233 = sand.u32 %s48, 1
          %s234 = smul.addr %s233, 24
          %s235 = scalar_lea.vmem [#allocation2], %s234
          %s236 = smul.u32 %s21, 2
          %s237 = sadd.s32 %s236, %s22
          %s238 = smul.addr %s20, 12
          %s239 = sadd.s32 %s237, %s238
          %s240 = smul.addr %s239, 8
          %s241 = scalar_lea.vmem %s0, %s240
          // Predicated region
          $region25: #{object_segmentation_prediction.2} parent=23 // pred_check
            _
          $region26: #{object_segmentation_prediction.2} parent=23 // pred_check_branch
            %243 = sbr.rel (0) target = $region28
          $region27: #{object_segmentation_prediction.2} parent=23 // pred_region
            // Predicated region
            $region29: #{object_segmentation_prediction.2} parent=27 // pred_check
              _
            $region30: #{object_segmentation_prediction.2} parent=27 // pred_check_branch
              %245 = sbr.rel (0) target = $region32
            $region31: #{object_segmentation_prediction.2} parent=27 // pred_region
              // Predicated region
              $region44: #{object_segmentation_prediction.2} parent=31 // pred_check
                _
              $region45: #{object_segmentation_prediction.2} parent=31 // pred_check_branch
                %264 = sbr.rel (0) target = $region47
              $region46: #{object_segmentation_prediction.2} parent=31 // pred_region
                loop: start=0, step=1, limit=1
                $region48: #{object_segmentation_prediction.2} parent=46 // loop_pre_header
                  _
                $region49: #{object_segmentation_prediction.2} parent=46 // loop_header
                  %s266 = sphi 0, %s270
                  %p267 = scmp.ge.s32.totalorder %s266, 1
                  %s271 = sphi %s241, %s241
                  %s272 = sphi %s235, %s235
                $region50: #{object_segmentation_prediction.2} parent=46 // loop_header_branch
                  %269 = sbr.rel (%p267) target = $region54
                $region51: #{object_segmentation_prediction.2} parent=46 // loop_body
                  %v273 = vld [vmem:[%s271] sm:$0xff]
                  %274 = vst [vmem:[%s272] sm:$0xff] %v273
                  %v275 = vld [vmem:[%s271 + $0x20] sm:$0xff]
                  %276 = vst [vmem:[%s272 + $0x8] sm:$0xff] %v275
                  %v277 = vld [vmem:[%s271 + $0x40] sm:$0xff]
                  %278 = vst [vmem:[%s272 + $0x10] sm:$0xff] %v277
                $region52: #{object_segmentation_prediction.2} parent=46 // loop_footer
                  %s270 = sadd.s32 1, %s266
                $region53: #{object_segmentation_prediction.2} parent=46 // loop_footer_branch
                  %265 = sbr.rel target = $region49
                $region54: #{object_segmentation_prediction.2} parent=46 // loop_exit
                  _
              $region47: #{object_segmentation_prediction.2} parent=31 // pred_fallthru
                _
              // Predicated region
              $region55: #{object_segmentation_prediction.2} parent=31 // pred_check
                _
              $region56: #{object_segmentation_prediction.2} parent=31 // pred_check_branch
                %280 = sbr.rel target = $region58
              $region57: #{object_segmentation_prediction.2} parent=31 // pred_region
                _
              $region58: #{object_segmentation_prediction.2} parent=31 // pred_fallthru
                _
            $region32: #{object_segmentation_prediction.2} parent=27 // pred_fallthru
              _
            // Predicated region
            $region33: #{object_segmentation_prediction.2} parent=27 // pred_check
              _
            $region34: #{object_segmentation_prediction.2} parent=27 // pred_check_branch
              %247 = sbr.rel target = $region36
            $region35: #{object_segmentation_prediction.2} parent=27 // pred_region
              loop: start=0, step=1, limit=1
              $region37: #{object_segmentation_prediction.2} parent=35 // loop_pre_header
                _
              $region38: #{object_segmentation_prediction.2} parent=35 // loop_header
                %s250 = sphi 0, %s254
                %p251 = scmp.ge.s32.totalorder %s250, 1
                %s255 = sphi %s241, %s241
                %s256 = sphi %s235, %s235
              $region39: #{object_segmentation_prediction.2} parent=35 // loop_header_branch
                %253 = sbr.rel (%p251) target = $region43
              $region40: #{object_segmentation_prediction.2} parent=35 // loop_body
                %v257 = vld [vmem:[%s255] sm:$0xff]
                %258 = vst [vmem:[%s256] sm:$0xff] %v257
                %v259 = vld [vmem:[%s255 + $0x20] sm:$0xff]
                %260 = vst [vmem:[%s256 + $0x8] sm:$0xff] %v259
                %v261 = vld [vmem:[%s255 + $0x40] sm:$0xff]
                %262 = vst [vmem:[%s256 + $0x10] sm:$0xff] %v261
              $region41: #{object_segmentation_prediction.2} parent=35 // loop_footer
                %s254 = sadd.s32 1, %s250
              $region42: #{object_segmentation_prediction.2} parent=35 // loop_footer_branch
                %249 = sbr.rel target = $region38
              $region43: #{object_segmentation_prediction.2} parent=35 // loop_exit
                _
            $region36: #{object_segmentation_prediction.2} parent=27 // pred_fallthru
              _
          $region28: #{object_segmentation_prediction.2} parent=23 // pred_fallthru
            _
          %281 = vnop
        $region24: #{object_segmentation_prediction.2} parent=19 // pred_fallthru
          _
      $region20: #{object_segmentation_prediction.2} parent=5 // pred_fallthru
        _
      %p282 = scmp.le.s32.totalorder 1, %s13
      %p283 = scmp.lt.s32.totalorder %s13, 9
      %p284 = pnand %p282, %p283
      %p285 = pneg %p284
      // Predicated region
      $region59: #{object_segmentation_prediction.2} parent=5 // pred_check
        _
      $region60: #{object_segmentation_prediction.2} parent=5 // pred_check_branch
        %287 = sbr.rel (%p284) target = $region62
      $region61: #{object_segmentation_prediction.2} parent=5 // pred_region
        %s288 = ssub.s32 %s13, 1
        %s289 = sand.u32 %s51, 1
        %s290 = sand.u32 %s51, 1
        %s291 = smul.addr %s290, 24
        %s292 = scalar_lea.vmem [#allocation2], %s291
        // Predicated region
        $region63: #{object_segmentation_prediction.2} parent=61 // pred_check
          %p293 = pneg %p64
        $region64: #{object_segmentation_prediction.2} parent=61 // pred_check_branch
          %295 = sbr.rel (%p293) target = $region66
        $region65: #{object_segmentation_prediction.2} parent=61 // pred_region
          _
        $region66: #{object_segmentation_prediction.2} parent=61 // pred_fallthru
          _
        // Predicated region
        $region67: #{object_segmentation_prediction.2} parent=61 // pred_check
          %p296 = pneg %p85
        $region68: #{object_segmentation_prediction.2} parent=61 // pred_check_branch
          %298 = sbr.rel (%p296) target = $region70
        $region69: #{object_segmentation_prediction.2} parent=61 // pred_region
          %299 = dma.done [#allocation4], 256
        $region70: #{object_segmentation_prediction.2} parent=61 // pred_fallthru
          _
        %300 = sfence
        %s301 = sand.u32 %s51, 1
        %s302 = sand.u32 %s51, 1
        %s303 = smul.addr %s302, 24
        %s304 = scalar_lea.vmem [#allocation2], %s303
        %p305 = pneg %p64
        %p306 = pneg %p61
        %p307 = pneg %p85
        %p308 = pneg %p82
        %p309 = pneg %p113
        %p310 = pneg %p110
        %p311 = scmp.lt.s32.totalorder %s23, 1
        %s312 = scalar_select %p311, %s23, 1
        %p313 = scmp.lt.s32.totalorder %s24, 1
        %s314 = scalar_select %p313, %s24, 1
        %s315 = smul.addr %s312, 2
        %s316 = sadd.s32 %s314, %s315
        %s317 = smul.addr %s316, 8
        %s318 = scalar_lea.vmem %s2, %s317
        %p319 = pneg %p141
        %p320 = pneg %p138
        %p321 = scmp.lt.s32.totalorder %s23, 1
        %s322 = scalar_select %p321, %s23, 1
        %p323 = scmp.lt.s32.totalorder %s24, 1
        %s324 = scalar_select %p323, %s24, 1
        %s325 = smul.addr %s322, 2
        %s326 = sadd.s32 %s324, %s325
        %s327 = smul.addr %s326, 4
        %s328 = scalar_lea.vmem %s3, %s327
        %p329 = pneg %p169
        %p330 = pneg %p166
        %p331 = scmp.lt.s32.totalorder %s23, 1
        %s332 = scalar_select %p331, %s23, 1
        %p333 = scmp.lt.s32.totalorder %s24, 1
        %s334 = scalar_select %p333, %s24, 1
        %s335 = smul.addr %s332, 2
        %s336 = sadd.s32 %s334, %s335
        %s337 = smul.addr %s336, 4
        %s338 = scalar_lea.vmem %s4, %s337
        %p339 = pneg %p197
        %p340 = pneg %p194
        %p341 = scmp.lt.s32.totalorder %s23, 1
        %s342 = scalar_select %p341, %s23, 1
        %p343 = scmp.lt.s32.totalorder %s24, 1
        %s344 = scalar_select %p343, %s24, 1
        %s345 = smul.addr %s344, 2
        %s346 = smul.addr %s342, 4
        %s347 = sadd.s32 %s345, %s346
        %s348 = smul.addr %s347, 8
        %s349 = scalar_lea.vmem %s5, %s348
        %s350 = smul.u32 %s24, 2
        %s351 = sadd.s32 %s350, %s25
        %p352 = scmp.lt.s32.totalorder %s23, 1
        %s353 = scalar_select %p352, %s23, 1
        %p354 = scmp.lt.s32.totalorder %s24, 1
        %s355 = scalar_select %p354, %s24, 1
        %s356 = smul.addr %s353, 2
        %s357 = sadd.s32 %s355, %s356
        %s358 = smul.addr %s357, 8
        %s359 = scalar_lea.vmem %s2, %s358
        %p360 = scmp.lt.s32.totalorder %s23, 1
        %s361 = scalar_select %p360, %s23, 1
        %p362 = scmp.lt.s32.totalorder %s24, 1
        %s363 = scalar_select %p362, %s24, 1
        %s364 = smul.addr %s361, 2
        %s365 = sadd.s32 %s363, %s364
        %s366 = smul.addr %s365, 4
        %s367 = scalar_lea.vmem %s3, %s366
        %p368 = scmp.lt.s32.totalorder %s23, 1
        %s369 = scalar_select %p368, %s23, 1
        %p370 = scmp.lt.s32.totalorder %s24, 1
        %s371 = scalar_select %p370, %s24, 1
        %s372 = smul.addr %s369, 2
        %s373 = sadd.s32 %s371, %s372
        %s374 = smul.addr %s373, 4
        %s375 = scalar_lea.vmem %s4, %s374
        %p376 = scmp.lt.s32.totalorder %s23, 1
        %s377 = scalar_select %p376, %s23, 1
        %p378 = scmp.lt.s32.totalorder %s24, 1
        %s379 = scalar_select %p378, %s24, 1
        %s380 = smul.addr %s379, 2
        %s381 = smul.addr %s377, 4
        %s382 = sadd.s32 %s380, %s381
        %s383 = smul.addr %s382, 8
        %s384 = scalar_lea.vmem %s5, %s383
        %p385 = scmp.eq.s32.totalorder %s25, 0
        // Predicated region
        $region71: #{object_segmentation_prediction.2} parent=61 // pred_check
          %p386 = pneg %p385
        $region72: #{object_segmentation_prediction.2} parent=61 // pred_check_branch
          %388 = sbr.rel (%p386) target = $region74
        $region73: #{object_segmentation_prediction.2} parent=61 // pred_region
          %389 = vst [vmem:[%s359] sm:$0xff] 0.0
          %390 = vst [vmem:[%s367] sm:$0x7] 0.0
          %391 = vst [vmem:[%s375] sm:$0xf] 0.0
          %392 = vst [vmem:[%s384] sm:$0xff] 0.0
          %393 = vst [vmem:[%s384 + $0x8] sm:$0xf] 0.0
        $region74: #{object_segmentation_prediction.2} parent=61 // pred_fallthru
          _
        %v394 = vld [vmem:[%s292] sm:$0xff]
        %v395 = vunpack.c.0.s8 %v394
        %v396 = vunpack.c.1.s8 %v394
        %v397 = vunpack.c.2.s8 %v394
        %v398 = vunpack.c.3.s8 %v394
        %v399 = vand.u32 %v395, 255
        %v400 = vand.u32 %v396, 255
        %v401 = vand.u32 %v397, 255
        %v402 = vand.u32 %v398, 255
        %v403 = vcvt.s32.f32 %v399
        %v404 = vcvt.s32.f32 %v400
        %v405 = vcvt.s32.f32 %v401
        %v406 = vcvt.s32.f32 %v402
        %v407 = vmul.f32 %v403, 0.003921569
        %v408 = vmul.f32 %v404, 0.003921569
        %v409 = vmul.f32 %v405, 0.003921569
        %v410 = vmul.f32 %v406, 0.003921569
        %s411 = scalar_lea.vmem %s292, 8 [#allocation2]
        %v412 = vld [vmem:[%s411] sm:$0xff]
        %v413 = vunpack.c.0.s8 %v412
        %v414 = vunpack.c.1.s8 %v412
        %v415 = vunpack.c.2.s8 %v412
        %v416 = vunpack.c.3.s8 %v412
        %v417 = vand.u32 %v413, 255
        %v418 = vand.u32 %v414, 255
        %v419 = vand.u32 %v415, 255
        %v420 = vand.u32 %v416, 255
        %v421 = vcvt.s32.f32 %v417
        %v422 = vcvt.s32.f32 %v418
        %v423 = vcvt.s32.f32 %v419
        %v424 = vcvt.s32.f32 %v420
        %v425 = vmul.f32 %v421, 0.003921569
        %v426 = vmul.f32 %v422, 0.003921569
        %v427 = vmul.f32 %v423, 0.003921569
        %v428 = vmul.f32 %v424, 0.003921569
        %s429 = scalar_lea.vmem %s292, 16 [#allocation2]
        %v430 = vld [vmem:[%s429] sm:$0xff]
        %v431 = vunpack.c.0.s8 %v430
        %v432 = vunpack.c.1.s8 %v430
        %v433 = vunpack.c.2.s8 %v430
        %v434 = vunpack.c.3.s8 %v430
        %v435 = vand.u32 %v431, 255
        %v436 = vand.u32 %v432, 255
        %v437 = vand.u32 %v433, 255
        %v438 = vand.u32 %v434, 255
        %v439 = vcvt.s32.f32 %v435
        %v440 = vcvt.s32.f32 %v436
        %v441 = vcvt.s32.f32 %v437
        %v442 = vcvt.s32.f32 %v438
        %v443 = vmul.f32 %v439, 0.003921569
        %v444 = vmul.f32 %v440, 0.003921569
        %v445 = vmul.f32 %v441, 0.003921569
        %v446 = vmul.f32 %v442, 0.003921569
        %s447 = sld [smem:[#allocation3]]
        %v448 = vstv %s447
        %v449 = vmul.f32 %v448, %v407
        %v450 = vmul.f32 %v448, %v408
        %v451 = vmul.f32 %v448, %v409
        %v452 = vmul.f32 %v448, %v410
        %s453 = sld [smem:[#allocation3 + $0x1]]
        %v454 = vstv %s453
        %v455 = vmul.f32 %v454, %v425
        %v456 = vmul.f32 %v454, %v426
        %v457 = vmul.f32 %v454, %v427
        %v458 = vmul.f32 %v454, %v428
        %v459 = vadd.f32 %v449, %v455
        %v460 = vadd.f32 %v450, %v456
        %v461 = vadd.f32 %v451, %v457
        %v462 = vadd.f32 %v452, %v458
        %s463 = sld [smem:[#allocation3 + $0x2]]
        %v464 = vstv %s463
        %v465 = vmul.f32 %v464, %v443
        %v466 = vmul.f32 %v464, %v444
        %v467 = vmul.f32 %v464, %v445
        %v468 = vmul.f32 %v464, %v446
        %v469 = vadd.f32 %v459, %v465
        %v470 = vadd.f32 %v460, %v466
        %v471 = vadd.f32 %v461, %v467
        %v472 = vadd.f32 %v462, %v468
        %s473 = sld [smem:[#allocation3 + $0x3]]
        %v474 = vstv %s473
        %v475 = vadd.f32 %v469, %v474
        %v476 = vadd.f32 %v470, %v474
        %v477 = vadd.f32 %v471, %v474
        %v478 = vadd.f32 %v472, %v474
        %v479 = vmax.f32 %v475, 0.0
        %v480 = vmax.f32 %v476, 0.0
        %v481 = vmax.f32 %v477, 0.0
        %v482 = vmax.f32 %v478, 0.0
        %s483 = sld [smem:[#allocation3 + $0x80]]
        %v484 = vstv %s483
        %v485 = vmul.f32 %v484, %v407
        %v486 = vmul.f32 %v484, %v408
        %v487 = vmul.f32 %v484, %v409
        %v488 = vmul.f32 %v484, %v410
        %s489 = sld [smem:[#allocation3 + $0x81]]
        %v490 = vstv %s489
        %v491 = vmul.f32 %v490, %v425
        %v492 = vmul.f32 %v490, %v426
        %v493 = vmul.f32 %v490, %v427
        %v494 = vmul.f32 %v490, %v428
        %v495 = vadd.f32 %v485, %v491
        %v496 = vadd.f32 %v486, %v492
        %v497 = vadd.f32 %v487, %v493
        %v498 = vadd.f32 %v488, %v494
        %s499 = sld [smem:[#allocation3 + $0x82]]
        %v500 = vstv %s499
        %v501 = vmul.f32 %v500, %v443
        %v502 = vmul.f32 %v500, %v444
        %v503 = vmul.f32 %v500, %v445
        %v504 = vmul.f32 %v500, %v446
        %v505 = vadd.f32 %v495, %v501
        %v506 = vadd.f32 %v496, %v502
        %v507 = vadd.f32 %v497, %v503
        %v508 = vadd.f32 %v498, %v504
        %s509 = sld [smem:[#allocation3 + $0x83]]
        %v510 = vstv %s509
        %v511 = vadd.f32 %v505, %v510
        %v512 = vadd.f32 %v506, %v510
        %v513 = vadd.f32 %v507, %v510
        %v514 = vadd.f32 %v508, %v510
        %v515 = vmax.f32 %v511, 0.0
        %v516 = vmax.f32 %v512, 0.0
        %v517 = vmax.f32 %v513, 0.0
        %v518 = vmax.f32 %v514, 0.0
        %s519 = sld [smem:[#allocation3 + $0x100]]
        %v520 = vstv %s519
        %v521 = vmul.f32 %v520, %v407
        %v522 = vmul.f32 %v520, %v408
        %v523 = vmul.f32 %v520, %v409
        %v524 = vmul.f32 %v520, %v410
        %s525 = sld [smem:[#allocation3 + $0x101]]
        %v526 = vstv %s525
        %v527 = vmul.f32 %v526, %v425
        %v528 = vmul.f32 %v526, %v426
        %v529 = vmul.f32 %v526, %v427
        %v530 = vmul.f32 %v526, %v428
        %v531 = vadd.f32 %v521, %v527
        %v532 = vadd.f32 %v522, %v528
        %v533 = vadd.f32 %v523, %v529
        %v534 = vadd.f32 %v524, %v530
        %s535 = sld [smem:[#allocation3 + $0x102]]
        %v536 = vstv %s535
        %v537 = vmul.f32 %v536, %v443
        %v538 = vmul.f32 %v536, %v444
        %v539 = vmul.f32 %v536, %v445
        %v540 = vmul.f32 %v536, %v446
        %v541 = vadd.f32 %v531, %v537
        %v542 = vadd.f32 %v532, %v538
        %v543 = vadd.f32 %v533, %v539
        %v544 = vadd.f32 %v534, %v540
        %s545 = sld [smem:[#allocation3 + $0x103]]
        %v546 = vstv %s545
        %v547 = vadd.f32 %v541, %v546
        %v548 = vadd.f32 %v542, %v546
        %v549 = vadd.f32 %v543, %v546
        %v550 = vadd.f32 %v544, %v546
        %v551 = vmax.f32 %v547, 0.0
        %v552 = vmax.f32 %v548, 0.0
        %v553 = vmax.f32 %v549, 0.0
        %v554 = vmax.f32 %v550, 0.0
        %s555 = sld [smem:[#allocation3 + $0x180]]
        %v556 = vstv %s555
        %v557 = vmul.f32 %v556, %v407
        %v558 = vmul.f32 %v556, %v408
        %v559 = vmul.f32 %v556, %v409
        %v560 = vmul.f32 %v556, %v410
        %s561 = sld [smem:[#allocation3 + $0x181]]
        %v562 = vstv %s561
        %v563 = vmul.f32 %v562, %v425
        %v564 = vmul.f32 %v562, %v426
        %v565 = vmul.f32 %v562, %v427
        %v566 = vmul.f32 %v562, %v428
        %v567 = vadd.f32 %v557, %v563
        %v568 = vadd.f32 %v558, %v564
        %v569 = vadd.f32 %v559, %v565
        %v570 = vadd.f32 %v560, %v566
        %s571 = sld [smem:[#allocation3 + $0x182]]
        %v572 = vstv %s571
        %v573 = vmul.f32 %v572, %v443
        %v574 = vmul.f32 %v572, %v444
        %v575 = vmul.f32 %v572, %v445
        %v576 = vmul.f32 %v572, %v446
        %v577 = vadd.f32 %v567, %v573
        %v578 = vadd.f32 %v568, %v574
        %v579 = vadd.f32 %v569, %v575
        %v580 = vadd.f32 %v570, %v576
        %s581 = sld [smem:[#allocation3 + $0x183]]
        %v582 = vstv %s581
        %v583 = vadd.f32 %v577, %v582
        %v584 = vadd.f32 %v578, %v582
        %v585 = vadd.f32 %v579, %v582
        %v586 = vadd.f32 %v580, %v582
        %v587 = vmax.f32 %v583, 0.0
        %v588 = vmax.f32 %v584, 0.0
        %v589 = vmax.f32 %v585, 0.0
        %v590 = vmax.f32 %v586, 0.0
        %s591 = sld [smem:[#allocation3 + $0x200]]
        %v592 = vstv %s591
        %v593 = vmul.f32 %v592, %v407
        %v594 = vmul.f32 %v592, %v408
        %v595 = vmul.f32 %v592, %v409
        %v596 = vmul.f32 %v592, %v410
        %s597 = sld [smem:[#allocation3 + $0x201]]
        %v598 = vstv %s597
        %v599 = vmul.f32 %v598, %v425
        %v600 = vmul.f32 %v598, %v426
        %v601 = vmul.f32 %v598, %v427
        %v602 = vmul.f32 %v598, %v428
        %v603 = vadd.f32 %v593, %v599
        %v604 = vadd.f32 %v594, %v600
        %v605 = vadd.f32 %v595, %v601
        %v606 = vadd.f32 %v596, %v602
        %s607 = sld [smem:[#allocation3 + $0x202]]
        %v608 = vstv %s607
        %v609 = vmul.f32 %v608, %v443
        %v610 = vmul.f32 %v608, %v444
        %v611 = vmul.f32 %v608, %v445
        %v612 = vmul.f32 %v608, %v446
        %v613 = vadd.f32 %v603, %v609
        %v614 = vadd.f32 %v604, %v610
        %v615 = vadd.f32 %v605, %v611
        %v616 = vadd.f32 %v606, %v612
        %s617 = sld [smem:[#allocation3 + $0x203]]
        %v618 = vstv %s617
        %v619 = vadd.f32 %v613, %v618
        %v620 = vadd.f32 %v614, %v618
        %v621 = vadd.f32 %v615, %v618
        %v622 = vadd.f32 %v616, %v618
        %v623 = vmax.f32 %v619, 0.0
        %v624 = vmax.f32 %v620, 0.0
        %v625 = vmax.f32 %v621, 0.0
        %v626 = vmax.f32 %v622, 0.0
        %s627 = sld [smem:[#allocation3 + $0x280]]
        %v628 = vstv %s627
        %v629 = vmul.f32 %v628, %v407
        %v630 = vmul.f32 %v628, %v408
        %v631 = vmul.f32 %v628, %v409
        %v632 = vmul.f32 %v628, %v410
        %s633 = sld [smem:[#allocation3 + $0x281]]
        %v634 = vstv %s633
        %v635 = vmul.f32 %v634, %v425
        %v636 = vmul.f32 %v634, %v426
        %v637 = vmul.f32 %v634, %v427
        %v638 = vmul.f32 %v634, %v428
        %v639 = vadd.f32 %v629, %v635
        %v640 = vadd.f32 %v630, %v636
        %v641 = vadd.f32 %v631, %v637
        %v642 = vadd.f32 %v632, %v638
        %s643 = sld [smem:[#allocation3 + $0x282]]
        %v644 = vstv %s643
        %v645 = vmul.f32 %v644, %v443
        %v646 = vmul.f32 %v644, %v444
        %v647 = vmul.f32 %v644, %v445
        %v648 = vmul.f32 %v644, %v446
        %v649 = vadd.f32 %v639, %v645
        %v650 = vadd.f32 %v640, %v646
        %v651 = vadd.f32 %v641, %v647
        %v652 = vadd.f32 %v642, %v648
        %s653 = sld [smem:[#allocation3 + $0x283]]
        %v654 = vstv %s653
        %v655 = vadd.f32 %v649, %v654
        %v656 = vadd.f32 %v650, %v654
        %v657 = vadd.f32 %v651, %v654
        %v658 = vadd.f32 %v652, %v654
        %v659 = vmax.f32 %v655, 0.0
        %v660 = vmax.f32 %v656, 0.0
        %v661 = vmax.f32 %v657, 0.0
        %v662 = vmax.f32 %v658, 0.0
        %s663 = sld [smem:[#allocation3 + $0x300]]
        %v664 = vstv %s663
        %v665 = vmul.f32 %v664, %v407
        %v666 = vmul.f32 %v664, %v408
        %v667 = vmul.f32 %v664, %v409
        %v668 = vmul.f32 %v664, %v410
        %s669 = sld [smem:[#allocation3 + $0x301]]
        %v670 = vstv %s669
        %v671 = vmul.f32 %v670, %v425
        %v672 = vmul.f32 %v670, %v426
        %v673 = vmul.f32 %v670, %v427
        %v674 = vmul.f32 %v670, %v428
        %v675 = vadd.f32 %v665, %v671
        %v676 = vadd.f32 %v666, %v672
        %v677 = vadd.f32 %v667, %v673
        %v678 = vadd.f32 %v668, %v674
        %s679 = sld [smem:[#allocation3 + $0x302]]
        %v680 = vstv %s679
        %v681 = vmul.f32 %v680, %v443
        %v682 = vmul.f32 %v680, %v444
        %v683 = vmul.f32 %v680, %v445
        %v684 = vmul.f32 %v680, %v446
        %v685 = vadd.f32 %v675, %v681
        %v686 = vadd.f32 %v676, %v682
        %v687 = vadd.f32 %v677, %v683
        %v688 = vadd.f32 %v678, %v684
        %s689 = sld [smem:[#allocation3 + $0x303]]
        %v690 = vstv %s689
        %v691 = vadd.f32 %v685, %v690
        %v692 = vadd.f32 %v686, %v690
        %v693 = vadd.f32 %v687, %v690
        %v694 = vadd.f32 %v688, %v690
        %v695 = vmax.f32 %v691, 0.0
        %v696 = vmax.f32 %v692, 0.0
        %v697 = vmax.f32 %v693, 0.0
        %v698 = vmax.f32 %v694, 0.0
        %s699 = sld [smem:[#allocation3 + $0x380]]
        %v700 = vstv %s699
        %v701 = vmul.f32 %v700, %v407
        %v702 = vmul.f32 %v700, %v408
        %v703 = vmul.f32 %v700, %v409
        %v704 = vmul.f32 %v700, %v410
        %s705 = sld [smem:[#allocation3 + $0x381]]
        %v706 = vstv %s705
        %v707 = vmul.f32 %v706, %v425
        %v708 = vmul.f32 %v706, %v426
        %v709 = vmul.f32 %v706, %v427
        %v710 = vmul.f32 %v706, %v428
        %v711 = vadd.f32 %v701, %v707
        %v712 = vadd.f32 %v702, %v708
        %v713 = vadd.f32 %v703, %v709
        %v714 = vadd.f32 %v704, %v710
        %s715 = sld [smem:[#allocation3 + $0x382]]
        %v716 = vstv %s715
        %v717 = vmul.f32 %v716, %v443
        %v718 = vmul.f32 %v716, %v444
        %v719 = vmul.f32 %v716, %v445
        %v720 = vmul.f32 %v716, %v446
        %v721 = vadd.f32 %v711, %v717
        %v722 = vadd.f32 %v712, %v718
        %v723 = vadd.f32 %v713, %v719
        %v724 = vadd.f32 %v714, %v720
        %s725 = sld [smem:[#allocation3 + $0x383]]
        %v726 = vstv %s725
        %v727 = vadd.f32 %v721, %v726
        %v728 = vadd.f32 %v722, %v726
        %v729 = vadd.f32 %v723, %v726
        %v730 = vadd.f32 %v724, %v726
        %v731 = vmax.f32 %v727, 0.0
        %v732 = vmax.f32 %v728, 0.0
        %v733 = vmax.f32 %v729, 0.0
        %v734 = vmax.f32 %v730, 0.0
        %s735 = sld [smem:[#allocation3 + $0x400]]
        %v736 = vstv %s735
        %v737 = vmul.f32 %v736, %v479
        %v738 = vmul.f32 %v736, %v480
        %v739 = vmul.f32 %v736, %v481
        %v740 = vmul.f32 %v736, %v482
        %s741 = sld [smem:[#allocation3 + $0x401]]
        %v742 = vstv %s741
        %v743 = vmul.f32 %v742, %v515
        %v744 = vmul.f32 %v742, %v516
        %v745 = vmul.f32 %v742, %v517
        %v746 = vmul.f32 %v742, %v518
        %v747 = vadd.f32 %v737, %v743
        %v748 = vadd.f32 %v738, %v744
        %v749 = vadd.f32 %v739, %v745
        %v750 = vadd.f32 %v740, %v746
        %s751 = sld [smem:[#allocation3 + $0x402]]
        %v752 = vstv %s751
        %v753 = vmul.f32 %v752, %v551
        %v754 = vmul.f32 %v752, %v552
        %v755 = vmul.f32 %v752, %v553
        %v756 = vmul.f32 %v752, %v554
        %v757 = vadd.f32 %v747, %v753
        %v758 = vadd.f32 %v748, %v754
        %v759 = vadd.f32 %v749, %v755
        %v760 = vadd.f32 %v750, %v756
        %s761 = sld [smem:[#allocation3 + $0x403]]
        %v762 = vstv %s761
        %v763 = vmul.f32 %v762, %v587
        %v764 = vmul.f32 %v762, %v588
        %v765 = vmul.f32 %v762, %v589
        %v766 = vmul.f32 %v762, %v590
        %v767 = vadd.f32 %v757, %v763
        %v768 = vadd.f32 %v758, %v764
        %v769 = vadd.f32 %v759, %v765
        %v770 = vadd.f32 %v760, %v766
        %s771 = sld [smem:[#allocation3 + $0x404]]
        %v772 = vstv %s771
        %v773 = vmul.f32 %v772, %v623
        %v774 = vmul.f32 %v772, %v624
        %v775 = vmul.f32 %v772, %v625
        %v776 = vmul.f32 %v772, %v626
        %v777 = vadd.f32 %v767, %v773
        %v778 = vadd.f32 %v768, %v774
        %v779 = vadd.f32 %v769, %v775
        %v780 = vadd.f32 %v770, %v776
        %s781 = sld [smem:[#allocation3 + $0x405]]
        %v782 = vstv %s781
        %v783 = vmul.f32 %v782, %v659
        %v784 = vmul.f32 %v782, %v660
        %v785 = vmul.f32 %v782, %v661
        %v786 = vmul.f32 %v782, %v662
        %v787 = vadd.f32 %v777, %v783
        %v788 = vadd.f32 %v778, %v784
        %v789 = vadd.f32 %v779, %v785
        %v790 = vadd.f32 %v780, %v786
        %s791 = sld [smem:[#allocation3 + $0x406]]
        %v792 = vstv %s791
        %v793 = vmul.f32 %v792, %v695
        %v794 = vmul.f32 %v792, %v696
        %v795 = vmul.f32 %v792, %v697
        %v796 = vmul.f32 %v792, %v698
        %v797 = vadd.f32 %v787, %v793
        %v798 = vadd.f32 %v788, %v794
        %v799 = vadd.f32 %v789, %v795
        %v800 = vadd.f32 %v790, %v796
        %s801 = sld [smem:[#allocation3 + $0x407]]
        %v802 = vstv %s801
        %v803 = vmul.f32 %v802, %v731
        %v804 = vmul.f32 %v802, %v732
        %v805 = vmul.f32 %v802, %v733
        %v806 = vmul.f32 %v802, %v734
        %v807 = vadd.f32 %v797, %v803
        %v808 = vadd.f32 %v798, %v804
        %v809 = vadd.f32 %v799, %v805
        %v810 = vadd.f32 %v800, %v806
        %s811 = sld [smem:[#allocation3 + $0x408]]
        %v812 = vstv %s811
        %v813 = vadd.f32 %v807, %v812
        %v814 = vadd.f32 %v808, %v812
        %v815 = vadd.f32 %v809, %v812
        %v816 = vadd.f32 %v810, %v812
        %vm817 = vcmp.gt.f32.partialorder %v813, 0.0
        %vm818 = vcmp.gt.f32.partialorder %v814, 0.0
        %vm819 = vcmp.gt.f32.partialorder %v815, 0.0
        %vm820 = vcmp.gt.f32.partialorder %v816, 0.0
        %v821 = vsel %vm817, 1, 0
        %v822 = vsel %vm818, 1, 0
        %v823 = vsel %vm819, 1, 0
        %v824 = vsel %vm820, 1, 0
        %v825 = vcvt.s32.f32 %v821
        %v826 = vcvt.s32.f32 %v822
        %v827 = vcvt.s32.f32 %v823
        %v828 = vcvt.s32.f32 %v824
        %s829 = sld [smem:[#allocation3 + $0x480]]
        %v830 = vstv %s829
        %v831 = vmul.f32 %v830, %v479
        %v832 = vmul.f32 %v830, %v480
        %v833 = vmul.f32 %v830, %v481
        %v834 = vmul.f32 %v830, %v482
        %s835 = sld [smem:[#allocation3 + $0x481]]
        %v836 = vstv %s835
        %v837 = vmul.f32 %v836, %v515
        %v838 = vmul.f32 %v836, %v516
        %v839 = vmul.f32 %v836, %v517
        %v840 = vmul.f32 %v836, %v518
        %v841 = vadd.f32 %v831, %v837
        %v842 = vadd.f32 %v832, %v838
        %v843 = vadd.f32 %v833, %v839
        %v844 = vadd.f32 %v834, %v840
        %s845 = sld [smem:[#allocation3 + $0x482]]
        %v846 = vstv %s845
        %v847 = vmul.f32 %v846, %v551
        %v848 = vmul.f32 %v846, %v552
        %v849 = vmul.f32 %v846, %v553
        %v850 = vmul.f32 %v846, %v554
        %v851 = vadd.f32 %v841, %v847
        %v852 = vadd.f32 %v842, %v848
        %v853 = vadd.f32 %v843, %v849
        %v854 = vadd.f32 %v844, %v850
        %s855 = sld [smem:[#allocation3 + $0x483]]
        %v856 = vstv %s855
        %v857 = vmul.f32 %v856, %v587
        %v858 = vmul.f32 %v856, %v588
        %v859 = vmul.f32 %v856, %v589
        %v860 = vmul.f32 %v856, %v590
        %v861 = vadd.f32 %v851, %v857
        %v862 = vadd.f32 %v852, %v858
        %v863 = vadd.f32 %v853, %v859
        %v864 = vadd.f32 %v854, %v860
        %s865 = sld [smem:[#allocation3 + $0x484]]
        %v866 = vstv %s865
        %v867 = vmul.f32 %v866, %v623
        %v868 = vmul.f32 %v866, %v624
        %v869 = vmul.f32 %v866, %v625
        %v870 = vmul.f32 %v866, %v626
        %v871 = vadd.f32 %v861, %v867
        %v872 = vadd.f32 %v862, %v868
        %v873 = vadd.f32 %v863, %v869
        %v874 = vadd.f32 %v864, %v870
        %s875 = sld [smem:[#allocation3 + $0x485]]
        %v876 = vstv %s875
        %v877 = vmul.f32 %v876, %v659
        %v878 = vmul.f32 %v876, %v660
        %v879 = vmul.f32 %v876, %v661
        %v880 = vmul.f32 %v876, %v662
        %v881 = vadd.f32 %v871, %v877
        %v882 = vadd.f32 %v872, %v878
        %v883 = vadd.f32 %v873, %v879
        %v884 = vadd.f32 %v874, %v880
        %s885 = sld [smem:[#allocation3 + $0x486]]
        %v886 = vstv %s885
        %v887 = vmul.f32 %v886, %v695
        %v888 = vmul.f32 %v886, %v696
        %v889 = vmul.f32 %v886, %v697
        %v890 = vmul.f32 %v886, %v698
        %v891 = vadd.f32 %v881, %v887
        %v892 = vadd.f32 %v882, %v888
        %v893 = vadd.f32 %v883, %v889
        %v894 = vadd.f32 %v884, %v890
        %s895 = sld [smem:[#allocation3 + $0x487]]
        %v896 = vstv %s895
        %v897 = vmul.f32 %v896, %v731
        %v898 = vmul.f32 %v896, %v732
        %v899 = vmul.f32 %v896, %v733
        %v900 = vmul.f32 %v896, %v734
        %v901 = vadd.f32 %v891, %v897
        %v902 = vadd.f32 %v892, %v898
        %v903 = vadd.f32 %v893, %v899
        %v904 = vadd.f32 %v894, %v900
        %s905 = sld [smem:[#allocation3 + $0x488]]
        %v906 = vstv %s905
        %v907 = vadd.f32 %v901, %v906
        %v908 = vadd.f32 %v902, %v906
        %v909 = vadd.f32 %v903, %v906
        %v910 = vadd.f32 %v904, %v906
        %vm911 = vcmp.gt.f32.partialorder %v907, 0.0
        %vm912 = vcmp.gt.f32.partialorder %v908, 0.0
        %vm913 = vcmp.gt.f32.partialorder %v909, 0.0
        %vm914 = vcmp.gt.f32.partialorder %v910, 0.0
        %v915 = vsel %vm911, 1, 0
        %v916 = vsel %vm912, 1, 0
        %v917 = vsel %vm913, 1, 0
        %v918 = vsel %vm914, 1, 0
        %v919 = vcvt.s32.f32 %v915
        %v920 = vcvt.s32.f32 %v916
        %v921 = vcvt.s32.f32 %v917
        %v922 = vcvt.s32.f32 %v918
        %s923 = sld [smem:[#allocation3 + $0x500]]
        %v924 = vstv %s923
        %v925 = vmul.f32 %v924, %v479
        %v926 = vmul.f32 %v924, %v480
        %v927 = vmul.f32 %v924, %v481
        %v928 = vmul.f32 %v924, %v482
        %s929 = sld [smem:[#allocation3 + $0x501]]
        %v930 = vstv %s929
        %v931 = vmul.f32 %v930, %v515
        %v932 = vmul.f32 %v930, %v516
        %v933 = vmul.f32 %v930, %v517
        %v934 = vmul.f32 %v930, %v518
        %v935 = vadd.f32 %v925, %v931
        %v936 = vadd.f32 %v926, %v932
        %v937 = vadd.f32 %v927, %v933
        %v938 = vadd.f32 %v928, %v934
        %s939 = sld [smem:[#allocation3 + $0x502]]
        %v940 = vstv %s939
        %v941 = vmul.f32 %v940, %v551
        %v942 = vmul.f32 %v940, %v552
        %v943 = vmul.f32 %v940, %v553
        %v944 = vmul.f32 %v940, %v554
        %v945 = vadd.f32 %v935, %v941
        %v946 = vadd.f32 %v936, %v942
        %v947 = vadd.f32 %v937, %v943
        %v948 = vadd.f32 %v938, %v944
        %s949 = sld [smem:[#allocation3 + $0x503]]
        %v950 = vstv %s949
        %v951 = vmul.f32 %v950, %v587
        %v952 = vmul.f32 %v950, %v588
        %v953 = vmul.f32 %v950, %v589
        %v954 = vmul.f32 %v950, %v590
        %v955 = vadd.f32 %v945, %v951
        %v956 = vadd.f32 %v946, %v952
        %v957 = vadd.f32 %v947, %v953
        %v958 = vadd.f32 %v948, %v954
        %s959 = sld [smem:[#allocation3 + $0x504]]
        %v960 = vstv %s959
        %v961 = vmul.f32 %v960, %v623
        %v962 = vmul.f32 %v960, %v624
        %v963 = vmul.f32 %v960, %v625
        %v964 = vmul.f32 %v960, %v626
        %v965 = vadd.f32 %v955, %v961
        %v966 = vadd.f32 %v956, %v962
        %v967 = vadd.f32 %v957, %v963
        %v968 = vadd.f32 %v958, %v964
        %s969 = sld [smem:[#allocation3 + $0x505]]
        %v970 = vstv %s969
        %v971 = vmul.f32 %v970, %v659
        %v972 = vmul.f32 %v970, %v660
        %v973 = vmul.f32 %v970, %v661
        %v974 = vmul.f32 %v970, %v662
        %v975 = vadd.f32 %v965, %v971
        %v976 = vadd.f32 %v966, %v972
        %v977 = vadd.f32 %v967, %v973
        %v978 = vadd.f32 %v968, %v974
        %s979 = sld [smem:[#allocation3 + $0x506]]
        %v980 = vstv %s979
        %v981 = vmul.f32 %v980, %v695
        %v982 = vmul.f32 %v980, %v696
        %v983 = vmul.f32 %v980, %v697
        %v984 = vmul.f32 %v980, %v698
        %v985 = vadd.f32 %v975, %v981
        %v986 = vadd.f32 %v976, %v982
        %v987 = vadd.f32 %v977, %v983
        %v988 = vadd.f32 %v978, %v984
        %s989 = sld [smem:[#allocation3 + $0x507]]
        %v990 = vstv %s989
        %v991 = vmul.f32 %v990, %v731
        %v992 = vmul.f32 %v990, %v732
        %v993 = vmul.f32 %v990, %v733
        %v994 = vmul.f32 %v990, %v734
        %v995 = vadd.f32 %v985, %v991
        %v996 = vadd.f32 %v986, %v992
        %v997 = vadd.f32 %v987, %v993
        %v998 = vadd.f32 %v988, %v994
        %s999 = sld [smem:[#allocation3 + $0x508]]
        %v1000 = vstv %s999
        %v1001 = vadd.f32 %v995, %v1000
        %v1002 = vadd.f32 %v996, %v1000
        %v1003 = vadd.f32 %v997, %v1000
        %v1004 = vadd.f32 %v998, %v1000
        %vm1005 = vcmp.gt.f32.partialorder %v1001, 0.0
        %vm1006 = vcmp.gt.f32.partialorder %v1002, 0.0
        %vm1007 = vcmp.gt.f32.partialorder %v1003, 0.0
        %vm1008 = vcmp.gt.f32.partialorder %v1004, 0.0
        %v1009 = vsel %vm1005, 1, 0
        %v1010 = vsel %vm1006, 1, 0
        %v1011 = vsel %vm1007, 1, 0
        %v1012 = vsel %vm1008, 1, 0
        %v1013 = vcvt.s32.f32 %v1009
        %v1014 = vcvt.s32.f32 %v1010
        %v1015 = vcvt.s32.f32 %v1011
        %v1016 = vcvt.s32.f32 %v1012
        %s1017 = sld [smem:[#allocation3 + $0x580]]
        %v1018 = vstv %s1017
        %v1019 = vmul.f32 %v1018, %v479
        %v1020 = vmul.f32 %v1018, %v480
        %v1021 = vmul.f32 %v1018, %v481
        %v1022 = vmul.f32 %v1018, %v482
        %s1023 = sld [smem:[#allocation3 + $0x581]]
        %v1024 = vstv %s1023
        %v1025 = vmul.f32 %v1024, %v515
        %v1026 = vmul.f32 %v1024, %v516
        %v1027 = vmul.f32 %v1024, %v517
        %v1028 = vmul.f32 %v1024, %v518
        %v1029 = vadd.f32 %v1019, %v1025
        %v1030 = vadd.f32 %v1020, %v1026
        %v1031 = vadd.f32 %v1021, %v1027
        %v1032 = vadd.f32 %v1022, %v1028
        %s1033 = sld [smem:[#allocation3 + $0x582]]
        %v1034 = vstv %s1033
        %v1035 = vmul.f32 %v1034, %v551
        %v1036 = vmul.f32 %v1034, %v552
        %v1037 = vmul.f32 %v1034, %v553
        %v1038 = vmul.f32 %v1034, %v554
        %v1039 = vadd.f32 %v1029, %v1035
        %v1040 = vadd.f32 %v1030, %v1036
        %v1041 = vadd.f32 %v1031, %v1037
        %v1042 = vadd.f32 %v1032, %v1038
        %s1043 = sld [smem:[#allocation3 + $0x583]]
        %v1044 = vstv %s1043
        %v1045 = vmul.f32 %v1044, %v587
        %v1046 = vmul.f32 %v1044, %v588
        %v1047 = vmul.f32 %v1044, %v589
        %v1048 = vmul.f32 %v1044, %v590
        %v1049 = vadd.f32 %v1039, %v1045
        %v1050 = vadd.f32 %v1040, %v1046
        %v1051 = vadd.f32 %v1041, %v1047
        %v1052 = vadd.f32 %v1042, %v1048
        %s1053 = sld [smem:[#allocation3 + $0x584]]
        %v1054 = vstv %s1053
        %v1055 = vmul.f32 %v1054, %v623
        %v1056 = vmul.f32 %v1054, %v624
        %v1057 = vmul.f32 %v1054, %v625
        %v1058 = vmul.f32 %v1054, %v626
        %v1059 = vadd.f32 %v1049, %v1055
        %v1060 = vadd.f32 %v1050, %v1056
        %v1061 = vadd.f32 %v1051, %v1057
        %v1062 = vadd.f32 %v1052, %v1058
        %s1063 = sld [smem:[#allocation3 + $0x585]]
        %v1064 = vstv %s1063
        %v1065 = vmul.f32 %v1064, %v659
        %v1066 = vmul.f32 %v1064, %v660
        %v1067 = vmul.f32 %v1064, %v661
        %v1068 = vmul.f32 %v1064, %v662
        %v1069 = vadd.f32 %v1059, %v1065
        %v1070 = vadd.f32 %v1060, %v1066
        %v1071 = vadd.f32 %v1061, %v1067
        %v1072 = vadd.f32 %v1062, %v1068
        %s1073 = sld [smem:[#allocation3 + $0x586]]
        %v1074 = vstv %s1073
        %v1075 = vmul.f32 %v1074, %v695
        %v1076 = vmul.f32 %v1074, %v696
        %v1077 = vmul.f32 %v1074, %v697
        %v1078 = vmul.f32 %v1074, %v698
        %v1079 = vadd.f32 %v1069, %v1075
        %v1080 = vadd.f32 %v1070, %v1076
        %v1081 = vadd.f32 %v1071, %v1077
        %v1082 = vadd.f32 %v1072, %v1078
        %s1083 = sld [smem:[#allocation3 + $0x587]]
        %v1084 = vstv %s1083
        %v1085 = vmul.f32 %v1084, %v731
        %v1086 = vmul.f32 %v1084, %v732
        %v1087 = vmul.f32 %v1084, %v733
        %v1088 = vmul.f32 %v1084, %v734
        %v1089 = vadd.f32 %v1079, %v1085
        %v1090 = vadd.f32 %v1080, %v1086
        %v1091 = vadd.f32 %v1081, %v1087
        %v1092 = vadd.f32 %v1082, %v1088
        %s1093 = sld [smem:[#allocation3 + $0x588]]
        %v1094 = vstv %s1093
        %v1095 = vadd.f32 %v1089, %v1094
        %v1096 = vadd.f32 %v1090, %v1094
        %v1097 = vadd.f32 %v1091, %v1094
        %v1098 = vadd.f32 %v1092, %v1094
        %vm1099 = vcmp.gt.f32.partialorder %v1095, 0.0
        %vm1100 = vcmp.gt.f32.partialorder %v1096, 0.0
        %vm1101 = vcmp.gt.f32.partialorder %v1097, 0.0
        %vm1102 = vcmp.gt.f32.partialorder %v1098, 0.0
        %v1103 = vsel %vm1099, 1, 0
        %v1104 = vsel %vm1100, 1, 0
        %v1105 = vsel %vm1101, 1, 0
        %v1106 = vsel %vm1102, 1, 0
        %v1107 = vcvt.s32.f32 %v1103
        %v1108 = vcvt.s32.f32 %v1104
        %v1109 = vcvt.s32.f32 %v1105
        %v1110 = vcvt.s32.f32 %v1106
        %s1111 = smul.u32 %s24, 2
        %s1112 = sadd.s32 %s1111, %s25
        %s1113 = smul.u32 %s1112, 32
        %v1114 = vlaneseq
        %v1115 = vshrl.u32 %v1114, 7
        %v1116 = vadd.s32 %v1115, 8
        %v1117 = vadd.s32 %v1115, 16
        %v1118 = vadd.s32 %v1115, 24
        %v1119 = vstv %s1113
        %v1120 = vadd.s32 %v1119, %v1115
        %v1121 = vadd.s32 %v1119, %v1116
        %v1122 = vadd.s32 %v1119, %v1117
        %v1123 = vadd.s32 %v1119, %v1118
        %v1124 = vlaneseq
        %v1125 = vand.u32 %v1124, 127
        %v1126 = vmul.u32 %v1120, 128
        %v1127 = vmul.u32 %v1121, 128
        %v1128 = vmul.u32 %v1122, 128
        %v1129 = vmul.u32 %v1123, 128
        %v1130 = vadd.s32 %v1126, %v1125
        %v1131 = vadd.s32 %v1127, %v1125
        %v1132 = vadd.s32 %v1128, %v1125
        %v1133 = vadd.s32 %v1129, %v1125
        %vm1134 = vcmp.lt.s32.totalorder %v1130, 15360
        %vm1135 = vcmp.lt.s32.totalorder %v1131, 15360
        %vm1136 = vcmp.lt.s32.totalorder %v1132, 15360
        %vm1137 = vcmp.lt.s32.totalorder %v1133, 15360
        %v1138 = vsel %vm1134, 1, 0
        %v1139 = vsel %vm1135, 1, 0
        %v1140 = vsel %vm1136, 1, 0
        %v1141 = vsel %vm1137, 1, 0
        %v1142 = vcvt.s32.f32 %v1138
        %v1143 = vcvt.s32.f32 %v1139
        %v1144 = vcvt.s32.f32 %v1140
        %v1145 = vcvt.s32.f32 %v1141
        %v1146 = vmul.f32 %v479, %v1142
        %v1147 = vmul.f32 %v480, %v1143
        %v1148 = vmul.f32 %v481, %v1144
        %v1149 = vmul.f32 %v482, %v1145
        %v1150 = vmul.f32 %v515, %v1142
        %v1151 = vmul.f32 %v516, %v1143
        %v1152 = vmul.f32 %v517, %v1144
        %v1153 = vmul.f32 %v518, %v1145
        %v1154 = vmul.f32 %v551, %v1142
        %v1155 = vmul.f32 %v552, %v1143
        %v1156 = vmul.f32 %v553, %v1144
        %v1157 = vmul.f32 %v554, %v1145
        %v1158 = vmul.f32 %v587, %v1142
        %v1159 = vmul.f32 %v588, %v1143
        %v1160 = vmul.f32 %v589, %v1144
        %v1161 = vmul.f32 %v590, %v1145
        %v1162 = vmul.f32 %v623, %v1142
        %v1163 = vmul.f32 %v624, %v1143
        %v1164 = vmul.f32 %v625, %v1144
        %v1165 = vmul.f32 %v626, %v1145
        %v1166 = vmul.f32 %v659, %v1142
        %v1167 = vmul.f32 %v660, %v1143
        %v1168 = vmul.f32 %v661, %v1144
        %v1169 = vmul.f32 %v662, %v1145
        %v1170 = vmul.f32 %v695, %v1142
        %v1171 = vmul.f32 %v696, %v1143
        %v1172 = vmul.f32 %v697, %v1144
        %v1173 = vmul.f32 %v698, %v1145
        %v1174 = vmul.f32 %v731, %v1142
        %v1175 = vmul.f32 %v732, %v1143
        %v1176 = vmul.f32 %v733, %v1144
        %v1177 = vmul.f32 %v734, %v1145
        %v1178 = vmul.f32 %v825, %v1142
        %v1179 = vmul.f32 %v826, %v1143
        %v1180 = vmul.f32 %v827, %v1144
        %v1181 = vmul.f32 %v828, %v1145
        %v1182 = vmul.f32 %v919, %v1142
        %v1183 = vmul.f32 %v920, %v1143
        %v1184 = vmul.f32 %v921, %v1144
        %v1185 = vmul.f32 %v922, %v1145
        %v1186 = vmul.f32 %v1013, %v1142
        %v1187 = vmul.f32 %v1014, %v1143
        %v1188 = vmul.f32 %v1015, %v1144
        %v1189 = vmul.f32 %v1016, %v1145
        %v1190 = vmul.f32 %v1107, %v1142
        %v1191 = vmul.f32 %v1108, %v1143
        %v1192 = vmul.f32 %v1109, %v1144
        %v1193 = vmul.f32 %v1110, %v1145
        %v1194 = vld [vmem:[%s359] sm:$0xff]
        %v1195 = vadd.f32 %v1146, %v1147
        %v1196 = vadd.f32 %v1195, %v1148
        %v1197 = vadd.f32 %v1196, %v1149
        %v1198 = vrot.slane %v1197, 4
        %v1199 = vadd.f32 %v1197, %v1198
        %v1200 = vrot.slane %v1199, 2
        %v1201 = vadd.f32 %v1199, %v1200
        %v1202 = vrot.slane %v1201, 1
        %v1203 = vadd.f32 %v1201, %v1202
        %v1204 = vadd.f32 %v1150, %v1151
        %v1205 = vadd.f32 %v1204, %v1152
        %v1206 = vadd.f32 %v1205, %v1153
        %v1207 = vrot.slane %v1206, 4
        %v1208 = vadd.f32 %v1206, %v1207
        %v1209 = vrot.slane %v1208, 2
        %v1210 = vadd.f32 %v1208, %v1209
        %v1211 = vrot.slane %v1210, 1
        %v1212 = vadd.f32 %v1210, %v1211
        %v1213 = vadd.f32 %v1154, %v1155
        %v1214 = vadd.f32 %v1213, %v1156
        %v1215 = vadd.f32 %v1214, %v1157
        %v1216 = vrot.slane %v1215, 4
        %v1217 = vadd.f32 %v1215, %v1216
        %v1218 = vrot.slane %v1217, 2
        %v1219 = vadd.f32 %v1217, %v1218
        %v1220 = vrot.slane %v1219, 1
        %v1221 = vadd.f32 %v1219, %v1220
        %v1222 = vadd.f32 %v1158, %v1159
        %v1223 = vadd.f32 %v1222, %v1160
        %v1224 = vadd.f32 %v1223, %v1161
        %v1225 = vrot.slane %v1224, 4
        %v1226 = vadd.f32 %v1224, %v1225
        %v1227 = vrot.slane %v1226, 2
        %v1228 = vadd.f32 %v1226, %v1227
        %v1229 = vrot.slane %v1228, 1
        %v1230 = vadd.f32 %v1228, %v1229
        %v1231 = vadd.f32 %v1162, %v1163
        %v1232 = vadd.f32 %v1231, %v1164
        %v1233 = vadd.f32 %v1232, %v1165
        %v1234 = vrot.slane %v1233, 4
        %v1235 = vadd.f32 %v1233, %v1234
        %v1236 = vrot.slane %v1235, 2
        %v1237 = vadd.f32 %v1235, %v1236
        %v1238 = vrot.slane %v1237, 1
        %v1239 = vadd.f32 %v1237, %v1238
        %v1240 = vadd.f32 %v1166, %v1167
        %v1241 = vadd.f32 %v1240, %v1168
        %v1242 = vadd.f32 %v1241, %v1169
        %v1243 = vrot.slane %v1242, 4
        %v1244 = vadd.f32 %v1242, %v1243
        %v1245 = vrot.slane %v1244, 2
        %v1246 = vadd.f32 %v1244, %v1245
        %v1247 = vrot.slane %v1246, 1
        %v1248 = vadd.f32 %v1246, %v1247
        %v1249 = vadd.f32 %v1170, %v1171
        %v1250 = vadd.f32 %v1249, %v1172
        %v1251 = vadd.f32 %v1250, %v1173
        %v1252 = vrot.slane %v1251, 4
        %v1253 = vadd.f32 %v1251, %v1252
        %v1254 = vrot.slane %v1253, 2
        %v1255 = vadd.f32 %v1253, %v1254
        %v1256 = vrot.slane %v1255, 1
        %v1257 = vadd.f32 %v1255, %v1256
        %v1258 = vadd.f32 %v1174, %v1175
        %v1259 = vadd.f32 %v1258, %v1176
        %v1260 = vadd.f32 %v1259, %v1177
        %v1261 = vrot.slane %v1260, 4
        %v1262 = vadd.f32 %v1260, %v1261
        %v1263 = vrot.slane %v1262, 2
        %v1264 = vadd.f32 %v1262, %v1263
        %v1265 = vrot.slane %v1264, 1
        %v1266 = vadd.f32 %v1264, %v1265
        %vm1267 = vcmask 1040384
        %v1268 = vsel %vm1267, %v1203, %v1212
        %vm1269 = vcmask 1041408
        %v1270 = vsel %vm1269, %v1268, %v1221
        %vm1271 = vcmask 1042432
        %v1272 = vsel %vm1271, %v1270, %v1230
        %vm1273 = vcmask 1043456
        %v1274 = vsel %vm1273, %v1272, %v1239
        %vm1275 = vcmask 1044480
        %v1276 = vsel %vm1275, %v1274, %v1248
        %vm1277 = vcmask 1045504
        %v1278 = vsel %vm1277, %v1276, %v1257
        %vm1279 = vcmask 1046528
        %v1280 = vsel %vm1279, %v1278, %v1266
        %v1281 = vadd.f32 %v1194, %v1280
        %1282 = vst [vmem:[%s359] sm:$0xff] %v1281
        %v1283 = vld [vmem:[%s367] sm:$0x7]
        %v1284 = vadd.f32 %v407, %v408
        %v1285 = vadd.f32 %v1284, %v409
        %v1286 = vadd.f32 %v1285, %v410
        %v1287 = vrot.slane %v1286, 4
        %v1288 = vadd.f32 %v1286, %v1287
        %v1289 = vrot.slane %v1288, 2
        %v1290 = vadd.f32 %v1288, %v1289
        %v1291 = vrot.slane %v1290, 1
        %v1292 = vadd.f32 %v1290, %v1291
        %v1293 = vadd.f32 %v425, %v426
        %v1294 = vadd.f32 %v1293, %v427
        %v1295 = vadd.f32 %v1294, %v428
        %v1296 = vrot.slane %v1295, 4
        %v1297 = vadd.f32 %v1295, %v1296
        %v1298 = vrot.slane %v1297, 2
        %v1299 = vadd.f32 %v1297, %v1298
        %v1300 = vrot.slane %v1299, 1
        %v1301 = vadd.f32 %v1299, %v1300
        %v1302 = vadd.f32 %v443, %v444
        %v1303 = vadd.f32 %v1302, %v445
        %v1304 = vadd.f32 %v1303, %v446
        %v1305 = vrot.slane %v1304, 4
        %v1306 = vadd.f32 %v1304, %v1305
        %v1307 = vrot.slane %v1306, 2
        %v1308 = vadd.f32 %v1306, %v1307
        %v1309 = vrot.slane %v1308, 1
        %v1310 = vadd.f32 %v1308, %v1309
        %v1311 = vsel %vm1267, %v1292, %v1301
        %v1312 = vsel %vm1269, %v1311, %v1310
        %v1313 = vadd.f32 %v1283, %v1312
        %1314 = vst [vmem:[%s367] sm:$0x7] %v1313
        %v1315 = vld [vmem:[%s375] sm:$0xf]
        %v1316 = vadd.f32 %v1178, %v1179
        %v1317 = vadd.f32 %v1316, %v1180
        %v1318 = vadd.f32 %v1317, %v1181
        %v1319 = vrot.slane %v1318, 4
        %v1320 = vadd.f32 %v1318, %v1319
        %v1321 = vrot.slane %v1320, 2
        %v1322 = vadd.f32 %v1320, %v1321
        %v1323 = vrot.slane %v1322, 1
        %v1324 = vadd.f32 %v1322, %v1323
        %v1325 = vadd.f32 %v1182, %v1183
        %v1326 = vadd.f32 %v1325, %v1184
        %v1327 = vadd.f32 %v1326, %v1185
        %v1328 = vrot.slane %v1327, 4
        %v1329 = vadd.f32 %v1327, %v1328
        %v1330 = vrot.slane %v1329, 2
        %v1331 = vadd.f32 %v1329, %v1330
        %v1332 = vrot.slane %v1331, 1
        %v1333 = vadd.f32 %v1331, %v1332
        %v1334 = vadd.f32 %v1186, %v1187
        %v1335 = vadd.f32 %v1334, %v1188
        %v1336 = vadd.f32 %v1335, %v1189
        %v1337 = vrot.slane %v1336, 4
        %v1338 = vadd.f32 %v1336, %v1337
        %v1339 = vrot.slane %v1338, 2
        %v1340 = vadd.f32 %v1338, %v1339
        %v1341 = vrot.slane %v1340, 1
        %v1342 = vadd.f32 %v1340, %v1341
        %v1343 = vadd.f32 %v1190, %v1191
        %v1344 = vadd.f32 %v1343, %v1192
        %v1345 = vadd.f32 %v1344, %v1193
        %v1346 = vrot.slane %v1345, 4
        %v1347 = vadd.f32 %v1345, %v1346
        %v1348 = vrot.slane %v1347, 2
        %v1349 = vadd.f32 %v1347, %v1348
        %v1350 = vrot.slane %v1349, 1
        %v1351 = vadd.f32 %v1349, %v1350
        %v1352 = vsel %vm1267, %v1324, %v1333
        %v1353 = vsel %vm1269, %v1352, %v1342
        %v1354 = vsel %vm1271, %v1353, %v1351
        %v1355 = vadd.f32 %v1315, %v1354
        %1356 = vst [vmem:[%s375] sm:$0xf] %v1355
        %v1357 = vmul.f32 %v825, %v407
        %v1358 = vmul.f32 %v826, %v408
        %v1359 = vmul.f32 %v827, %v409
        %v1360 = vmul.f32 %v828, %v410
        %v1361 = vmul.f32 %v825, %v425
        %v1362 = vmul.f32 %v826, %v426
        %v1363 = vmul.f32 %v827, %v427
        %v1364 = vmul.f32 %v828, %v428
        %v1365 = vmul.f32 %v825, %v443
        %v1366 = vmul.f32 %v826, %v444
        %v1367 = vmul.f32 %v827, %v445
        %v1368 = vmul.f32 %v828, %v446
        %v1369 = vmul.f32 %v919, %v407
        %v1370 = vmul.f32 %v920, %v408
        %v1371 = vmul.f32 %v921, %v409
        %v1372 = vmul.f32 %v922, %v410
        %v1373 = vmul.f32 %v919, %v425
        %v1374 = vmul.f32 %v920, %v426
        %v1375 = vmul.f32 %v921, %v427
        %v1376 = vmul.f32 %v922, %v428
        %v1377 = vmul.f32 %v919, %v443
        %v1378 = vmul.f32 %v920, %v444
        %v1379 = vmul.f32 %v921, %v445
        %v1380 = vmul.f32 %v922, %v446
        %v1381 = vmul.f32 %v1013, %v407
        %v1382 = vmul.f32 %v1014, %v408
        %v1383 = vmul.f32 %v1015, %v409
        %v1384 = vmul.f32 %v1016, %v410
        %v1385 = vmul.f32 %v1013, %v425
        %v1386 = vmul.f32 %v1014, %v426
        %v1387 = vmul.f32 %v1015, %v427
        %v1388 = vmul.f32 %v1016, %v428
        %v1389 = vmul.f32 %v1013, %v443
        %v1390 = vmul.f32 %v1014, %v444
        %v1391 = vmul.f32 %v1015, %v445
        %v1392 = vmul.f32 %v1016, %v446
        %v1393 = vmul.f32 %v1107, %v407
        %v1394 = vmul.f32 %v1108, %v408
        %v1395 = vmul.f32 %v1109, %v409
        %v1396 = vmul.f32 %v1110, %v410
        %v1397 = vmul.f32 %v1107, %v425
        %v1398 = vmul.f32 %v1108, %v426
        %v1399 = vmul.f32 %v1109, %v427
        %v1400 = vmul.f32 %v1110, %v428
        %v1401 = vmul.f32 %v1107, %v443
        %v1402 = vmul.f32 %v1108, %v444
        %v1403 = vmul.f32 %v1109, %v445
        %v1404 = vmul.f32 %v1110, %v446
        %v1405 = vld [vmem:[%s384] sm:$0xff]
        %v1406 = vld [vmem:[%s384 + $0x8] sm:$0xf]
        %v1407 = vadd.f32 %v1357, %v1358
        %v1408 = vadd.f32 %v1407, %v1359
        %v1409 = vadd.f32 %v1408, %v1360
        %v1410 = vrot.slane %v1409, 4
        %v1411 = vadd.f32 %v1409, %v1410
        %v1412 = vrot.slane %v1411, 2
        %v1413 = vadd.f32 %v1411, %v1412
        %v1414 = vrot.slane %v1413, 1
        %v1415 = vadd.f32 %v1413, %v1414
        %v1416 = vadd.f32 %v1361, %v1362
        %v1417 = vadd.f32 %v1416, %v1363
        %v1418 = vadd.f32 %v1417, %v1364
        %v1419 = vrot.slane %v1418, 4
        %v1420 = vadd.f32 %v1418, %v1419
        %v1421 = vrot.slane %v1420, 2
        %v1422 = vadd.f32 %v1420, %v1421
        %v1423 = vrot.slane %v1422, 1
        %v1424 = vadd.f32 %v1422, %v1423
        %v1425 = vadd.f32 %v1365, %v1366
        %v1426 = vadd.f32 %v1425, %v1367
        %v1427 = vadd.f32 %v1426, %v1368
        %v1428 = vrot.slane %v1427, 4
        %v1429 = vadd.f32 %v1427, %v1428
        %v1430 = vrot.slane %v1429, 2
        %v1431 = vadd.f32 %v1429, %v1430
        %v1432 = vrot.slane %v1431, 1
        %v1433 = vadd.f32 %v1431, %v1432
        %v1434 = vadd.f32 %v1369, %v1370
        %v1435 = vadd.f32 %v1434, %v1371
        %v1436 = vadd.f32 %v1435, %v1372
        %v1437 = vrot.slane %v1436, 4
        %v1438 = vadd.f32 %v1436, %v1437
        %v1439 = vrot.slane %v1438, 2
        %v1440 = vadd.f32 %v1438, %v1439
        %v1441 = vrot.slane %v1440, 1
        %v1442 = vadd.f32 %v1440, %v1441
        %v1443 = vadd.f32 %v1373, %v1374
        %v1444 = vadd.f32 %v1443, %v1375
        %v1445 = vadd.f32 %v1444, %v1376
        %v1446 = vrot.slane %v1445, 4
        %v1447 = vadd.f32 %v1445, %v1446
        %v1448 = vrot.slane %v1447, 2
        %v1449 = vadd.f32 %v1447, %v1448
        %v1450 = vrot.slane %v1449, 1
        %v1451 = vadd.f32 %v1449, %v1450
        %v1452 = vadd.f32 %v1377, %v1378
        %v1453 = vadd.f32 %v1452, %v1379
        %v1454 = vadd.f32 %v1453, %v1380
        %v1455 = vrot.slane %v1454, 4
        %v1456 = vadd.f32 %v1454, %v1455
        %v1457 = vrot.slane %v1456, 2
        %v1458 = vadd.f32 %v1456, %v1457
        %v1459 = vrot.slane %v1458, 1
        %v1460 = vadd.f32 %v1458, %v1459
        %v1461 = vadd.f32 %v1381, %v1382
        %v1462 = vadd.f32 %v1461, %v1383
        %v1463 = vadd.f32 %v1462, %v1384
        %v1464 = vrot.slane %v1463, 4
        %v1465 = vadd.f32 %v1463, %v1464
        %v1466 = vrot.slane %v1465, 2
        %v1467 = vadd.f32 %v1465, %v1466
        %v1468 = vrot.slane %v1467, 1
        %v1469 = vadd.f32 %v1467, %v1468
        %v1470 = vadd.f32 %v1385, %v1386
        %v1471 = vadd.f32 %v1470, %v1387
        %v1472 = vadd.f32 %v1471, %v1388
        %v1473 = vrot.slane %v1472, 4
        %v1474 = vadd.f32 %v1472, %v1473
        %v1475 = vrot.slane %v1474, 2
        %v1476 = vadd.f32 %v1474, %v1475
        %v1477 = vrot.slane %v1476, 1
        %v1478 = vadd.f32 %v1476, %v1477
        %v1479 = vadd.f32 %v1389, %v1390
        %v1480 = vadd.f32 %v1479, %v1391
        %v1481 = vadd.f32 %v1480, %v1392
        %v1482 = vrot.slane %v1481, 4
        %v1483 = vadd.f32 %v1481, %v1482
        %v1484 = vrot.slane %v1483, 2
        %v1485 = vadd.f32 %v1483, %v1484
        %v1486 = vrot.slane %v1485, 1
        %v1487 = vadd.f32 %v1485, %v1486
        %v1488 = vadd.f32 %v1393, %v1394
        %v1489 = vadd.f32 %v1488, %v1395
        %v1490 = vadd.f32 %v1489, %v1396
        %v1491 = vrot.slane %v1490, 4
        %v1492 = vadd.f32 %v1490, %v1491
        %v1493 = vrot.slane %v1492, 2
        %v1494 = vadd.f32 %v1492, %v1493
        %v1495 = vrot.slane %v1494, 1
        %v1496 = vadd.f32 %v1494, %v1495
        %v1497 = vadd.f32 %v1397, %v1398
        %v1498 = vadd.f32 %v1497, %v1399
        %v1499 = vadd.f32 %v1498, %v1400
        %v1500 = vrot.slane %v1499, 4
        %v1501 = vadd.f32 %v1499, %v1500
        %v1502 = vrot.slane %v1501, 2
        %v1503 = vadd.f32 %v1501, %v1502
        %v1504 = vrot.slane %v1503, 1
        %v1505 = vadd.f32 %v1503, %v1504
        %v1506 = vadd.f32 %v1401, %v1402
        %v1507 = vadd.f32 %v1506, %v1403
        %v1508 = vadd.f32 %v1507, %v1404
        %v1509 = vrot.slane %v1508, 4
        %v1510 = vadd.f32 %v1508, %v1509
        %v1511 = vrot.slane %v1510, 2
        %v1512 = vadd.f32 %v1510, %v1511
        %v1513 = vrot.slane %v1512, 1
        %v1514 = vadd.f32 %v1512, %v1513
        %v1515 = vsel %vm1267, %v1415, %v1424
        %v1516 = vsel %vm1269, %v1515, %v1433
        %v1517 = vsel %vm1271, %v1516, %v1442
        %v1518 = vsel %vm1273, %v1517, %v1451
        %v1519 = vsel %vm1275, %v1518, %v1460
        %v1520 = vsel %vm1277, %v1519, %v1469
        %v1521 = vsel %vm1279, %v1520, %v1478
        %v1522 = vsel %vm1267, %v1487, %v1496
        %v1523 = vsel %vm1269, %v1522, %v1505
        %v1524 = vsel %vm1271, %v1523, %v1514
        %v1525 = vadd.f32 %v1405, %v1521
        %v1526 = vadd.f32 %v1406, %v1524
        %1527 = vst [vmem:[%s384] sm:$0xff] %v1525
        %1528 = vst [vmem:[%s384 + $0x8] sm:$0xf] %v1526
        %p1529 = scmp.lt.s32.totalorder %s23, 1
        %s1530 = scalar_select %p1529, %s23, 1
        %p1531 = scmp.lt.s32.totalorder %s24, 1
        %s1532 = scalar_select %p1531, %s24, 1
        %s1533 = smul.addr %s1530, 2
        %s1534 = sadd.s32 %s1532, %s1533
        %s1535 = smul.addr %s1534, 8
        %s1536 = scalar_lea.vmem %s2, %s1535
        %p1537 = scmp.lt.s32.totalorder %s23, 1
        %s1538 = scalar_select %p1537, %s23, 1
        %p1539 = scmp.lt.s32.totalorder %s24, 1
        %s1540 = scalar_select %p1539, %s24, 1
        %s1541 = smul.addr %s1538, 2
        %s1542 = sadd.s32 %s1540, %s1541
        %s1543 = smul.addr %s1542, 4
        %s1544 = scalar_lea.vmem %s3, %s1543
        %p1545 = scmp.lt.s32.totalorder %s23, 1
        %s1546 = scalar_select %p1545, %s23, 1
        %p1547 = scmp.lt.s32.totalorder %s24, 1
        %s1548 = scalar_select %p1547, %s24, 1
        %s1549 = smul.addr %s1546, 2
        %s1550 = sadd.s32 %s1548, %s1549
        %s1551 = smul.addr %s1550, 4
        %s1552 = scalar_lea.vmem %s4, %s1551
        %p1553 = scmp.lt.s32.totalorder %s23, 1
        %s1554 = scalar_select %p1553, %s23, 1
        %p1555 = scmp.lt.s32.totalorder %s24, 1
        %s1556 = scalar_select %p1555, %s24, 1
        %s1557 = smul.addr %s1556, 2
        %s1558 = smul.addr %s1554, 4
        %s1559 = sadd.s32 %s1557, %s1558
        %s1560 = smul.addr %s1559, 8
        %s1561 = scalar_lea.vmem %s5, %s1560
        // Predicated region
        $region75: #{object_segmentation_prediction.2} parent=61 // pred_check
          %p1562 = pneg %p110
        $region76: #{object_segmentation_prediction.2} parent=61 // pred_check_branch
          %1564 = sbr.rel (%p1562) target = $region78
        $region77: #{object_segmentation_prediction.2} parent=61 // pred_region
          _
        $region78: #{object_segmentation_prediction.2} parent=61 // pred_fallthru
          _
        // Predicated region
        $region79: #{object_segmentation_prediction.2} parent=61 // pred_check
          %p1565 = pneg %p138
        $region80: #{object_segmentation_prediction.2} parent=61 // pred_check_branch
          %1567 = sbr.rel (%p1565) target = $region82
        $region81: #{object_segmentation_prediction.2} parent=61 // pred_region
          _
        $region82: #{object_segmentation_prediction.2} parent=61 // pred_fallthru
          _
        // Predicated region
        $region83: #{object_segmentation_prediction.2} parent=61 // pred_check
          %p1568 = pneg %p166
        $region84: #{object_segmentation_prediction.2} parent=61 // pred_check_branch
          %1570 = sbr.rel (%p1568) target = $region86
        $region85: #{object_segmentation_prediction.2} parent=61 // pred_region
          _
        $region86: #{object_segmentation_prediction.2} parent=61 // pred_fallthru
          _
        // Predicated region
        $region87: #{object_segmentation_prediction.2} parent=61 // pred_check
          %p1571 = pneg %p194
        $region88: #{object_segmentation_prediction.2} parent=61 // pred_check_branch
          %1573 = sbr.rel (%p1571) target = $region90
        $region89: #{object_segmentation_prediction.2} parent=61 // pred_region
          _
        $region90: #{object_segmentation_prediction.2} parent=61 // pred_fallthru
          _
      $region62: #{object_segmentation_prediction.2} parent=5 // pred_fallthru
        _
      %p1574 = scmp.le.s32.totalorder 2, %s13
      // Predicated region
      $region91: #{object_segmentation_prediction.2} parent=5 // pred_check
        %p1575 = pneg %p1574
      $region92: #{object_segmentation_prediction.2} parent=5 // pred_check_branch
        %1577 = sbr.rel (%p1575) target = $region94
      $region93: #{object_segmentation_prediction.2} parent=5 // pred_region
        %s1578 = ssub.s32 %s13, 2
        // Predicated region
        $region95: #{object_segmentation_prediction.2} parent=93 // pred_check
          %p1579 = pneg %p116
        $region96: #{object_segmentation_prediction.2} parent=93 // pred_check_branch
          %1581 = sbr.rel (%p1579) target = $region98
        $region97: #{object_segmentation_prediction.2} parent=93 // pred_region
          %p1582 = scmp.lt.s32.totalorder %s26, 1
          %s1583 = scalar_select %p1582, %s26, 1
          %p1584 = scmp.lt.s32.totalorder %s27, 1
          %s1585 = scalar_select %p1584, %s27, 1
          %s1586 = smul.addr %s1583, 2
          %s1587 = sadd.s32 %s1585, %s1586
          %s1588 = smul.addr %s1587, 8
          %s1589 = scalar_lea.vmem %s2, %s1588
        $region98: #{object_segmentation_prediction.2} parent=93 // pred_fallthru
          _
        // Predicated region
        $region99: #{object_segmentation_prediction.2} parent=93 // pred_check
          %p1590 = pneg %p144
        $region100: #{object_segmentation_prediction.2} parent=93 // pred_check_branch
          %1592 = sbr.rel (%p1590) target = $region102
        $region101: #{object_segmentation_prediction.2} parent=93 // pred_region
          %p1593 = scmp.lt.s32.totalorder %s26, 1
          %s1594 = scalar_select %p1593, %s26, 1
          %p1595 = scmp.lt.s32.totalorder %s27, 1
          %s1596 = scalar_select %p1595, %s27, 1
          %s1597 = smul.addr %s1594, 2
          %s1598 = sadd.s32 %s1596, %s1597
          %s1599 = smul.addr %s1598, 4
          %s1600 = scalar_lea.vmem %s3, %s1599
        $region102: #{object_segmentation_prediction.2} parent=93 // pred_fallthru
          _
        // Predicated region
        $region103: #{object_segmentation_prediction.2} parent=93 // pred_check
          %p1601 = pneg %p172
        $region104: #{object_segmentation_prediction.2} parent=93 // pred_check_branch
          %1603 = sbr.rel (%p1601) target = $region106
        $region105: #{object_segmentation_prediction.2} parent=93 // pred_region
          %p1604 = scmp.lt.s32.totalorder %s26, 1
          %s1605 = scalar_select %p1604, %s26, 1
          %p1606 = scmp.lt.s32.totalorder %s27, 1
          %s1607 = scalar_select %p1606, %s27, 1
          %s1608 = smul.addr %s1605, 2
          %s1609 = sadd.s32 %s1607, %s1608
          %s1610 = smul.addr %s1609, 4
          %s1611 = scalar_lea.vmem %s4, %s1610
        $region106: #{object_segmentation_prediction.2} parent=93 // pred_fallthru
          _
        // Predicated region
        $region107: #{object_segmentation_prediction.2} parent=93 // pred_check
          %p1612 = pneg %p200
        $region108: #{object_segmentation_prediction.2} parent=93 // pred_check_branch
          %1614 = sbr.rel (%p1612) target = $region110
        $region109: #{object_segmentation_prediction.2} parent=93 // pred_region
          %p1615 = scmp.lt.s32.totalorder %s26, 1
          %s1616 = scalar_select %p1615, %s26, 1
          %p1617 = scmp.lt.s32.totalorder %s27, 1
          %s1618 = scalar_select %p1617, %s27, 1
          %s1619 = smul.addr %s1618, 2
          %s1620 = smul.addr %s1616, 4
          %s1621 = sadd.s32 %s1619, %s1620
          %s1622 = smul.addr %s1621, 8
          %s1623 = scalar_lea.vmem %s5, %s1622
        $region110: #{object_segmentation_prediction.2} parent=93 // pred_fallthru
          _
      $region94: #{object_segmentation_prediction.2} parent=5 // pred_fallthru
        _
    $region6: #{object_segmentation_prediction.2} parent=1 // loop_footer
      %s17 = sadd.s32 1, %s13
    $region7: #{object_segmentation_prediction.2} parent=1 // loop_footer_branch
      %12 = sbr.rel target = $region3
    $region8: #{object_segmentation_prediction.2} parent=1 // loop_exit
      _
    %1624 = vsyncpa [#allocation4], 1
    %s1625 = scalar_lea.sflag [#allocation4], 1
    %1626 = vsyncpa %s1625, 1

// kernel: object_segmentation_prediction.3
$region0: #{object_segmentation_prediction.3}
  #allocation0 [shape = 'u32[]', space=smem, size = 0x4, offset = 0x4, fixed_abs, tag = 'smem constant byte address 0x4 - core index']
  #allocation1 [shape = 'u32[144,128]{1,0:T(1,128)}', space=vmem, size = 0x12000, scoped, tag = 'internal scratch']
  %s0 = inlined_call_operand.vmem [shape: u8[2,3,128,128], index: 0, kind: input, shape index: {}]
  %s1 = inlined_call_operand.vmem [shape: f32[12,9], index: 1, kind: input, shape index: {}]
  %s2 = inlined_call_operand.vmem [shape: f32[2,16], index: 2, kind: input, shape index: {}]
  %s3 = inlined_call_operand.vmem [shape: f32[2,128,128], index: 3, kind: output, shape index: {0}]
  %s4 = inlined_call_operand.vmem [shape: s8[2,128,128], index: 4, kind: output, shape index: {1}]
  %5 = xla_tuple %s3, %s4
  %s6 = sld [smem:[#allocation0]]
  $region99: #{object_segmentation_prediction.3} parent=0
    _
  %s8 = ssub.s32 1, %s6
  %s9 = scalar_select 0, %s8, %s6
  $region1: #{object_segmentation_prediction.3} parent=0
    #allocation2 [shape = 'u8[24576]{0}', space=vmem, size = 0x6000, scoped, tag = 'input window, operand 0']
    #allocation3 [shape = 'u8[8192]{0}', space=smem, size = 0x2000, scoped, tag = 'input window, operand 1, single buffered']
    #allocation4 [shape = 's32[2]{0}', space=sflag, size = 0x8, scoped, tag = 'scoped memory for object_segmentation_prediction.3']
    #allocation5 [shape = 'u8[1024]{0}', space=smem, size = 0x400, scoped, tag = 'input window, operand 2, single buffered']
    #allocation6 [shape = 's32[1]{0}', space=sflag, size = 0x4, scoped, tag = 'scoped memory for object_segmentation_prediction.3']
    %10 = vsyncpa [#allocation4], 0
    %11 = vsyncpa [#allocation6], 0
    loop: start=0, step=1, limit=10
    $region2: #{object_segmentation_prediction.3} parent=1 // loop_pre_header
      _
    $region3: #{object_segmentation_prediction.3} parent=1 // loop_header
      %s13 = sphi 0, %s17
      %p14 = scmp.ge.s32.totalorder %s13, 10
      %s20 = sphi 0, %s32
      %s21 = sphi 0, %s28
      %s22 = sphi 0, %s20
      %s23 = sphi 0, %s21
      %s24 = sphi 0, %s22
      %s25 = sphi 0, %s23
      %s37 = sphi 0, %s39
      %s40 = sphi 0, %s37
      %s41 = sphi 0, %s40
      %s57 = sphi 0, %s41
      %s61 = sphi 0, %s61
      %s63 = sphi 0, %s61
      %s64 = sphi 0, %s63
      %s78 = sphi 0, %s64
      %s82 = sphi 0, %s82
      %s84 = sphi 0, %s82
      %s85 = sphi 0, %s84
      %s99 = sphi 0, %s85
      %s107 = sphi 0, %s109
      %s110 = sphi 0, %s107
      %s111 = sphi 0, %s110
      %s127 = sphi 0, %s111
      %s135 = sphi 0, %s137
      %s138 = sphi 0, %s135
      %s139 = sphi 0, %s138
      %s155 = sphi 0, %s139
    $region4: #{object_segmentation_prediction.3} parent=1 // loop_header_branch
      %16 = sbr.rel (%p14) target = $region8
    $region5: #{object_segmentation_prediction.3} parent=1 // loop_body
      %s18 = ssub.s32 %s13, 1
      %s19 = ssub.s32 %s13, 2
      %s26 = sadd.s32 1, %s21
      %p27 = scmp.ge.s32.totalorder %s26, 4
      %s28 = scalar_select %p27, 0, %s26
      %s29 = sadd.s32 1, %s20
      %s30 = scalar_select %p27, %s29, %s20
      %p31 = scmp.ge.s32.totalorder %s30, 2
      %s32 = scalar_select %p31, 0, %s30
      %s33 = ssub.s32 %s20, %s32
      %s34 = ssub.s32 %s21, %s28
      %s35 = sor.u32 %s33, %s34
      %p36 = scmp.eq.s32.totalorder %s35, 0
      %s38 = sadd.s32 %s37, 1
      %s39 = scalar_select %p36, %s37, %s38
      %p42 = pneg %p36
      %p43 = scmp.eq.s32.totalorder %s13, 7
      %p44 = por %p42, %p43
      %p45 = scmp.ne.s32.totalorder %s37, %s40
      %p46 = scmp.eq.s32.totalorder %s13, 0
      %p47 = por %p45, %p46
      %p48 = scmp.ne.s32.totalorder %s37, %s40
      %p49 = scmp.eq.s32.totalorder %s18, 7
      %p50 = por %p48, %p49
      %p51 = scmp.ne.s32.totalorder %s40, %s41
      %p52 = scmp.eq.s32.totalorder %s18, 0
      %p53 = por %p51, %p52
      %p54 = scmp.ne.s32.totalorder %s40, %s41
      %p55 = scmp.eq.s32.totalorder %s19, 7
      %p56 = por %p54, %p55
      %p58 = scmp.ne.s32.totalorder %s41, %s57
      %p59 = scmp.eq.s32.totalorder %s19, 0
      %p60 = por %p58, %p59
      %s62 = sadd.s32 %s61, 1
      %p65 = scmp.eq.s32.totalorder %s13, 7
      %p66 = scmp.ne.s32.totalorder %s61, %s63
      %p67 = scmp.eq.s32.totalorder %s13, 0
      %p68 = por %p66, %p67
      %p69 = scmp.ne.s32.totalorder %s61, %s63
      %p70 = scmp.eq.s32.totalorder %s18, 7
      %p71 = por %p69, %p70
      %p72 = scmp.ne.s32.totalorder %s63, %s64
      %p73 = scmp.eq.s32.totalorder %s18, 0
      %p74 = por %p72, %p73
      %p75 = scmp.ne.s32.totalorder %s63, %s64
      %p76 = scmp.eq.s32.totalorder %s19, 7
      %p77 = por %p75, %p76
      %p79 = scmp.ne.s32.totalorder %s64, %s78
      %p80 = scmp.eq.s32.totalorder %s19, 0
      %p81 = por %p79, %p80
      %s83 = sadd.s32 %s82, 1
      %p86 = scmp.eq.s32.totalorder %s13, 7
      %p87 = scmp.ne.s32.totalorder %s82, %s84
      %p88 = scmp.eq.s32.totalorder %s13, 0
      %p89 = por %p87, %p88
      %p90 = scmp.ne.s32.totalorder %s82, %s84
      %p91 = scmp.eq.s32.totalorder %s18, 7
      %p92 = por %p90, %p91
      %p93 = scmp.ne.s32.totalorder %s84, %s85
      %p94 = scmp.eq.s32.totalorder %s18, 0
      %p95 = por %p93, %p94
      %p96 = scmp.ne.s32.totalorder %s84, %s85
      %p97 = scmp.eq.s32.totalorder %s19, 7
      %p98 = por %p96, %p97
      %p100 = scmp.ne.s32.totalorder %s85, %s99
      %p101 = scmp.eq.s32.totalorder %s19, 0
      %p102 = por %p100, %p101
      %s103 = ssub.s32 %s20, %s32
      %s104 = ssub.s32 %s21, %s28
      %s105 = sor.u32 %s103, %s104
      %p106 = scmp.eq.s32.totalorder %s105, 0
      %s108 = sadd.s32 %s107, 1
      %s109 = scalar_select %p106, %s107, %s108
      %p112 = pneg %p106
      %p113 = scmp.eq.s32.totalorder %s13, 7
      %p114 = por %p112, %p113
      %p115 = scmp.ne.s32.totalorder %s107, %s110
      %p116 = scmp.eq.s32.totalorder %s13, 0
      %p117 = por %p115, %p116
      %p118 = scmp.ne.s32.totalorder %s107, %s110
      %p119 = scmp.eq.s32.totalorder %s18, 7
      %p120 = por %p118, %p119
      %p121 = scmp.ne.s32.totalorder %s110, %s111
      %p122 = scmp.eq.s32.totalorder %s18, 0
      %p123 = por %p121, %p122
      %p124 = scmp.ne.s32.totalorder %s110, %s111
      %p125 = scmp.eq.s32.totalorder %s19, 7
      %p126 = por %p124, %p125
      %p128 = scmp.ne.s32.totalorder %s111, %s127
      %p129 = scmp.eq.s32.totalorder %s19, 0
      %p130 = por %p128, %p129
      %s131 = ssub.s32 %s20, %s32
      %s132 = ssub.s32 %s21, %s28
      %s133 = sor.u32 %s131, %s132
      %p134 = scmp.eq.s32.totalorder %s133, 0
      %s136 = sadd.s32 %s135, 1
      %s137 = scalar_select %p134, %s135, %s136
      %p140 = pneg %p134
      %p141 = scmp.eq.s32.totalorder %s13, 7
      %p142 = por %p140, %p141
      %p143 = scmp.ne.s32.totalorder %s135, %s138
      %p144 = scmp.eq.s32.totalorder %s13, 0
      %p145 = por %p143, %p144
      %p146 = scmp.ne.s32.totalorder %s135, %s138
      %p147 = scmp.eq.s32.totalorder %s18, 7
      %p148 = por %p146, %p147
      %p149 = scmp.ne.s32.totalorder %s138, %s139
      %p150 = scmp.eq.s32.totalorder %s18, 0
      %p151 = por %p149, %p150
      %p152 = scmp.ne.s32.totalorder %s138, %s139
      %p153 = scmp.eq.s32.totalorder %s19, 7
      %p154 = por %p152, %p153
      %p156 = scmp.ne.s32.totalorder %s139, %s155
      %p157 = scmp.eq.s32.totalorder %s19, 0
      %p158 = por %p156, %p157
      %p159 = scmp.le.s32.totalorder 1, %s13
      %p160 = scmp.lt.s32.totalorder %s13, 9
      %p161 = pnand %p159, %p160
      %p162 = pneg %p161
      // Predicated region
      $region9: #{object_segmentation_prediction.3} parent=5 // pred_check
        _
      $region10: #{object_segmentation_prediction.3} parent=5 // pred_check_branch
        %164 = sbr.rel (%p161) target = $region12
      $region11: #{object_segmentation_prediction.3} parent=5 // pred_region
        %s165 = ssub.s32 %s13, 1
        // Predicated region
        $region13: #{object_segmentation_prediction.3} parent=11 // pred_check
          %p166 = pneg %p74
        $region14: #{object_segmentation_prediction.3} parent=11 // pred_check_branch
          %168 = sbr.rel (%p166) target = $region16
        $region15: #{object_segmentation_prediction.3} parent=11 // pred_region
          %s170 = ssub.s32 256, 256
          %171 = vsyncadd [#allocation4], %s170
          %s172 = sshll.u32 %s1, 4
          %s173 = int_to_ptr.vmem [resolvable:$true] %s172
          %178 = dma.vmem_to_smem %s173, 256, [#allocation3], [#allocation4], 128, 128, 8
        $region16: #{object_segmentation_prediction.3} parent=11 // pred_fallthru
          _
        // Predicated region
        $region17: #{object_segmentation_prediction.3} parent=11 // pred_check
          %p179 = pneg %p95
        $region18: #{object_segmentation_prediction.3} parent=11 // pred_check_branch
          %181 = sbr.rel (%p179) target = $region20
        $region19: #{object_segmentation_prediction.3} parent=11 // pred_region
          %s183 = ssub.s32 32, 32
          %184 = vsyncadd [#allocation6], %s183
          %s186 = sshll.u32 %s2, 4
          %s187 = int_to_ptr.vmem [resolvable:$true] %s186
          %189 = dma.vmem_to_smem %s187, 32, [#allocation5], [#allocation6]
        $region20: #{object_segmentation_prediction.3} parent=11 // pred_fallthru
          _
      $region12: #{object_segmentation_prediction.3} parent=5 // pred_fallthru
        _
      %p190 = scmp.lt.s32.totalorder %s13, 8
      // Predicated region
      $region21: #{object_segmentation_prediction.3} parent=5 // pred_check
        %p191 = pneg %p190
      $region22: #{object_segmentation_prediction.3} parent=5 // pred_check_branch
        %193 = sbr.rel (%p191) target = $region24
      $region23: #{object_segmentation_prediction.3} parent=5 // pred_region
        // Predicated region
        $region25: #{object_segmentation_prediction.3} parent=23 // pred_check
          %p194 = pneg %p47
        $region26: #{object_segmentation_prediction.3} parent=23 // pred_check_branch
          %196 = sbr.rel (%p194) target = $region28
        $region27: #{object_segmentation_prediction.3} parent=23 // pred_region
          %s197 = sand.u32 %s37, 1
          %s198 = sand.u32 %s37, 1
          %s199 = smul.addr %s198, 24
          %s200 = scalar_lea.vmem [#allocation2], %s199
          %s201 = smul.addr %s20, 12
          %s202 = sadd.s32 %s21, %s201
          %s203 = smul.addr %s202, 8
          %s204 = scalar_lea.vmem %s0, %s203
          // Predicated region
          $region29: #{object_segmentation_prediction.3} parent=27 // pred_check
            _
          $region30: #{object_segmentation_prediction.3} parent=27 // pred_check_branch
            %206 = sbr.rel (0) target = $region32
          $region31: #{object_segmentation_prediction.3} parent=27 // pred_region
            // Predicated region
            $region33: #{object_segmentation_prediction.3} parent=31 // pred_check
              _
            $region34: #{object_segmentation_prediction.3} parent=31 // pred_check_branch
              %208 = sbr.rel (0) target = $region36
            $region35: #{object_segmentation_prediction.3} parent=31 // pred_region
              // Predicated region
              $region48: #{object_segmentation_prediction.3} parent=35 // pred_check
                _
              $region49: #{object_segmentation_prediction.3} parent=35 // pred_check_branch
                %227 = sbr.rel (0) target = $region51
              $region50: #{object_segmentation_prediction.3} parent=35 // pred_region
                loop: start=0, step=1, limit=1
                $region52: #{object_segmentation_prediction.3} parent=50 // loop_pre_header
                  _
                $region53: #{object_segmentation_prediction.3} parent=50 // loop_header
                  %s229 = sphi 0, %s233
                  %p230 = scmp.ge.s32.totalorder %s229, 1
                  %s234 = sphi %s204, %s204
                  %s235 = sphi %s200, %s200
                $region54: #{object_segmentation_prediction.3} parent=50 // loop_header_branch
                  %232 = sbr.rel (%p230) target = $region58
                $region55: #{object_segmentation_prediction.3} parent=50 // loop_body
                  %v236 = vld [vmem:[%s234] sm:$0xff]
                  %237 = vst [vmem:[%s235] sm:$0xff] %v236
                  %v238 = vld [vmem:[%s234 + $0x20] sm:$0xff]
                  %239 = vst [vmem:[%s235 + $0x8] sm:$0xff] %v238
                  %v240 = vld [vmem:[%s234 + $0x40] sm:$0xff]
                  %241 = vst [vmem:[%s235 + $0x10] sm:$0xff] %v240
                $region56: #{object_segmentation_prediction.3} parent=50 // loop_footer
                  %s233 = sadd.s32 1, %s229
                $region57: #{object_segmentation_prediction.3} parent=50 // loop_footer_branch
                  %228 = sbr.rel target = $region53
                $region58: #{object_segmentation_prediction.3} parent=50 // loop_exit
                  _
              $region51: #{object_segmentation_prediction.3} parent=35 // pred_fallthru
                _
              // Predicated region
              $region59: #{object_segmentation_prediction.3} parent=35 // pred_check
                _
              $region60: #{object_segmentation_prediction.3} parent=35 // pred_check_branch
                %243 = sbr.rel target = $region62
              $region61: #{object_segmentation_prediction.3} parent=35 // pred_region
                _
              $region62: #{object_segmentation_prediction.3} parent=35 // pred_fallthru
                _
            $region36: #{object_segmentation_prediction.3} parent=31 // pred_fallthru
              _
            // Predicated region
            $region37: #{object_segmentation_prediction.3} parent=31 // pred_check
              _
            $region38: #{object_segmentation_prediction.3} parent=31 // pred_check_branch
              %210 = sbr.rel target = $region40
            $region39: #{object_segmentation_prediction.3} parent=31 // pred_region
              loop: start=0, step=1, limit=1
              $region41: #{object_segmentation_prediction.3} parent=39 // loop_pre_header
                _
              $region42: #{object_segmentation_prediction.3} parent=39 // loop_header
                %s213 = sphi 0, %s217
                %p214 = scmp.ge.s32.totalorder %s213, 1
                %s218 = sphi %s204, %s204
                %s219 = sphi %s200, %s200
              $region43: #{object_segmentation_prediction.3} parent=39 // loop_header_branch
                %216 = sbr.rel (%p214) target = $region47
              $region44: #{object_segmentation_prediction.3} parent=39 // loop_body
                %v220 = vld [vmem:[%s218] sm:$0xff]
                %221 = vst [vmem:[%s219] sm:$0xff] %v220
                %v222 = vld [vmem:[%s218 + $0x20] sm:$0xff]
                %223 = vst [vmem:[%s219 + $0x8] sm:$0xff] %v222
                %v224 = vld [vmem:[%s218 + $0x40] sm:$0xff]
                %225 = vst [vmem:[%s219 + $0x10] sm:$0xff] %v224
              $region45: #{object_segmentation_prediction.3} parent=39 // loop_footer
                %s217 = sadd.s32 1, %s213
              $region46: #{object_segmentation_prediction.3} parent=39 // loop_footer_branch
                %212 = sbr.rel target = $region42
              $region47: #{object_segmentation_prediction.3} parent=39 // loop_exit
                _
            $region40: #{object_segmentation_prediction.3} parent=31 // pred_fallthru
              _
          $region32: #{object_segmentation_prediction.3} parent=27 // pred_fallthru
            _
          %244 = vnop
        $region28: #{object_segmentation_prediction.3} parent=23 // pred_fallthru
          _
      $region24: #{object_segmentation_prediction.3} parent=5 // pred_fallthru
        _
      %p245 = scmp.le.s32.totalorder 1, %s13
      %p246 = scmp.lt.s32.totalorder %s13, 9
      %p247 = pnand %p245, %p246
      %p248 = pneg %p247
      // Predicated region
      $region63: #{object_segmentation_prediction.3} parent=5 // pred_check
        _
      $region64: #{object_segmentation_prediction.3} parent=5 // pred_check_branch
        %250 = sbr.rel (%p247) target = $region66
      $region65: #{object_segmentation_prediction.3} parent=5 // pred_region
        %s251 = ssub.s32 %s13, 1
        %s252 = sand.u32 %s40, 1
        %s253 = sand.u32 %s40, 1
        %s254 = smul.addr %s253, 24
        %s255 = scalar_lea.vmem [#allocation2], %s254
        // Predicated region
        $region67: #{object_segmentation_prediction.3} parent=65 // pred_check
          %p256 = pneg %p53
        $region68: #{object_segmentation_prediction.3} parent=65 // pred_check_branch
          %258 = sbr.rel (%p256) target = $region70
        $region69: #{object_segmentation_prediction.3} parent=65 // pred_region
          _
        $region70: #{object_segmentation_prediction.3} parent=65 // pred_fallthru
          _
        // Predicated region
        $region71: #{object_segmentation_prediction.3} parent=65 // pred_check
          %p259 = pneg %p74
        $region72: #{object_segmentation_prediction.3} parent=65 // pred_check_branch
          %261 = sbr.rel (%p259) target = $region74
        $region73: #{object_segmentation_prediction.3} parent=65 // pred_region
          %262 = dma.done [#allocation4], 256
        $region74: #{object_segmentation_prediction.3} parent=65 // pred_fallthru
          _
        // Predicated region
        $region75: #{object_segmentation_prediction.3} parent=65 // pred_check
          %p263 = pneg %p95
        $region76: #{object_segmentation_prediction.3} parent=65 // pred_check_branch
          %265 = sbr.rel (%p263) target = $region78
        $region77: #{object_segmentation_prediction.3} parent=65 // pred_region
          %266 = dma.done [#allocation6], 32
        $region78: #{object_segmentation_prediction.3} parent=65 // pred_fallthru
          _
        %267 = sfence
        %s268 = sand.u32 %s40, 1
        %s269 = sand.u32 %s40, 1
        %s270 = smul.addr %s269, 24
        %s271 = scalar_lea.vmem [#allocation2], %s270
        %p272 = pneg %p53
        %p273 = pneg %p50
        %p274 = pneg %p74
        %p275 = pneg %p71
        %p276 = pneg %p95
        %p277 = pneg %p92
        %p278 = pneg %p123
        %p279 = pneg %p120
        %s280 = smul.u32 4, %s23
        %p281 = scmp.lt.s32.totalorder %s22, 1
        %s282 = scalar_select %p281, %s22, 1
        %p283 = scmp.lt.s32.totalorder %s280, 15
        %s284 = scalar_select %p283, %s280, 15
        %s285 = smul.addr %s282, 16
        %s286 = sadd.s32 %s284, %s285
        %s287 = smul.addr %s286, 8
        %s288 = scalar_lea.vmem %s3, %s287
        %p289 = pneg %p151
        %p290 = pneg %p148
        %s291 = smul.u32 4, %s23
        %p292 = scmp.lt.s32.totalorder %s22, 1
        %s293 = scalar_select %p292, %s22, 1
        %p294 = scmp.lt.s32.totalorder %s291, 15
        %s295 = scalar_select %p294, %s291, 15
        %s296 = smul.addr %s293, 16
        %s297 = sadd.s32 %s295, %s296
        %s298 = smul.addr %s297, 2
        %s299 = scalar_lea.vmem %s4, %s298
        %s300 = smul.u32 4, %s23
        %p301 = scmp.lt.s32.totalorder %s22, 1
        %s302 = scalar_select %p301, %s22, 1
        %p303 = scmp.lt.s32.totalorder %s300, 15
        %s304 = scalar_select %p303, %s300, 15
        %s305 = smul.addr %s302, 16
        %s306 = sadd.s32 %s304, %s305
        %s307 = smul.addr %s306, 8
        %s308 = scalar_lea.vmem %s3, %s307
        %s309 = smul.u32 4, %s23
        %s310 = smul.u32 4, %s23
        %p311 = scmp.lt.s32.totalorder %s22, 1
        %s312 = scalar_select %p311, %s22, 1
        %p313 = scmp.lt.s32.totalorder %s310, 15
        %s314 = scalar_select %p313, %s310, 15
        %s315 = smul.addr %s312, 16
        %s316 = sadd.s32 %s314, %s315
        %s317 = smul.addr %s316, 2
        %s318 = scalar_lea.vmem %s4, %s317
        %s319 = smul.u32 4, %s23
        %v322 = vld [vmem:[%s255] sm:$0xff]
        %v323 = vunpack.c.0.s8 %v322
        %v324 = vunpack.c.1.s8 %v322
        %v325 = vunpack.c.2.s8 %v322
        %v326 = vunpack.c.3.s8 %v322
        %v327 = vand.u32 %v323, 255
        %v328 = vand.u32 %v324, 255
        %v329 = vand.u32 %v325, 255
        %v330 = vand.u32 %v326, 255
        %v331 = vcvt.s32.f32 %v327
        %v332 = vcvt.s32.f32 %v328
        %v333 = vcvt.s32.f32 %v329
        %v334 = vcvt.s32.f32 %v330
        %v335 = vmul.f32 %v331, 0.003921569
        %v336 = vmul.f32 %v332, 0.003921569
        %v337 = vmul.f32 %v333, 0.003921569
        %v338 = vmul.f32 %v334, 0.003921569
        %s339 = scalar_lea.vmem %s255, 8 [#allocation2]
        %v340 = vld [vmem:[%s339] sm:$0xff]
        %v341 = vunpack.c.0.s8 %v340
        %v342 = vunpack.c.1.s8 %v340
        %v343 = vunpack.c.2.s8 %v340
        %v344 = vunpack.c.3.s8 %v340
        %v345 = vand.u32 %v341, 255
        %v346 = vand.u32 %v342, 255
        %v347 = vand.u32 %v343, 255
        %v348 = vand.u32 %v344, 255
        %v349 = vcvt.s32.f32 %v345
        %v350 = vcvt.s32.f32 %v346
        %v351 = vcvt.s32.f32 %v347
        %v352 = vcvt.s32.f32 %v348
        %v353 = vmul.f32 %v349, 0.003921569
        %v354 = vmul.f32 %v350, 0.003921569
        %v355 = vmul.f32 %v351, 0.003921569
        %v356 = vmul.f32 %v352, 0.003921569
        %s357 = scalar_lea.vmem %s255, 16 [#allocation2]
        %v358 = vld [vmem:[%s357] sm:$0xff]
        %v359 = vunpack.c.0.s8 %v358
        %v360 = vunpack.c.1.s8 %v358
        %v361 = vunpack.c.2.s8 %v358
        %v362 = vunpack.c.3.s8 %v358
        %v363 = vand.u32 %v359, 255
        %v364 = vand.u32 %v360, 255
        %v365 = vand.u32 %v361, 255
        %v366 = vand.u32 %v362, 255
        %v367 = vcvt.s32.f32 %v363
        %v368 = vcvt.s32.f32 %v364
        %v369 = vcvt.s32.f32 %v365
        %v370 = vcvt.s32.f32 %v366
        %v371 = vmul.f32 %v367, 0.003921569
        %v372 = vmul.f32 %v368, 0.003921569
        %v373 = vmul.f32 %v369, 0.003921569
        %v374 = vmul.f32 %v370, 0.003921569
        %s375 = sld [smem:[#allocation3]]
        %v376 = vstv %s375
        %v377 = vmul.f32 %v376, %v335
        %v378 = vmul.f32 %v376, %v336
        %v379 = vmul.f32 %v376, %v337
        %v380 = vmul.f32 %v376, %v338
        %s381 = sld [smem:[#allocation3 + $0x1]]
        %v382 = vstv %s381
        %v383 = vmul.f32 %v382, %v353
        %v384 = vmul.f32 %v382, %v354
        %v385 = vmul.f32 %v382, %v355
        %v386 = vmul.f32 %v382, %v356
        %v387 = vadd.f32 %v377, %v383
        %v388 = vadd.f32 %v378, %v384
        %v389 = vadd.f32 %v379, %v385
        %v390 = vadd.f32 %v380, %v386
        %s391 = sld [smem:[#allocation3 + $0x2]]
        %v392 = vstv %s391
        %v393 = vmul.f32 %v392, %v371
        %v394 = vmul.f32 %v392, %v372
        %v395 = vmul.f32 %v392, %v373
        %v396 = vmul.f32 %v392, %v374
        %v397 = vadd.f32 %v387, %v393
        %v398 = vadd.f32 %v388, %v394
        %v399 = vadd.f32 %v389, %v395
        %v400 = vadd.f32 %v390, %v396
        %s401 = sld [smem:[#allocation3 + $0x3]]
        %v402 = vstv %s401
        %v403 = vadd.f32 %v397, %v402
        %v404 = vadd.f32 %v398, %v402
        %v405 = vadd.f32 %v399, %v402
        %v406 = vadd.f32 %v400, %v402
        %v407 = vmax.f32 %v403, 0.0
        %v408 = vmax.f32 %v404, 0.0
        %v409 = vmax.f32 %v405, 0.0
        %v410 = vmax.f32 %v406, 0.0
        %s411 = sld [smem:[#allocation3 + $0x80]]
        %v412 = vstv %s411
        %v413 = vmul.f32 %v412, %v335
        %v414 = vmul.f32 %v412, %v336
        %v415 = vmul.f32 %v412, %v337
        %v416 = vmul.f32 %v412, %v338
        %s417 = sld [smem:[#allocation3 + $0x81]]
        %v418 = vstv %s417
        %v419 = vmul.f32 %v418, %v353
        %v420 = vmul.f32 %v418, %v354
        %v421 = vmul.f32 %v418, %v355
        %v422 = vmul.f32 %v418, %v356
        %v423 = vadd.f32 %v413, %v419
        %v424 = vadd.f32 %v414, %v420
        %v425 = vadd.f32 %v415, %v421
        %v426 = vadd.f32 %v416, %v422
        %s427 = sld [smem:[#allocation3 + $0x82]]
        %v428 = vstv %s427
        %v429 = vmul.f32 %v428, %v371
        %v430 = vmul.f32 %v428, %v372
        %v431 = vmul.f32 %v428, %v373
        %v432 = vmul.f32 %v428, %v374
        %v433 = vadd.f32 %v423, %v429
        %v434 = vadd.f32 %v424, %v430
        %v435 = vadd.f32 %v425, %v431
        %v436 = vadd.f32 %v426, %v432
        %s437 = sld [smem:[#allocation3 + $0x83]]
        %v438 = vstv %s437
        %v439 = vadd.f32 %v433, %v438
        %v440 = vadd.f32 %v434, %v438
        %v441 = vadd.f32 %v435, %v438
        %v442 = vadd.f32 %v436, %v438
        %v443 = vmax.f32 %v439, 0.0
        %v444 = vmax.f32 %v440, 0.0
        %v445 = vmax.f32 %v441, 0.0
        %v446 = vmax.f32 %v442, 0.0
        %s447 = sld [smem:[#allocation3 + $0x100]]
        %v448 = vstv %s447
        %v449 = vmul.f32 %v448, %v335
        %v450 = vmul.f32 %v448, %v336
        %v451 = vmul.f32 %v448, %v337
        %v452 = vmul.f32 %v448, %v338
        %s453 = sld [smem:[#allocation3 + $0x101]]
        %v454 = vstv %s453
        %v455 = vmul.f32 %v454, %v353
        %v456 = vmul.f32 %v454, %v354
        %v457 = vmul.f32 %v454, %v355
        %v458 = vmul.f32 %v454, %v356
        %v459 = vadd.f32 %v449, %v455
        %v460 = vadd.f32 %v450, %v456
        %v461 = vadd.f32 %v451, %v457
        %v462 = vadd.f32 %v452, %v458
        %s463 = sld [smem:[#allocation3 + $0x102]]
        %v464 = vstv %s463
        %v465 = vmul.f32 %v464, %v371
        %v466 = vmul.f32 %v464, %v372
        %v467 = vmul.f32 %v464, %v373
        %v468 = vmul.f32 %v464, %v374
        %v469 = vadd.f32 %v459, %v465
        %v470 = vadd.f32 %v460, %v466
        %v471 = vadd.f32 %v461, %v467
        %v472 = vadd.f32 %v462, %v468
        %s473 = sld [smem:[#allocation3 + $0x103]]
        %v474 = vstv %s473
        %v475 = vadd.f32 %v469, %v474
        %v476 = vadd.f32 %v470, %v474
        %v477 = vadd.f32 %v471, %v474
        %v478 = vadd.f32 %v472, %v474
        %v479 = vmax.f32 %v475, 0.0
        %v480 = vmax.f32 %v476, 0.0
        %v481 = vmax.f32 %v477, 0.0
        %v482 = vmax.f32 %v478, 0.0
        %s483 = sld [smem:[#allocation3 + $0x180]]
        %v484 = vstv %s483
        %v485 = vmul.f32 %v484, %v335
        %v486 = vmul.f32 %v484, %v336
        %v487 = vmul.f32 %v484, %v337
        %v488 = vmul.f32 %v484, %v338
        %s489 = sld [smem:[#allocation3 + $0x181]]
        %v490 = vstv %s489
        %v491 = vmul.f32 %v490, %v353
        %v492 = vmul.f32 %v490, %v354
        %v493 = vmul.f32 %v490, %v355
        %v494 = vmul.f32 %v490, %v356
        %v495 = vadd.f32 %v485, %v491
        %v496 = vadd.f32 %v486, %v492
        %v497 = vadd.f32 %v487, %v493
        %v498 = vadd.f32 %v488, %v494
        %s499 = sld [smem:[#allocation3 + $0x182]]
        %v500 = vstv %s499
        %v501 = vmul.f32 %v500, %v371
        %v502 = vmul.f32 %v500, %v372
        %v503 = vmul.f32 %v500, %v373
        %v504 = vmul.f32 %v500, %v374
        %v505 = vadd.f32 %v495, %v501
        %v506 = vadd.f32 %v496, %v502
        %v507 = vadd.f32 %v497, %v503
        %v508 = vadd.f32 %v498, %v504
        %s509 = sld [smem:[#allocation3 + $0x183]]
        %v510 = vstv %s509
        %v511 = vadd.f32 %v505, %v510
        %v512 = vadd.f32 %v506, %v510
        %v513 = vadd.f32 %v507, %v510
        %v514 = vadd.f32 %v508, %v510
        %v515 = vmax.f32 %v511, 0.0
        %v516 = vmax.f32 %v512, 0.0
        %v517 = vmax.f32 %v513, 0.0
        %v518 = vmax.f32 %v514, 0.0
        %s519 = sld [smem:[#allocation3 + $0x200]]
        %v520 = vstv %s519
        %v521 = vmul.f32 %v520, %v335
        %v522 = vmul.f32 %v520, %v336
        %v523 = vmul.f32 %v520, %v337
        %v524 = vmul.f32 %v520, %v338
        %s525 = sld [smem:[#allocation3 + $0x201]]
        %v526 = vstv %s525
        %v527 = vmul.f32 %v526, %v353
        %v528 = vmul.f32 %v526, %v354
        %v529 = vmul.f32 %v526, %v355
        %v530 = vmul.f32 %v526, %v356
        %v531 = vadd.f32 %v521, %v527
        %v532 = vadd.f32 %v522, %v528
        %v533 = vadd.f32 %v523, %v529
        %v534 = vadd.f32 %v524, %v530
        %s535 = sld [smem:[#allocation3 + $0x202]]
        %v536 = vstv %s535
        %v537 = vmul.f32 %v536, %v371
        %v538 = vmul.f32 %v536, %v372
        %v539 = vmul.f32 %v536, %v373
        %v540 = vmul.f32 %v536, %v374
        %v541 = vadd.f32 %v531, %v537
        %v542 = vadd.f32 %v532, %v538
        %v543 = vadd.f32 %v533, %v539
        %v544 = vadd.f32 %v534, %v540
        %s545 = sld [smem:[#allocation3 + $0x203]]
        %v546 = vstv %s545
        %v547 = vadd.f32 %v541, %v546
        %v548 = vadd.f32 %v542, %v546
        %v549 = vadd.f32 %v543, %v546
        %v550 = vadd.f32 %v544, %v546
        %v551 = vmax.f32 %v547, 0.0
        %v552 = vmax.f32 %v548, 0.0
        %v553 = vmax.f32 %v549, 0.0
        %v554 = vmax.f32 %v550, 0.0
        %s555 = sld [smem:[#allocation3 + $0x280]]
        %v556 = vstv %s555
        %v557 = vmul.f32 %v556, %v335
        %v558 = vmul.f32 %v556, %v336
        %v559 = vmul.f32 %v556, %v337
        %v560 = vmul.f32 %v556, %v338
        %s561 = sld [smem:[#allocation3 + $0x281]]
        %v562 = vstv %s561
        %v563 = vmul.f32 %v562, %v353
        %v564 = vmul.f32 %v562, %v354
        %v565 = vmul.f32 %v562, %v355
        %v566 = vmul.f32 %v562, %v356
        %v567 = vadd.f32 %v557, %v563
        %v568 = vadd.f32 %v558, %v564
        %v569 = vadd.f32 %v559, %v565
        %v570 = vadd.f32 %v560, %v566
        %s571 = sld [smem:[#allocation3 + $0x282]]
        %v572 = vstv %s571
        %v573 = vmul.f32 %v572, %v371
        %v574 = vmul.f32 %v572, %v372
        %v575 = vmul.f32 %v572, %v373
        %v576 = vmul.f32 %v572, %v374
        %v577 = vadd.f32 %v567, %v573
        %v578 = vadd.f32 %v568, %v574
        %v579 = vadd.f32 %v569, %v575
        %v580 = vadd.f32 %v570, %v576
        %s581 = sld [smem:[#allocation3 + $0x283]]
        %v582 = vstv %s581
        %v583 = vadd.f32 %v577, %v582
        %v584 = vadd.f32 %v578, %v582
        %v585 = vadd.f32 %v579, %v582
        %v586 = vadd.f32 %v580, %v582
        %v587 = vmax.f32 %v583, 0.0
        %v588 = vmax.f32 %v584, 0.0
        %v589 = vmax.f32 %v585, 0.0
        %v590 = vmax.f32 %v586, 0.0
        %s591 = sld [smem:[#allocation3 + $0x300]]
        %v592 = vstv %s591
        %v593 = vmul.f32 %v592, %v335
        %v594 = vmul.f32 %v592, %v336
        %v595 = vmul.f32 %v592, %v337
        %v596 = vmul.f32 %v592, %v338
        %s597 = sld [smem:[#allocation3 + $0x301]]
        %v598 = vstv %s597
        %v599 = vmul.f32 %v598, %v353
        %v600 = vmul.f32 %v598, %v354
        %v601 = vmul.f32 %v598, %v355
        %v602 = vmul.f32 %v598, %v356
        %v603 = vadd.f32 %v593, %v599
        %v604 = vadd.f32 %v594, %v600
        %v605 = vadd.f32 %v595, %v601
        %v606 = vadd.f32 %v596, %v602
        %s607 = sld [smem:[#allocation3 + $0x302]]
        %v608 = vstv %s607
        %v609 = vmul.f32 %v608, %v371
        %v610 = vmul.f32 %v608, %v372
        %v611 = vmul.f32 %v608, %v373
        %v612 = vmul.f32 %v608, %v374
        %v613 = vadd.f32 %v603, %v609
        %v614 = vadd.f32 %v604, %v610
        %v615 = vadd.f32 %v605, %v611
        %v616 = vadd.f32 %v606, %v612
        %s617 = sld [smem:[#allocation3 + $0x303]]
        %v618 = vstv %s617
        %v619 = vadd.f32 %v613, %v618
        %v620 = vadd.f32 %v614, %v618
        %v621 = vadd.f32 %v615, %v618
        %v622 = vadd.f32 %v616, %v618
        %v623 = vmax.f32 %v619, 0.0
        %v624 = vmax.f32 %v620, 0.0
        %v625 = vmax.f32 %v621, 0.0
        %v626 = vmax.f32 %v622, 0.0
        %s627 = sld [smem:[#allocation3 + $0x380]]
        %v628 = vstv %s627
        %v629 = vmul.f32 %v628, %v335
        %v630 = vmul.f32 %v628, %v336
        %v631 = vmul.f32 %v628, %v337
        %v632 = vmul.f32 %v628, %v338
        %s633 = sld [smem:[#allocation3 + $0x381]]
        %v634 = vstv %s633
        %v635 = vmul.f32 %v634, %v353
        %v636 = vmul.f32 %v634, %v354
        %v637 = vmul.f32 %v634, %v355
        %v638 = vmul.f32 %v634, %v356
        %v639 = vadd.f32 %v629, %v635
        %v640 = vadd.f32 %v630, %v636
        %v641 = vadd.f32 %v631, %v637
        %v642 = vadd.f32 %v632, %v638
        %s643 = sld [smem:[#allocation3 + $0x382]]
        %v644 = vstv %s643
        %v645 = vmul.f32 %v644, %v371
        %v646 = vmul.f32 %v644, %v372
        %v647 = vmul.f32 %v644, %v373
        %v648 = vmul.f32 %v644, %v374
        %v649 = vadd.f32 %v639, %v645
        %v650 = vadd.f32 %v640, %v646
        %v651 = vadd.f32 %v641, %v647
        %v652 = vadd.f32 %v642, %v648
        %s653 = sld [smem:[#allocation3 + $0x383]]
        %v654 = vstv %s653
        %v655 = vadd.f32 %v649, %v654
        %v656 = vadd.f32 %v650, %v654
        %v657 = vadd.f32 %v651, %v654
        %v658 = vadd.f32 %v652, %v654
        %v659 = vmax.f32 %v655, 0.0
        %v660 = vmax.f32 %v656, 0.0
        %v661 = vmax.f32 %v657, 0.0
        %v662 = vmax.f32 %v658, 0.0
        %s663 = smul.u32 %s22, 128
        %s664 = sld [smem:[#allocation5 + %s663]]
        %v665 = vstv %s664
        %v666 = vmul.f32 %v665, %v407
        %v667 = vmul.f32 %v665, %v408
        %v668 = vmul.f32 %v665, %v409
        %v669 = vmul.f32 %v665, %v410
        %s670 = sadd.s32 %s663, 1
        %s671 = sld [smem:[#allocation5 + %s670]]
        %v672 = vstv %s671
        %v673 = vmul.f32 %v672, %v443
        %v674 = vmul.f32 %v672, %v444
        %v675 = vmul.f32 %v672, %v445
        %v676 = vmul.f32 %v672, %v446
        %v677 = vadd.f32 %v666, %v673
        %v678 = vadd.f32 %v667, %v674
        %v679 = vadd.f32 %v668, %v675
        %v680 = vadd.f32 %v669, %v676
        %s681 = sadd.s32 %s663, 2
        %s682 = sld [smem:[#allocation5 + %s681]]
        %v683 = vstv %s682
        %v684 = vmul.f32 %v683, %v479
        %v685 = vmul.f32 %v683, %v480
        %v686 = vmul.f32 %v683, %v481
        %v687 = vmul.f32 %v683, %v482
        %v688 = vadd.f32 %v677, %v684
        %v689 = vadd.f32 %v678, %v685
        %v690 = vadd.f32 %v679, %v686
        %v691 = vadd.f32 %v680, %v687
        %s692 = sadd.s32 %s663, 3
        %s693 = sld [smem:[#allocation5 + %s692]]
        %v694 = vstv %s693
        %v695 = vmul.f32 %v694, %v515
        %v696 = vmul.f32 %v694, %v516
        %v697 = vmul.f32 %v694, %v517
        %v698 = vmul.f32 %v694, %v518
        %v699 = vadd.f32 %v688, %v695
        %v700 = vadd.f32 %v689, %v696
        %v701 = vadd.f32 %v690, %v697
        %v702 = vadd.f32 %v691, %v698
        %s703 = sadd.s32 %s663, 4
        %s704 = sld [smem:[#allocation5 + %s703]]
        %v705 = vstv %s704
        %v706 = vmul.f32 %v705, %v551
        %v707 = vmul.f32 %v705, %v552
        %v708 = vmul.f32 %v705, %v553
        %v709 = vmul.f32 %v705, %v554
        %v710 = vadd.f32 %v699, %v706
        %v711 = vadd.f32 %v700, %v707
        %v712 = vadd.f32 %v701, %v708
        %v713 = vadd.f32 %v702, %v709
        %s714 = sadd.s32 %s663, 5
        %s715 = sld [smem:[#allocation5 + %s714]]
        %v716 = vstv %s715
        %v717 = vmul.f32 %v716, %v587
        %v718 = vmul.f32 %v716, %v588
        %v719 = vmul.f32 %v716, %v589
        %v720 = vmul.f32 %v716, %v590
        %v721 = vadd.f32 %v710, %v717
        %v722 = vadd.f32 %v711, %v718
        %v723 = vadd.f32 %v712, %v719
        %v724 = vadd.f32 %v713, %v720
        %s725 = sadd.s32 %s663, 6
        %s726 = sld [smem:[#allocation5 + %s725]]
        %v727 = vstv %s726
        %v728 = vmul.f32 %v727, %v623
        %v729 = vmul.f32 %v727, %v624
        %v730 = vmul.f32 %v727, %v625
        %v731 = vmul.f32 %v727, %v626
        %v732 = vadd.f32 %v721, %v728
        %v733 = vadd.f32 %v722, %v729
        %v734 = vadd.f32 %v723, %v730
        %v735 = vadd.f32 %v724, %v731
        %s736 = sadd.s32 %s663, 7
        %s737 = sld [smem:[#allocation5 + %s736]]
        %v738 = vstv %s737
        %v739 = vmul.f32 %v738, %v659
        %v740 = vmul.f32 %v738, %v660
        %v741 = vmul.f32 %v738, %v661
        %v742 = vmul.f32 %v738, %v662
        %v743 = vadd.f32 %v732, %v739
        %v744 = vadd.f32 %v733, %v740
        %v745 = vadd.f32 %v734, %v741
        %v746 = vadd.f32 %v735, %v742
        %s747 = sadd.s32 %s663, 8
        %s748 = sld [smem:[#allocation5 + %s747]]
        %v749 = vstv %s748
        %v750 = vadd.f32 %v743, %v749
        %v751 = vadd.f32 %v744, %v749
        %v752 = vadd.f32 %v745, %v749
        %v753 = vadd.f32 %v746, %v749
        %vm754 = vcmp.gt.f32.partialorder %v750, 0.0
        %vm755 = vcmp.gt.f32.partialorder %v751, 0.0
        %vm756 = vcmp.gt.f32.partialorder %v752, 0.0
        %vm757 = vcmp.gt.f32.partialorder %v753, 0.0
        %s758 = sadd.s32 %s663, 9
        %s759 = sld [smem:[#allocation5 + %s758]]
        %v760 = vstv %s759
        %v761 = vmul.f32 %v760, %v335
        %v762 = vmul.f32 %v760, %v336
        %v763 = vmul.f32 %v760, %v337
        %v764 = vmul.f32 %v760, %v338
        %s765 = sadd.s32 %s663, 10
        %s766 = sld [smem:[#allocation5 + %s765]]
        %v767 = vstv %s766
        %v768 = vmul.f32 %v767, %v353
        %v769 = vmul.f32 %v767, %v354
        %v770 = vmul.f32 %v767, %v355
        %v771 = vmul.f32 %v767, %v356
        %v772 = vadd.f32 %v761, %v768
        %v773 = vadd.f32 %v762, %v769
        %v774 = vadd.f32 %v763, %v770
        %v775 = vadd.f32 %v764, %v771
        %s776 = sadd.s32 %s663, 11
        %s777 = sld [smem:[#allocation5 + %s776]]
        %v778 = vstv %s777
        %v779 = vmul.f32 %v778, %v371
        %v780 = vmul.f32 %v778, %v372
        %v781 = vmul.f32 %v778, %v373
        %v782 = vmul.f32 %v778, %v374
        %v783 = vadd.f32 %v772, %v779
        %v784 = vadd.f32 %v773, %v780
        %v785 = vadd.f32 %v774, %v781
        %v786 = vadd.f32 %v775, %v782
        %s787 = sadd.s32 %s663, 12
        %s788 = sld [smem:[#allocation5 + %s787]]
        %v789 = vstv %s788
        %v790 = vadd.f32 %v783, %v789
        %v791 = vadd.f32 %v784, %v789
        %v792 = vadd.f32 %v785, %v789
        %v793 = vadd.f32 %v786, %v789
        %v794 = vxor.u32 %v790, 2147483648
        %v795 = vxor.u32 %v791, 2147483648
        %v796 = vxor.u32 %v792, 2147483648
        %v797 = vxor.u32 %v793, 2147483648
        %v798 = vmul.f32 %v794, 1.442695
        %v799 = vpow.pop %v798
        %v800 = vmul.f32 %v795, 1.442695
        %v801 = vpow.pop %v800
        %v802 = vmul.f32 %v796, 1.442695
        %v803 = vpow.pop %v802
        %v804 = vmul.f32 %v797, 1.442695
        %v805 = vpow.pop %v804
        %v806 = vadd.f32 %v799, 1.0
        %v807 = vadd.f32 %v801, 1.0
        %v808 = vadd.f32 %v803, 1.0
        %v809 = vadd.f32 %v805, 1.0
        %v810 = vrcp.pop %v806
        %v811 = vmul.f32 1.0, %v810
        %v812 = vrcp.pop %v807
        %v813 = vmul.f32 1.0, %v812
        %v814 = vrcp.pop %v808
        %v815 = vmul.f32 1.0, %v814
        %v816 = vrcp.pop %v809
        %v817 = vmul.f32 1.0, %v816
        %818 = vst [vmem:[%s308] sm:$0xff] %v811
        %819 = vst [vmem:[%s308 + $0x8] sm:$0xff] %v813
        %820 = vst [vmem:[%s308 + $0x10] sm:$0xff] %v815
        %821 = vst [vmem:[%s308 + $0x18] sm:$0xff] %v817
        %vm822 = vmpackc.low %vm755, %vm754
        %vm823 = vmpackc.low %vm757, %vm756
        %vm824 = vmpackc.even %vm823, %vm822
        %v825 = vsel %vm824, 16843009, 0
        %v826 = vunpack.c.0.s8 %v825
        %v827 = vunpack.c.1.s8 %v825
        %v828 = vunpack.c.2.s8 %v825
        %v829 = vunpack.c.3.s8 %v825
        %v830 = vpack.c.b16 %v826, %v826
        %v831 = vpack.c.b8 %v830, %v830
        %v832 = vpack.c.b16 %v827, %v827
        %v833 = vpack.c.b8 %v832, %v832
        %v834 = vpack.c.b16 %v828, %v828
        %v835 = vpack.c.b8 %v834, %v834
        %v836 = vpack.c.b16 %v829, %v829
        %v837 = vpack.c.b8 %v836, %v836
        %838 = vst [vmem:[%s318] sm:$0x3] %v831
        %839 = vst [vmem:[%s318 + $0x2] sm:$0x3] %v833
        %840 = vst [vmem:[%s318 + $0x4] sm:$0x3] %v835
        %841 = vst [vmem:[%s318 + $0x6] sm:$0x3] %v837
        %s842 = smul.u32 4, %s23
        %p843 = scmp.lt.s32.totalorder %s22, 1
        %s844 = scalar_select %p843, %s22, 1
        %p845 = scmp.lt.s32.totalorder %s842, 15
        %s846 = scalar_select %p845, %s842, 15
        %s847 = smul.addr %s844, 16
        %s848 = sadd.s32 %s846, %s847
        %s849 = smul.addr %s848, 8
        %s850 = scalar_lea.vmem %s3, %s849
        %s851 = smul.u32 4, %s23
        %p852 = scmp.lt.s32.totalorder %s22, 1
        %s853 = scalar_select %p852, %s22, 1
        %p854 = scmp.lt.s32.totalorder %s851, 15
        %s855 = scalar_select %p854, %s851, 15
        %s856 = smul.addr %s853, 16
        %s857 = sadd.s32 %s855, %s856
        %s858 = smul.addr %s857, 2
        %s859 = scalar_lea.vmem %s4, %s858
        // Predicated region
        $region79: #{object_segmentation_prediction.3} parent=65 // pred_check
          %p860 = pneg %p120
        $region80: #{object_segmentation_prediction.3} parent=65 // pred_check_branch
          %862 = sbr.rel (%p860) target = $region82
        $region81: #{object_segmentation_prediction.3} parent=65 // pred_region
          %s863 = smul.u32 4, %s23
        $region82: #{object_segmentation_prediction.3} parent=65 // pred_fallthru
          _
        // Predicated region
        $region83: #{object_segmentation_prediction.3} parent=65 // pred_check
          %p864 = pneg %p148
        $region84: #{object_segmentation_prediction.3} parent=65 // pred_check_branch
          %866 = sbr.rel (%p864) target = $region86
        $region85: #{object_segmentation_prediction.3} parent=65 // pred_region
          %s867 = smul.u32 4, %s23
        $region86: #{object_segmentation_prediction.3} parent=65 // pred_fallthru
          _
      $region66: #{object_segmentation_prediction.3} parent=5 // pred_fallthru
        _
      %p868 = scmp.le.s32.totalorder 2, %s13
      // Predicated region
      $region87: #{object_segmentation_prediction.3} parent=5 // pred_check
        %p869 = pneg %p868
      $region88: #{object_segmentation_prediction.3} parent=5 // pred_check_branch
        %871 = sbr.rel (%p869) target = $region90
      $region89: #{object_segmentation_prediction.3} parent=5 // pred_region
        %s872 = ssub.s32 %s13, 2
        // Predicated region
        $region91: #{object_segmentation_prediction.3} parent=89 // pred_check
          %p873 = pneg %p126
        $region92: #{object_segmentation_prediction.3} parent=89 // pred_check_branch
          %875 = sbr.rel (%p873) target = $region94
        $region93: #{object_segmentation_prediction.3} parent=89 // pred_region
          %s876 = smul.u32 4, %s25
          %p877 = scmp.lt.s32.totalorder %s24, 1
          %s878 = scalar_select %p877, %s24, 1
          %p879 = scmp.lt.s32.totalorder %s876, 15
          %s880 = scalar_select %p879, %s876, 15
          %s881 = smul.addr %s878, 16
          %s882 = sadd.s32 %s880, %s881
          %s883 = smul.addr %s882, 8
          %s884 = scalar_lea.vmem %s3, %s883
        $region94: #{object_segmentation_prediction.3} parent=89 // pred_fallthru
          _
        // Predicated region
        $region95: #{object_segmentation_prediction.3} parent=89 // pred_check
          %p885 = pneg %p154
        $region96: #{object_segmentation_prediction.3} parent=89 // pred_check_branch
          %887 = sbr.rel (%p885) target = $region98
        $region97: #{object_segmentation_prediction.3} parent=89 // pred_region
          %s888 = smul.u32 4, %s25
          %p889 = scmp.lt.s32.totalorder %s24, 1
          %s890 = scalar_select %p889, %s24, 1
          %p891 = scmp.lt.s32.totalorder %s888, 15
          %s892 = scalar_select %p891, %s888, 15
          %s893 = smul.addr %s890, 16
          %s894 = sadd.s32 %s892, %s893
          %s895 = smul.addr %s894, 2
          %s896 = scalar_lea.vmem %s4, %s895
        $region98: #{object_segmentation_prediction.3} parent=89 // pred_fallthru
          _
      $region90: #{object_segmentation_prediction.3} parent=5 // pred_fallthru
        _
    $region6: #{object_segmentation_prediction.3} parent=1 // loop_footer
      %s17 = sadd.s32 1, %s13
    $region7: #{object_segmentation_prediction.3} parent=1 // loop_footer_branch
      %12 = sbr.rel target = $region3
    $region8: #{object_segmentation_prediction.3} parent=1 // loop_exit
      _
    %897 = vsyncpa [#allocation4], 1
    %s898 = scalar_lea.sflag [#allocation4], 1
    %899 = vsyncpa %s898, 1
    %900 = vsyncpa [#allocation6], 1

</llo_original>
